<compile_context>
chip_gen: v6e
topology: v6e:2x2x1
jax: 0.10.0
libtpu: 0.0.40
codegen_flags: <defaults>
</compile_context>

<pallas_src>
import jax
import jax.numpy as jnp
from jax.experimental import pallas as pl
from jax.experimental.pallas import tpu as pltpu

_KSIZES = (2, 3, 4, 5)        # Conv1d kernel sizes
_PADS = (1, 1, 2, 2)          # Conv1d paddings
_C_OUT = 150                  # output channels per conv
_C_HALF = 75                  # support / query channel split
_L = 31                       # sequence length (fixed by MaxPool1d(31) + [:-1])
_MAXPAD = 2                   # largest conv padding
_N_WIN = 5                    # im2col window offsets 0..4 in the padded frame
_LP = 40                      # padded time length, multiple of 8 sublanes
_N_OUT = _C_HALF * len(_KSIZES)        # 300 columns per output
_N_COLS = 2 * _N_OUT                   # 600 = [s-half conv0..3 | q-half conv0..3]


def _interact_kernel(s_ref, q_ref, ws_ref, wq_ref, b_ref, s_out_ref, q_out_ref):
    # s_ref : (1, TILE_NK, LP, D) bf16   support rows of this tile
    # q_ref : (1, NQ,      LP, D) bf16   all queries of batch b (resident across tiles)
    # ws_ref: (5D, 600) bf16   fused conv weights, support-channel input half
    # wq_ref: (5D, 600) bf16   fused conv weights, query-channel input half
    # b_ref : (1, 600)  f32    fused conv bias (s|q column order)
    # s_out_ref / q_out_ref: (1, TILE_NK, NQ, 300) f32
    tile_nk = s_ref.shape[1]
    nq = q_ref.shape[1]
    d = s_ref.shape[3]
    kd = _N_WIN * d

    def im2col(x):  # (N, LP, D) bf16 -> (N*L, 5D) bf16
        n = x.shape[0]
        windows = [x[:, m:m + _L, :] for m in range(_N_WIN)]
        return jnp.concatenate(windows, axis=-1).reshape(n * _L, kd)

    ws = ws_ref[...]
    wq = wq_ref[...]
    bias = b_ref[...]                                        # (1, 600)

    # One MXU matmul for the support rows of this tile, one for all queries of
    # the batch; the query matmul is shared by every support row (O(NK+NQ) work).
    s_contrib = jnp.dot(im2col(s_ref[0]), ws,
                        preferred_element_type=jnp.float32
                        ).reshape(tile_nk, _L, _N_COLS)       # (TILE_NK, 31, 600) f32
    q_contrib = jnp.dot(im2col(q_ref[0]), wq,
                        preferred_element_type=jnp.float32
                        ).reshape(nq, _L, _N_COLS)            # (NQ, 31, 600) f32

    # Per (nk, nq): max over time of the summed contributions, then bias + ReLU
    # (hoisted past the max — mathematically exact).
    for nk in range(tile_nk):                                 # static, small unroll
        comb = s_contrib[nk][None, :, :] + q_contrib          # (NQ, 31, 600)
        pooled = jnp.max(comb, axis=1)                        # (NQ, 600)
        out = jnp.maximum(pooled + bias, 0.0)                 # (NQ, 600)
        s_out_ref[0, nk] = out[:, :_N_OUT]
        q_out_ref[0, nk] = out[:, _N_OUT:]


def _pack_weights(conv_weights, conv_biases, d):
    """Fuse the 4 Conv1d weight tensors into (5D, 600) matrices per input half.

    Row block m*D:(m+1)*D corresponds to im2col window offset m (in the frame
    padded by MAXPAD=2).  Columns [c*75:(c+1)*75] are conv c's support-half
    output channels, columns [300+c*75:300+(c+1)*75] its query-half channels.
    """
    kd = _N_WIN * d
    ws = jnp.zeros((kd, _N_COLS), jnp.float32)
    wq = jnp.zeros((kd, _N_COLS), jnp.float32)
    bias = jnp.zeros((_N_COLS,), jnp.float32)
    for c, (k, p) in enumerate(zip(_KSIZES, _PADS)):
        w = conv_weights[c].astype(jnp.float32)              # (150, 2D, k)
        off = _MAXPAD - p
        cs = slice(c * _C_HALF, (c + 1) * _C_HALF)
        cq = slice(_N_OUT + c * _C_HALF, _N_OUT + (c + 1) * _C_HALF)
        for j in range(k):
            rows = slice((off + j) * d, (off + j + 1) * d)
            ws = ws.at[rows, cs].set(w[:_C_HALF, :d, j].T)
            ws = ws.at[rows, cq].set(w[_C_HALF:, :d, j].T)
            wq = wq.at[rows, cs].set(w[:_C_HALF, d:, j].T)
            wq = wq.at[rows, cq].set(w[_C_HALF:, d:, j].T)
        b = conv_biases[c].astype(jnp.float32)
        bias = bias.at[cs].set(b[:_C_HALF])
        bias = bias.at[cq].set(b[_C_HALF:])
    return ws.astype(jnp.bfloat16), wq.astype(jnp.bfloat16), bias.reshape(1, _N_COLS)


def cnn_interact_layer(s, q, conv_weights, conv_biases, *,
                       vmem_budget_bytes=24 << 20):
    """s: (B, N*K, L, D) f32, q: (B, N*Q, L, D) f32.
    conv_weights: list of 4 arrays (150, 2D, k_c); conv_biases: list of 4 (150,).
    Returns (s_out, q_out), each (B*NK*NQ, 300) f32 — same as the PyTorch module."""
    B, NK, L, D = s.shape
    NQ = q.shape[1]
    assert L == _L, "module hard-codes L=31 (MaxPool1d(31))"
    KD = _N_WIN * D

    # Zero-pad the time axis once (front = largest conv padding, back rounds the
    # padded length up to a multiple of 8 sublanes) and pre-cast to bf16.
    pad_cfg = ((0, 0), (0, 0), (_MAXPAD, _LP - _L - _MAXPAD), (0, 0))
    s_pad = jnp.pad(s, pad_cfg).astype(jnp.bfloat16)
    q_pad = jnp.pad(q, pad_cfg).astype(jnp.bfloat16)

    ws, wq, bias = _pack_weights(conv_weights, conv_biases, D)

    # Pick TILE_NK (divisor of NK, <=16 to bound trace-time unroll) so the
    # per-step footprint stays under budget (v7x physical VMEM is only 64 MiB).
    # TODO(synk): for very large N*Q also tile the query axis (adds a grid dim).
    def step_bytes(tile_nk):
        acts = 2 * (tile_nk + NQ) * _LP * D * 2              # double-buffered bf16 blocks
        wgt = 2 * 2 * KD * _N_COLS * 2                       # ws + wq, double-buffered
        contrib = (tile_nk + NQ) * _L * _N_COLS * 4          # f32 matmul results
        comb = NQ * _L * _N_COLS * 4                         # per-nk combine temp
        outs = 2 * 2 * tile_nk * NQ * _N_OUT * 4             # double-buffered outputs
        return acts + wgt + contrib + comb + outs

    tile_nk = 1
    for cand in range(min(NK, 16), 0, -1):
        if NK % cand == 0 and step_bytes(cand) <= vmem_budget_bytes:
            tile_nk = cand
            break
    n_tiles = NK // tile_nk

    flops = 2 * KD * _N_COLS * _L * B * (NK + n_tiles * NQ)
    bytes_accessed = int((s_pad.size + q_pad.size) * 2
                         + (ws.size + wq.size) * 2 + bias.size * 4
                         + 2 * B * NK * NQ * _N_OUT * 4)

    out_sds = jax.ShapeDtypeStruct((B, NK, NQ, _N_OUT), jnp.float32)

    s_out, q_out = pl.pallas_call(
        _interact_kernel,
        out_shape=(out_sds, out_sds),
        grid=(B, n_tiles),
        in_specs=[
            pl.BlockSpec((1, tile_nk, _LP, D), lambda b, i: (b, i, 0, 0)),  # s tile
            pl.BlockSpec((1, NQ, _LP, D), lambda b, i: (b, 0, 0, 0)),       # all queries of b
            pl.BlockSpec((KD, _N_COLS), lambda b, i: (0, 0)),               # ws (resident)
            pl.BlockSpec((KD, _N_COLS), lambda b, i: (0, 0)),               # wq (resident)
            pl.BlockSpec((1, _N_COLS), lambda b, i: (0, 0)),                # bias (resident)
        ],
        out_specs=(
            pl.BlockSpec((1, tile_nk, NQ, _N_OUT), lambda b, i: (b, i, 0, 0)),
            pl.BlockSpec((1, tile_nk, NQ, _N_OUT), lambda b, i: (b, i, 0, 0)),
        ),
        compiler_params=pltpu.CompilerParams(
            dimension_semantics=("parallel", "parallel")),
        cost_estimate=pl.CostEstimate(flops=flops, transcendentals=0,
                                      bytes_accessed=bytes_accessed),
    )(s_pad, q_pad, ws, wq, bias)

    return (s_out.reshape(B * NK * NQ, _N_OUT),
            q_out.reshape(B * NK * NQ, _N_OUT))


def _reference(s, q, conv_weights, conv_biases):
    """Pure-JAX (f32, lax.conv) re-implementation of the PyTorch forward."""
    B, NK, L, D = s.shape
    NQ = q.shape[1]
    se = jnp.broadcast_to(s[:, :, None], (B, NK, NQ, L, D))
    qe = jnp.broadcast_to(q[:, None], (B, NK, NQ, L, D))
    sq = jnp.concatenate([se, qe], axis=-1).reshape(-1, L, 2 * D)
    sq = jnp.transpose(sq, (0, 2, 1))                        # (M, 2D, L)
    x = []
    for c, (k, p) in enumerate(zip(_KSIZES, _PADS)):
        o = jax.lax.conv_general_dilated(
            sq, conv_weights[c], window_strides=(1,), padding=[(p, p)],
            dimension_numbers=("NCH", "OIH", "NCH"))
        x.append(o + conv_biases[c][None, :, None])
    s_cat = jnp.concatenate([x[0][:, :_C_HALF, :-1], x[1][:, :_C_HALF, :],
                             x[2][:, :_C_HALF, :-1], x[3][:, :_C_HALF, :]], axis=1)
    q_cat = jnp.concatenate([x[0][:, _C_HALF:, :-1], x[1][:, _C_HALF:, :],
                             x[2][:, _C_HALF:, :-1], x[3][:, _C_HALF:, :]], axis=1)
    s_out = jnp.max(jax.nn.relu(s_cat), axis=2)
    q_out = jnp.max(jax.nn.relu(q_cat), axis=2)
    return s_out, q_out


if __name__ == "__main__":
    d_model = 32
    B, N, K, Q, L = 2, 2, 1, 1, _L
    NK, NQ = N * K, N * Q

    key = jax.random.PRNGKey(0)
    keys = jax.random.split(key, 2 + 2 * len(_KSIZES))
    ks, kq, kw = keys[0], keys[1], keys[2:]

    s = jax.random.normal(ks, (B, NK, L, d_model), dtype=jnp.float32)
    q = jax.random.normal(kq, (B, NQ, L, d_model), dtype=jnp.float32)

    # Conv1d parameters (torch-like uniform(-1/sqrt(fan_in), 1/sqrt(fan_in)) init)
    conv_weights, conv_biases = [], []
    for c, k in enumerate(_KSIZES):
        fan_in = 2 * d_model * k
        bound = 1.0 / (fan_in ** 0.5)
        conv_weights.append(jax.random.uniform(
            kw[2 * c], (_C_OUT, 2 * d_model, k), jnp.float32, -bound, bound))
        conv_biases.append(jax.random.uniform(
            kw[2 * c + 1], (_C_OUT,), jnp.float32, -bound, bound))

    s_out, q_out = cnn_interact_layer(s, q, conv_weights, conv_biases)
    jax.block_until_ready((s_out, q_out))

    # Correctness check vs. pure-JAX f32 reference (kernel uses bf16 MXU operands,
    # f32 accumulation -> loose tolerance).
    s_ref, q_ref = _reference(s, q, conv_weights, conv_biases)
    assert s_out.shape == (B * NK * NQ, 300) and q_out.shape == (B * NK * NQ, 300)
    assert jnp.allclose(s_out, s_ref, atol=3e-2, rtol=3e-2), "s mismatch vs reference"
    assert jnp.allclose(q_out, q_ref, atol=3e-2, rtol=3e-2), "q mismatch vs reference"

    print("KERNEL_OK")
</pallas_src>

<mosaic_0001>
module attributes {stable_mosaic.version = 11 : i64} {
  func.func @_interact_kernel(%arg0: i32, %arg1: i32, %arg2: memref<1x2x40x32xbf16, #tpu.memory_space<vmem>>, %arg3: memref<1x2x40x32xbf16, #tpu.memory_space<vmem>>, %arg4: memref<160x600xbf16, #tpu.memory_space<vmem>>, %arg5: memref<160x600xbf16, #tpu.memory_space<vmem>>, %arg6: memref<1x600xf32, #tpu.memory_space<vmem>>, %arg7: memref<1x2x2x300xf32, #tpu.memory_space<vmem>>, %arg8: memref<1x2x2x300xf32, #tpu.memory_space<vmem>>) attributes {dimension_semantics = [#tpu.dimension_semantics<parallel>, #tpu.dimension_semantics<parallel>], iteration_bounds = array<i64: 2, 1>, scalar_prefetch = 0 : i64, scratch_operands = 0 : i64, tpu.core_type = #tpu.core_type<tc>, window_params = [{transform_indices = @transform_0, window_bounds = array<i64: 1, 2, 40, 32>}, {transform_indices = @transform_1, window_bounds = array<i64: 1, 2, 40, 32>}, {pipeline_mode = #tpu.pipeline_mode<synchronous>, transform_indices = @transform_2, window_bounds = array<i64: 160, 600>}, {pipeline_mode = #tpu.pipeline_mode<synchronous>, transform_indices = @transform_3, window_bounds = array<i64: 160, 600>}, {pipeline_mode = #tpu.pipeline_mode<synchronous>, transform_indices = @transform_4, window_bounds = array<i64: 1, 600>}, {transform_indices = @transform_5, window_bounds = array<i64: 1, 2, 2, 300>}, {transform_indices = @transform_6, window_bounds = array<i64: 1, 2, 2, 300>}]} {
    %c0 = arith.constant 0 : index
    %c0_0 = arith.constant 0 : index
    %0 = vector.load %arg4[%c0, %c0_0] : memref<160x600xbf16, #tpu.memory_space<vmem>>, vector<160x600xbf16>
    %c0_1 = arith.constant 0 : index
    %c0_2 = arith.constant 0 : index
    %1 = vector.load %arg5[%c0_1, %c0_2] : memref<160x600xbf16, #tpu.memory_space<vmem>>, vector<160x600xbf16>
    %c0_3 = arith.constant 0 : index
    %c0_4 = arith.constant 0 : index
    %2 = vector.load %arg6[%c0_3, %c0_4] : memref<1x600xf32, #tpu.memory_space<vmem>>, vector<1x600xf32>
    %c0_5 = arith.constant 0 : index
    %c0_6 = arith.constant 0 : index
    %c0_7 = arith.constant 0 : index
    %c0_8 = arith.constant 0 : index
    %3 = vector.load %arg2[%c0_5, %c0_6, %c0_7, %c0_8] : memref<1x2x40x32xbf16, #tpu.memory_space<vmem>>, vector<1x2x40x32xbf16>
    %4 = vector.shape_cast %3 : vector<1x2x40x32xbf16> to vector<2x40x32xbf16>
    %5 = vector.extract_strided_slice %4 {offsets = [0, 0, 0], sizes = [2, 31, 32], strides = [1, 1, 1]} : vector<2x40x32xbf16> to vector<2x31x32xbf16>
    %6 = vector.extract_strided_slice %4 {offsets = [0, 1, 0], sizes = [2, 31, 32], strides = [1, 1, 1]} : vector<2x40x32xbf16> to vector<2x31x32xbf16>
    %7 = vector.extract_strided_slice %4 {offsets = [0, 2, 0], sizes = [2, 31, 32], strides = [1, 1, 1]} : vector<2x40x32xbf16> to vector<2x31x32xbf16>
    %8 = vector.extract_strided_slice %4 {offsets = [0, 3, 0], sizes = [2, 31, 32], strides = [1, 1, 1]} : vector<2x40x32xbf16> to vector<2x31x32xbf16>
    %9 = vector.extract_strided_slice %4 {offsets = [0, 4, 0], sizes = [2, 31, 32], strides = [1, 1, 1]} : vector<2x40x32xbf16> to vector<2x31x32xbf16>
    %10 = tpu.concatenate %5, %6, %7, %8, %9 in 2 : vector<2x31x32xbf16>, vector<2x31x32xbf16>, vector<2x31x32xbf16>, vector<2x31x32xbf16>, vector<2x31x32xbf16> -> vector<2x31x160xbf16>
    %11 = vector.shape_cast %10 : vector<2x31x160xbf16> to vector<62x160xbf16>
    %cst = arith.constant dense<0.000000e+00> : vector<62x600xf32>
    %12 = tpu.matmul %11, %0, %cst {dimension_numbers = #tpu.dot_dimension_numbers<[1], [0], [0], [1], [0, 0, 1, 1], [], []>} : vector<62x160xbf16>, vector<160x600xbf16>, vector<62x600xf32> -> vector<62x600xf32>
    %13 = vector.shape_cast %12 : vector<62x600xf32> to vector<2x31x600xf32>
    %c0_9 = arith.constant 0 : index
    %c0_10 = arith.constant 0 : index
    %c0_11 = arith.constant 0 : index
    %c0_12 = arith.constant 0 : index
    %14 = vector.load %arg3[%c0_9, %c0_10, %c0_11, %c0_12] : memref<1x2x40x32xbf16, #tpu.memory_space<vmem>>, vector<1x2x40x32xbf16>
    %15 = vector.shape_cast %14 : vector<1x2x40x32xbf16> to vector<2x40x32xbf16>
    %16 = vector.extract_strided_slice %15 {offsets = [0, 0, 0], sizes = [2, 31, 32], strides = [1, 1, 1]} : vector<2x40x32xbf16> to vector<2x31x32xbf16>
    %17 = vector.extract_strided_slice %15 {offsets = [0, 1, 0], sizes = [2, 31, 32], strides = [1, 1, 1]} : vector<2x40x32xbf16> to vector<2x31x32xbf16>
    %18 = vector.extract_strided_slice %15 {offsets = [0, 2, 0], sizes = [2, 31, 32], strides = [1, 1, 1]} : vector<2x40x32xbf16> to vector<2x31x32xbf16>
    %19 = vector.extract_strided_slice %15 {offsets = [0, 3, 0], sizes = [2, 31, 32], strides = [1, 1, 1]} : vector<2x40x32xbf16> to vector<2x31x32xbf16>
    %20 = vector.extract_strided_slice %15 {offsets = [0, 4, 0], sizes = [2, 31, 32], strides = [1, 1, 1]} : vector<2x40x32xbf16> to vector<2x31x32xbf16>
    %21 = tpu.concatenate %16, %17, %18, %19, %20 in 2 : vector<2x31x32xbf16>, vector<2x31x32xbf16>, vector<2x31x32xbf16>, vector<2x31x32xbf16>, vector<2x31x32xbf16> -> vector<2x31x160xbf16>
    %22 = vector.shape_cast %21 : vector<2x31x160xbf16> to vector<62x160xbf16>
    %cst_13 = arith.constant dense<0.000000e+00> : vector<62x600xf32>
    %23 = tpu.matmul %22, %1, %cst_13 {dimension_numbers = #tpu.dot_dimension_numbers<[1], [0], [0], [1], [0, 0, 1, 1], [], []>} : vector<62x160xbf16>, vector<160x600xbf16>, vector<62x600xf32> -> vector<62x600xf32>
    %24 = vector.shape_cast %23 : vector<62x600xf32> to vector<2x31x600xf32>
    %25 = vector.extract_strided_slice %13 {offsets = [0, 0, 0], sizes = [1, 31, 600], strides = [1, 1, 1]} : vector<2x31x600xf32> to vector<1x31x600xf32>
    %26 = vector.shape_cast %25 : vector<1x31x600xf32> to vector<31x600xf32>
    %27 = vector.shape_cast %26 : vector<31x600xf32> to vector<1x31x600xf32>
    %28 = vector.broadcast %27 : vector<1x31x600xf32> to vector<2x31x600xf32>
    %29 = arith.addf %28, %24 : vector<2x31x600xf32>
    %cst_14 = arith.constant dense<0xFF800000> : vector<2x600xf32>
    %30 = vector.multi_reduction <maximumf>, %29, %cst_14 [1] : vector<2x31x600xf32> to vector<2x600xf32>
    %31 = vector.broadcast %2 : vector<1x600xf32> to vector<2x600xf32>
    %32 = arith.addf %30, %31 : vector<2x600xf32>
    %cst_15 = arith.constant 0.000000e+00 : f32
    %33 = vector.broadcast %cst_15 : f32 to vector<2x600xf32>
    %34 = arith.maximumf %32, %33 : vector<2x600xf32>
    %35 = vector.extract_strided_slice %34 {offsets = [0, 0], sizes = [2, 300], strides = [1, 1]} : vector<2x600xf32> to vector<2x300xf32>
    %c0_16 = arith.constant 0 : index
    %c0_17 = arith.constant 0 : index
    %c0_18 = arith.constant 0 : index
    %c0_19 = arith.constant 0 : index
    %36 = vector.load %arg7[%c0_16, %c0_17, %c0_18, %c0_19] : memref<1x2x2x300xf32, #tpu.memory_space<vmem>>, vector<1x1x2x300xf32>
    %37 = vector.shape_cast %36 : vector<1x1x2x300xf32> to vector<2x300xf32>
    %38 = vector.shape_cast %35 : vector<2x300xf32> to vector<1x1x2x300xf32>
    tpu.vector_store %arg7[%c0_16, %c0_17, %c0_18, %c0_19], %38 {strides = array<i32>} : memref<1x2x2x300xf32, #tpu.memory_space<vmem>>, vector<1x1x2x300xf32>,
    %39 = vector.extract_strided_slice %34 {offsets = [0, 300], sizes = [2, 300], strides = [1, 1]} : vector<2x600xf32> to vector<2x300xf32>
    %c0_20 = arith.constant 0 : index
    %c0_21 = arith.constant 0 : index
    %c0_22 = arith.constant 0 : index
    %c0_23 = arith.constant 0 : index
    %40 = vector.load %arg8[%c0_20, %c0_21, %c0_22, %c0_23] : memref<1x2x2x300xf32, #tpu.memory_space<vmem>>, vector<1x1x2x300xf32>
    %41 = vector.shape_cast %40 : vector<1x1x2x300xf32> to vector<2x300xf32>
    %42 = vector.shape_cast %39 : vector<2x300xf32> to vector<1x1x2x300xf32>
    tpu.vector_store %arg8[%c0_20, %c0_21, %c0_22, %c0_23], %42 {strides = array<i32>} : memref<1x2x2x300xf32, #tpu.memory_space<vmem>>, vector<1x1x2x300xf32>,
    %43 = vector.extract_strided_slice %13 {offsets = [1, 0, 0], sizes = [1, 31, 600], strides = [1, 1, 1]} : vector<2x31x600xf32> to vector<1x31x600xf32>
    %44 = vector.shape_cast %43 : vector<1x31x600xf32> to vector<31x600xf32>
    %45 = vector.shape_cast %44 : vector<31x600xf32> to vector<1x31x600xf32>
    %46 = vector.broadcast %45 : vector<1x31x600xf32> to vector<2x31x600xf32>
    %47 = arith.addf %46, %24 : vector<2x31x600xf32>
    %cst_24 = arith.constant dense<0xFF800000> : vector<2x600xf32>
    %48 = vector.multi_reduction <maximumf>, %47, %cst_24 [1] : vector<2x31x600xf32> to vector<2x600xf32>
    %49 = vector.broadcast %2 : vector<1x600xf32> to vector<2x600xf32>
    %50 = arith.addf %48, %49 : vector<2x600xf32>
    %cst_25 = arith.constant 0.000000e+00 : f32
    %51 = vector.broadcast %cst_25 : f32 to vector<2x600xf32>
    %52 = arith.maximumf %50, %51 : vector<2x600xf32>
    %53 = vector.extract_strided_slice %52 {offsets = [0, 0], sizes = [2, 300], strides = [1, 1]} : vector<2x600xf32> to vector<2x300xf32>
    %c0_26 = arith.constant 0 : index
    %c1 = arith.constant 1 : index
    %c0_27 = arith.constant 0 : index
    %c0_28 = arith.constant 0 : index
    %54 = vector.load %arg7[%c0_26, %c1, %c0_27, %c0_28] : memref<1x2x2x300xf32, #tpu.memory_space<vmem>>, vector<1x1x2x300xf32>
    %55 = vector.shape_cast %54 : vector<1x1x2x300xf32> to vector<2x300xf32>
    %56 = vector.shape_cast %53 : vector<2x300xf32> to vector<1x1x2x300xf32>
    tpu.vector_store %arg7[%c0_26, %c1, %c0_27, %c0_28], %56 {strides = array<i32>} : memref<1x2x2x300xf32, #tpu.memory_space<vmem>>, vector<1x1x2x300xf32>,
    %57 = vector.extract_strided_slice %52 {offsets = [0, 300], sizes = [2, 300], strides = [1, 1]} : vector<2x600xf32> to vector<2x300xf32>
    %c0_29 = arith.constant 0 : index
    %c1_30 = arith.constant 1 : index
    %c0_31 = arith.constant 0 : index
    %c0_32 = arith.constant 0 : index
    %58 = vector.load %arg8[%c0_29, %c1_30, %c0_31, %c0_32] : memref<1x2x2x300xf32, #tpu.memory_space<vmem>>, vector<1x1x2x300xf32>
    %59 = vector.shape_cast %58 : vector<1x1x2x300xf32> to vector<2x300xf32>
    %60 = vector.shape_cast %57 : vector<2x300xf32> to vector<1x1x2x300xf32>
    tpu.vector_store %arg8[%c0_29, %c1_30, %c0_31, %c0_32], %60 {strides = array<i32>} : memref<1x2x2x300xf32, #tpu.memory_space<vmem>>, vector<1x1x2x300xf32>,
    return
  }
  func.func @transform_0(%arg0: i32, %arg1: i32) -> (i32, i32, i32, i32) {
    %c0_i32 = arith.constant 0 : i32
    %c0_i32_0 = arith.constant 0 : i32
    %c0_i32_1 = arith.constant 0 : i32
    return %arg0, %arg1, %c0_i32, %c0_i32_0 : i32, i32, i32, i32
  }
  func.func @transform_1(%arg0: i32, %arg1: i32) -> (i32, i32, i32, i32) {
    %c0_i32 = arith.constant 0 : i32
    %c0_i32_0 = arith.constant 0 : i32
    %c0_i32_1 = arith.constant 0 : i32
    %c0_i32_2 = arith.constant 0 : i32
    return %arg0, %c0_i32, %c0_i32_0, %c0_i32_1 : i32, i32, i32, i32
  }
  func.func @transform_2(%arg0: i32, %arg1: i32) -> (i32, i32) {
    %c0_i32 = arith.constant 0 : i32
    %c0_i32_0 = arith.constant 0 : i32
    %c0_i32_1 = arith.constant 0 : i32
    return %c0_i32, %c0_i32_0 : i32, i32
  }
  func.func @transform_3(%arg0: i32, %arg1: i32) -> (i32, i32) {
    %c0_i32 = arith.constant 0 : i32
    %c0_i32_0 = arith.constant 0 : i32
    %c0_i32_1 = arith.constant 0 : i32
    return %c0_i32, %c0_i32_0 : i32, i32
  }
  func.func @transform_4(%arg0: i32, %arg1: i32) -> (i32, i32) {
    %c0_i32 = arith.constant 0 : i32
    %c0_i32_0 = arith.constant 0 : i32
    %c0_i32_1 = arith.constant 0 : i32
    return %c0_i32, %c0_i32_0 : i32, i32
  }
  func.func @transform_5(%arg0: i32, %arg1: i32) -> (i32, i32, i32, i32) {
    %c0_i32 = arith.constant 0 : i32
    %c0_i32_0 = arith.constant 0 : i32
    %c0_i32_1 = arith.constant 0 : i32
    return %arg0, %arg1, %c0_i32, %c0_i32_0 : i32, i32, i32, i32
  }
  func.func @transform_6(%arg0: i32, %arg1: i32) -> (i32, i32, i32, i32) {
    %c0_i32 = arith.constant 0 : i32
    %c0_i32_0 = arith.constant 0 : i32
    %c0_i32_1 = arith.constant 0 : i32
    return %arg0, %arg1, %c0_i32, %c0_i32_0 : i32, i32, i32, i32
  }
}

</mosaic_0001>

<llo_original>
// kernel: tpu_custom_call.1
$region0: #{tpu_custom_call.1}
  #allocation0 [shape = 'u32[]', space=smem, size = 0x4, offset = 0x4, fixed_abs, tag = 'smem constant byte address 0x4 - core index']
  #allocation1 [shape = 'u32[144,128]{1,0:T(1,128)}', space=vmem, size = 0x12000, scoped, tag = 'internal scratch']
  %s0 = inlined_call_operand.vmem [shape: bf16[2,2,40,32], index: 0, kind: input, shape index: {}]
  %s1 = inlined_call_operand.vmem [shape: bf16[2,2,40,32], index: 1, kind: input, shape index: {}]
  %s2 = inlined_call_operand.hbm [shape: bf16[160,600], index: 2, kind: input, shape index: {}]
  %s3 = inlined_call_operand.hbm [shape: bf16[160,600], index: 3, kind: input, shape index: {}]
  %s4 = inlined_call_operand.vmem [shape: f32[1,600], index: 4, kind: input, shape index: {}]
  %s5 = inlined_call_operand.hbm [shape: f32[2,2,2,300], index: 5, kind: output, shape index: {0}]
  %s6 = inlined_call_operand.hbm [shape: f32[2,2,2,300], index: 6, kind: output, shape index: {1}]
  %7 = xla_tuple %s5, %s6
  %s8 = sld [smem:[#allocation0]]
  $region69: #{tpu_custom_call.1} parent=0
    _
  %s10 = ssub.s32 1, %s8
  %s11 = scalar_select 0, %s10, %s8
  $region1: #{tpu_custom_call.1} parent=0
    #allocation2 [shape = 'u8[204800]{0}', space=vmem, size = 0x32000, scoped, tag = 'input window, operand 2, single buffered']
    #allocation3 [shape = 's32[2]{0}', space=sflag, size = 0x8, scoped, tag = 'scoped memory for tpu_custom_call.1']
    #allocation4 [shape = 's32[2]{0}', space=sflag, size = 0x8, scoped, tag = 'scoped memory for tpu_custom_call.1']
    #allocation5 [shape = 'u8[204800]{0}', space=vmem, size = 0x32000, scoped, tag = 'input window, operand 3, single buffered']
    #allocation6 [shape = 's32[1]{0}', space=sflag, size = 0x4, scoped, tag = 'scoped memory for tpu_custom_call.1']
    #allocation7 [shape = 'u8[12288]{0}', space=vmem, size = 0x3000, scoped, tag = 'output window, operand 0']
    #allocation8 [shape = 'u8[12288]{0}', space=vmem, size = 0x3000, scoped, tag = 'output window, operand 1']
    #allocation9 [shape = 's32[2]{0}', space=sflag, size = 0x8, scoped, tag = 'scoped memory for tpu_custom_call.1']
    %12 = vsyncpa [#allocation3], 0
    %13 = vsyncpa [#allocation6], 0
    %14 = vsyncpa [#allocation4], 0
    %s15 = scalar_lea.sflag [#allocation4], 1
    %16 = vsyncpa %s15, 0
    %17 = vsyncpa [#allocation9], 0
    %s18 = scalar_lea.sflag [#allocation9], 1
    %19 = vsyncpa %s18, 0
    loop: start=0, step=1, limit=4
    $region2: #{tpu_custom_call.1} parent=1 // loop_pre_header
      _
    $region3: #{tpu_custom_call.1} parent=1 // loop_header
      %s21 = sphi 0, %s25
      %p22 = scmp.ge.s32.totalorder %s21, 4
      %s28 = sphi 0, %s40
      %s29 = sphi 0, %s36
      %s30 = sphi 0, %s28
      %s31 = sphi 0, %s29
      %s32 = sphi 0, %s30
      %s33 = sphi 0, %s31
      %s45 = sphi 0, %s47
      %s48 = sphi 0, %s45
      %s49 = sphi 0, %s48
      %s65 = sphi 0, %s49
      %s71 = sphi 0, %s73
      %s74 = sphi 0, %s71
      %s75 = sphi 0, %s74
      %s91 = sphi 0, %s75
      %s95 = sphi 0, %s95
      %s97 = sphi 0, %s95
      %s98 = sphi 0, %s97
      %s112 = sphi 0, %s98
      %s116 = sphi 0, %s116
      %s118 = sphi 0, %s116
      %s119 = sphi 0, %s118
      %s133 = sphi 0, %s119
      %s137 = sphi 0, %s137
      %s139 = sphi 0, %s137
      %s140 = sphi 0, %s139
      %s154 = sphi 0, %s140
      %s162 = sphi 0, %s164
      %s165 = sphi 0, %s162
      %s166 = sphi 0, %s165
      %s182 = sphi 0, %s166
      %s190 = sphi 0, %s192
      %s193 = sphi 0, %s190
      %s194 = sphi 0, %s193
      %s210 = sphi 0, %s194
    $region4: #{tpu_custom_call.1} parent=1 // loop_header_branch
      %24 = sbr.rel (%p22) target = $region8
    $region5: #{tpu_custom_call.1} parent=1 // loop_body
      %s26 = ssub.s32 %s21, 1
      %s27 = ssub.s32 %s21, 2
      %s34 = sadd.s32 1, %s29
      %p35 = scmp.ge.s32.totalorder %s34, 1
      %s36 = scalar_select %p35, 0, %s34
      %s37 = sadd.s32 1, %s28
      %s38 = scalar_select %p35, %s37, %s28
      %p39 = scmp.ge.s32.totalorder %s38, 2
      %s40 = scalar_select %p39, 0, %s38
      %s41 = ssub.s32 %s28, %s40
      %s42 = ssub.s32 %s29, %s36
      %s43 = sor.u32 %s41, %s42
      %p44 = scmp.eq.s32.totalorder %s43, 0
      %s46 = sadd.s32 %s45, 1
      %s47 = scalar_select %p44, %s45, %s46
      %p50 = pneg %p44
      %p51 = scmp.eq.s32.totalorder %s21, 1
      %p52 = por %p50, %p51
      %p53 = scmp.ne.s32.totalorder %s45, %s48
      %p54 = scmp.eq.s32.totalorder %s21, 0
      %p55 = por %p53, %p54
      %p56 = scmp.ne.s32.totalorder %s45, %s48
      %p57 = scmp.eq.s32.totalorder %s26, 1
      %p58 = por %p56, %p57
      %p59 = scmp.ne.s32.totalorder %s48, %s49
      %p60 = scmp.eq.s32.totalorder %s26, 0
      %p61 = por %p59, %p60
      %p62 = scmp.ne.s32.totalorder %s48, %s49
      %p63 = scmp.eq.s32.totalorder %s27, 1
      %p64 = por %p62, %p63
      %p66 = scmp.ne.s32.totalorder %s49, %s65
      %p67 = scmp.eq.s32.totalorder %s27, 0
      %p68 = por %p66, %p67
      %s69 = ssub.s32 %s28, %s40
      %p70 = scmp.eq.s32.totalorder %s69, 0
      %s72 = sadd.s32 %s71, 1
      %s73 = scalar_select %p70, %s71, %s72
      %p76 = pneg %p70
      %p77 = scmp.eq.s32.totalorder %s21, 1
      %p78 = por %p76, %p77
      %p79 = scmp.ne.s32.totalorder %s71, %s74
      %p80 = scmp.eq.s32.totalorder %s21, 0
      %p81 = por %p79, %p80
      %p82 = scmp.ne.s32.totalorder %s71, %s74
      %p83 = scmp.eq.s32.totalorder %s26, 1
      %p84 = por %p82, %p83
      %p85 = scmp.ne.s32.totalorder %s74, %s75
      %p86 = scmp.eq.s32.totalorder %s26, 0
      %p87 = por %p85, %p86
      %p88 = scmp.ne.s32.totalorder %s74, %s75
      %p89 = scmp.eq.s32.totalorder %s27, 1
      %p90 = por %p88, %p89
      %p92 = scmp.ne.s32.totalorder %s75, %s91
      %p93 = scmp.eq.s32.totalorder %s27, 0
      %p94 = por %p92, %p93
      %s96 = sadd.s32 %s95, 1
      %p99 = scmp.eq.s32.totalorder %s21, 1
      %p100 = scmp.ne.s32.totalorder %s95, %s97
      %p101 = scmp.eq.s32.totalorder %s21, 0
      %p102 = por %p100, %p101
      %p103 = scmp.ne.s32.totalorder %s95, %s97
      %p104 = scmp.eq.s32.totalorder %s26, 1
      %p105 = por %p103, %p104
      %p106 = scmp.ne.s32.totalorder %s97, %s98
      %p107 = scmp.eq.s32.totalorder %s26, 0
      %p108 = por %p106, %p107
      %p109 = scmp.ne.s32.totalorder %s97, %s98
      %p110 = scmp.eq.s32.totalorder %s27, 1
      %p111 = por %p109, %p110
      %p113 = scmp.ne.s32.totalorder %s98, %s112
      %p114 = scmp.eq.s32.totalorder %s27, 0
      %p115 = por %p113, %p114
      %s117 = sadd.s32 %s116, 1
      %p120 = scmp.eq.s32.totalorder %s21, 1
      %p121 = scmp.ne.s32.totalorder %s116, %s118
      %p122 = scmp.eq.s32.totalorder %s21, 0
      %p123 = por %p121, %p122
      %p124 = scmp.ne.s32.totalorder %s116, %s118
      %p125 = scmp.eq.s32.totalorder %s26, 1
      %p126 = por %p124, %p125
      %p127 = scmp.ne.s32.totalorder %s118, %s119
      %p128 = scmp.eq.s32.totalorder %s26, 0
      %p129 = por %p127, %p128
      %p130 = scmp.ne.s32.totalorder %s118, %s119
      %p131 = scmp.eq.s32.totalorder %s27, 1
      %p132 = por %p130, %p131
      %p134 = scmp.ne.s32.totalorder %s119, %s133
      %p135 = scmp.eq.s32.totalorder %s27, 0
      %p136 = por %p134, %p135
      %s138 = sadd.s32 %s137, 1
      %p141 = scmp.eq.s32.totalorder %s21, 1
      %p142 = scmp.ne.s32.totalorder %s137, %s139
      %p143 = scmp.eq.s32.totalorder %s21, 0
      %p144 = por %p142, %p143
      %p145 = scmp.ne.s32.totalorder %s137, %s139
      %p146 = scmp.eq.s32.totalorder %s26, 1
      %p147 = por %p145, %p146
      %p148 = scmp.ne.s32.totalorder %s139, %s140
      %p149 = scmp.eq.s32.totalorder %s26, 0
      %p150 = por %p148, %p149
      %p151 = scmp.ne.s32.totalorder %s139, %s140
      %p152 = scmp.eq.s32.totalorder %s27, 1
      %p153 = por %p151, %p152
      %p155 = scmp.ne.s32.totalorder %s140, %s154
      %p156 = scmp.eq.s32.totalorder %s27, 0
      %p157 = por %p155, %p156
      %s158 = ssub.s32 %s28, %s40
      %s159 = ssub.s32 %s29, %s36
      %s160 = sor.u32 %s158, %s159
      %p161 = scmp.eq.s32.totalorder %s160, 0
      %s163 = sadd.s32 %s162, 1
      %s164 = scalar_select %p161, %s162, %s163
      %p167 = pneg %p161
      %p168 = scmp.eq.s32.totalorder %s21, 1
      %p169 = por %p167, %p168
      %p170 = scmp.ne.s32.totalorder %s162, %s165
      %p171 = scmp.eq.s32.totalorder %s21, 0
      %p172 = por %p170, %p171
      %p173 = scmp.ne.s32.totalorder %s162, %s165
      %p174 = scmp.eq.s32.totalorder %s26, 1
      %p175 = por %p173, %p174
      %p176 = scmp.ne.s32.totalorder %s165, %s166
      %p177 = scmp.eq.s32.totalorder %s26, 0
      %p178 = por %p176, %p177
      %p179 = scmp.ne.s32.totalorder %s165, %s166
      %p180 = scmp.eq.s32.totalorder %s27, 1
      %p181 = por %p179, %p180
      %p183 = scmp.ne.s32.totalorder %s166, %s182
      %p184 = scmp.eq.s32.totalorder %s27, 0
      %p185 = por %p183, %p184
      %s186 = ssub.s32 %s28, %s40
      %s187 = ssub.s32 %s29, %s36
      %s188 = sor.u32 %s186, %s187
      %p189 = scmp.eq.s32.totalorder %s188, 0
      %s191 = sadd.s32 %s190, 1
      %s192 = scalar_select %p189, %s190, %s191
      %p195 = pneg %p189
      %p196 = scmp.eq.s32.totalorder %s21, 1
      %p197 = por %p195, %p196
      %p198 = scmp.ne.s32.totalorder %s190, %s193
      %p199 = scmp.eq.s32.totalorder %s21, 0
      %p200 = por %p198, %p199
      %p201 = scmp.ne.s32.totalorder %s190, %s193
      %p202 = scmp.eq.s32.totalorder %s26, 1
      %p203 = por %p201, %p202
      %p204 = scmp.ne.s32.totalorder %s193, %s194
      %p205 = scmp.eq.s32.totalorder %s26, 0
      %p206 = por %p204, %p205
      %p207 = scmp.ne.s32.totalorder %s193, %s194
      %p208 = scmp.eq.s32.totalorder %s27, 1
      %p209 = por %p207, %p208
      %p211 = scmp.ne.s32.totalorder %s194, %s210
      %p212 = scmp.eq.s32.totalorder %s27, 0
      %p213 = por %p211, %p212
      %p214 = scmp.le.s32.totalorder 1, %s21
      %p215 = scmp.lt.s32.totalorder %s21, 3
      %p216 = pnand %p214, %p215
      %p217 = pneg %p216
      // Predicated region
      $region9: #{tpu_custom_call.1} parent=5 // pred_check
        _
      $region10: #{tpu_custom_call.1} parent=5 // pred_check_branch
        %219 = sbr.rel (%p216) target = $region12
      $region11: #{tpu_custom_call.1} parent=5 // pred_region
        %s220 = ssub.s32 %s21, 1
        // Predicated region
        $region13: #{tpu_custom_call.1} parent=11 // pred_check
          %p221 = pneg %p108
        $region14: #{tpu_custom_call.1} parent=11 // pred_check_branch
          %223 = sbr.rel (%p221) target = $region16
        $region15: #{tpu_custom_call.1} parent=11 // pred_region
          %s225 = ssub.s32 6400, 6400
          %226 = vsyncadd [#allocation3], %s225
          %s227 = sshll.u32 [#allocation2], 4
          %s228 = int_to_ptr.vmem [resolvable:$true] %s227
          %233 = dma.hbm_to_vmem [thread:$0]  %s2, 6400, %s228, [#allocation3], 320, 320, 20
        $region16: #{tpu_custom_call.1} parent=11 // pred_fallthru
          _
        // Predicated region
        $region17: #{tpu_custom_call.1} parent=11 // pred_check
          %p234 = pneg %p129
        $region18: #{tpu_custom_call.1} parent=11 // pred_check_branch
          %236 = sbr.rel (%p234) target = $region20
        $region19: #{tpu_custom_call.1} parent=11 // pred_region
          %s238 = ssub.s32 6400, 6400
          %239 = vsyncadd [#allocation6], %s238
          %s240 = sshll.u32 [#allocation5], 4
          %s241 = int_to_ptr.vmem [resolvable:$true] %s240
          %246 = dma.hbm_to_vmem [thread:$0]  %s3, 6400, %s241, [#allocation6], 320, 320, 20
        $region20: #{tpu_custom_call.1} parent=11 // pred_fallthru
          _
        // Predicated region
        $region21: #{tpu_custom_call.1} parent=11 // pred_check
          %p247 = pneg %p150
        $region22: #{tpu_custom_call.1} parent=11 // pred_check_branch
          %249 = sbr.rel (%p247) target = $region24
        $region23: #{tpu_custom_call.1} parent=11 // pred_region
          _
        $region24: #{tpu_custom_call.1} parent=11 // pred_fallthru
          _
      $region12: #{tpu_custom_call.1} parent=5 // pred_fallthru
        _
      %p250 = scmp.lt.s32.totalorder %s21, 2
      // Predicated region
      $region25: #{tpu_custom_call.1} parent=5 // pred_check
        %p251 = pneg %p250
      $region26: #{tpu_custom_call.1} parent=5 // pred_check_branch
        %253 = sbr.rel (%p251) target = $region28
      $region27: #{tpu_custom_call.1} parent=5 // pred_region
        // Predicated region
        $region29: #{tpu_custom_call.1} parent=27 // pred_check
          %p254 = pneg %p55
        $region30: #{tpu_custom_call.1} parent=27 // pred_check_branch
          %256 = sbr.rel (%p254) target = $region32
        $region31: #{tpu_custom_call.1} parent=27 // pred_region
          %s257 = smul.u32 2, %s29
          %p258 = scmp.lt.s32.totalorder %s28, 1
          %s259 = scalar_select %p258, %s28, 1
          %p260 = scmp.lt.s32.totalorder %s257, 1
          %s261 = scalar_select %p260, %s257, 1
          %s262 = smul.addr %s261, 5
          %s263 = smul.addr %s259, 10
          %s264 = sadd.s32 %s262, %s263
          %s265 = smul.addr %s264, 4
          %s266 = scalar_lea.vmem %s0, %s265
          %s267 = smul.u32 2, %s29
        $region32: #{tpu_custom_call.1} parent=27 // pred_fallthru
          _
        // Predicated region
        $region33: #{tpu_custom_call.1} parent=27 // pred_check
          %p268 = pneg %p81
        $region34: #{tpu_custom_call.1} parent=27 // pred_check_branch
          %270 = sbr.rel (%p268) target = $region36
        $region35: #{tpu_custom_call.1} parent=27 // pred_region
          %p271 = scmp.lt.s32.totalorder %s28, 1
          %s272 = scalar_select %p271, %s28, 1
          %s273 = smul.addr %s272, 10
          %s274 = smul.addr %s273, 4
          %s275 = scalar_lea.vmem %s1, %s274
        $region36: #{tpu_custom_call.1} parent=27 // pred_fallthru
          _
      $region28: #{tpu_custom_call.1} parent=5 // pred_fallthru
        _
      %p276 = scmp.le.s32.totalorder 1, %s21
      %p277 = scmp.lt.s32.totalorder %s21, 3
      %p278 = pnand %p276, %p277
      %p279 = pneg %p278
      // Predicated region
      $region37: #{tpu_custom_call.1} parent=5 // pred_check
        _
      $region38: #{tpu_custom_call.1} parent=5 // pred_check_branch
        %281 = sbr.rel (%p278) target = $region40
      $region39: #{tpu_custom_call.1} parent=5 // pred_region
        %s282 = ssub.s32 %s21, 1
        // Predicated region
        $region41: #{tpu_custom_call.1} parent=39 // pred_check
          %p283 = pneg %p108
        $region42: #{tpu_custom_call.1} parent=39 // pred_check_branch
          %285 = sbr.rel (%p283) target = $region44
        $region43: #{tpu_custom_call.1} parent=39 // pred_region
          %286 = dma.done [#allocation3], 6400
        $region44: #{tpu_custom_call.1} parent=39 // pred_fallthru
          _
        // Predicated region
        $region45: #{tpu_custom_call.1} parent=39 // pred_check
          %p287 = pneg %p129
        $region46: #{tpu_custom_call.1} parent=39 // pred_check_branch
          %289 = sbr.rel (%p287) target = $region48
        $region47: #{tpu_custom_call.1} parent=39 // pred_region
          %290 = dma.done [#allocation6], 6400
        $region48: #{tpu_custom_call.1} parent=39 // pred_fallthru
          _
        %s291 = smul.u32 2, %s31
        %p292 = scmp.lt.s32.totalorder %s30, 1
        %s293 = scalar_select %p292, %s30, 1
        %p294 = scmp.lt.s32.totalorder %s291, 1
        %s295 = scalar_select %p294, %s291, 1
        %s296 = smul.addr %s295, 5
        %s297 = smul.addr %s293, 10
        %s298 = sadd.s32 %s296, %s297
        %s299 = smul.addr %s298, 4
        %s300 = scalar_lea.vmem %s0, %s299
        %p301 = pneg %p61
        %p302 = pneg %p58
        %p303 = scmp.lt.s32.totalorder %s30, 1
        %s304 = scalar_select %p303, %s30, 1
        %s305 = smul.addr %s304, 10
        %s306 = smul.addr %s305, 4
        %s307 = scalar_lea.vmem %s1, %s306
        %p308 = pneg %p87
        %p309 = pneg %p84
        %p310 = pneg %p108
        %p311 = pneg %p105
        %p312 = pneg %p129
        %p313 = pneg %p126
        %p314 = pneg %p150
        %p315 = pneg %p147
        %p316 = pneg %p178
        %p317 = pneg %p175
        %s318 = sand.u32 %s165, 1
        %s319 = scalar_lea.sflag [#allocation4], %s318
        %s320 = sand.u32 %s165, 1
        %s321 = smul.addr %s320, 12
        %s322 = scalar_lea.vmem [#allocation7], %s321
        %p323 = pneg %p206
        %p324 = pneg %p203
        %s325 = sand.u32 %s193, 1
        %s326 = scalar_lea.sflag [#allocation9], %s325
        %s327 = sand.u32 %s193, 1
        %s328 = smul.addr %s327, 12
        %s329 = scalar_lea.vmem [#allocation8], %s328
        %s330 = smul.u32 2, %s31
        %p331 = scmp.lt.s32.totalorder %s30, 1
        %s332 = scalar_select %p331, %s30, 1
        %p333 = scmp.lt.s32.totalorder %s330, 1
        %s334 = scalar_select %p333, %s330, 1
        %s335 = smul.addr %s334, 5
        %s336 = smul.addr %s332, 10
        %s337 = sadd.s32 %s335, %s336
        %s338 = smul.addr %s337, 4
        %s339 = scalar_lea.vmem %s0, %s338
        %s340 = smul.u32 2, %s31
        %p341 = scmp.lt.s32.totalorder %s30, 1
        %s342 = scalar_select %p341, %s30, 1
        %s343 = smul.addr %s342, 10
        %s344 = smul.addr %s343, 4
        %s345 = scalar_lea.vmem %s1, %s344
        %s346 = smul.u32 2, %s31
        %s347 = smul.u32 2, %s31
        %v349 = vld [vmem:[#allocation2] sm:$0xff]
        %v350 = vld [vmem:[#allocation2 + $0x8] sm:$0xff]
        %v351 = vld [vmem:[#allocation2 + $0x10] sm:$0xf]
        %v352 = vld [vmem:[#allocation2 + $0x14] sm:$0xff]
        %v353 = vld [vmem:[#allocation2 + $0x1c] sm:$0xff]
        %v354 = vld [vmem:[#allocation2 + $0x24] sm:$0xf]
        %v355 = vld [vmem:[#allocation2 + $0x28] sm:$0xff]
        %v356 = vld [vmem:[#allocation2 + $0x30] sm:$0xff]
        %v357 = vld [vmem:[#allocation2 + $0x38] sm:$0xf]
        %v358 = vld [vmem:[#allocation2 + $0x3c] sm:$0xff]
        %v359 = vld [vmem:[#allocation2 + $0x44] sm:$0xff]
        %v360 = vld [vmem:[#allocation2 + $0x4c] sm:$0xf]
        %v361 = vld [vmem:[#allocation2 + $0x50] sm:$0xff]
        %v362 = vld [vmem:[#allocation2 + $0x58] sm:$0xff]
        %v363 = vld [vmem:[#allocation2 + $0x60] sm:$0xf]
        %v364 = vld [vmem:[#allocation2 + $0x64] sm:$0xff]
        %v365 = vld [vmem:[#allocation2 + $0x6c] sm:$0xff]
        %v366 = vld [vmem:[#allocation2 + $0x74] sm:$0xf]
        %v367 = vld [vmem:[#allocation2 + $0x78] sm:$0xff]
        %v368 = vld [vmem:[#allocation2 + $0x80] sm:$0xff]
        %v369 = vld [vmem:[#allocation2 + $0x88] sm:$0xf]
        %v370 = vld [vmem:[#allocation2 + $0x8c] sm:$0xff]
        %v371 = vld [vmem:[#allocation2 + $0x94] sm:$0xff]
        %v372 = vld [vmem:[#allocation2 + $0x9c] sm:$0xf]
        %v373 = vld [vmem:[#allocation2 + $0xa0] sm:$0xff]
        %v374 = vld [vmem:[#allocation2 + $0xa8] sm:$0xff]
        %v375 = vld [vmem:[#allocation2 + $0xb0] sm:$0xf]
        %v376 = vld [vmem:[#allocation2 + $0xb4] sm:$0xff]
        %v377 = vld [vmem:[#allocation2 + $0xbc] sm:$0xff]
        %v378 = vld [vmem:[#allocation2 + $0xc4] sm:$0xf]
        %v379 = vld [vmem:[#allocation2 + $0xc8] sm:$0xff]
        %v380 = vld [vmem:[#allocation2 + $0xd0] sm:$0xff]
        %v381 = vld [vmem:[#allocation2 + $0xd8] sm:$0xf]
        %v382 = vld [vmem:[#allocation2 + $0xdc] sm:$0xff]
        %v383 = vld [vmem:[#allocation2 + $0xe4] sm:$0xff]
        %v384 = vld [vmem:[#allocation2 + $0xec] sm:$0xf]
        %v385 = vld [vmem:[#allocation2 + $0xf0] sm:$0xff]
        %v386 = vld [vmem:[#allocation2 + $0xf8] sm:$0xff]
        %v387 = vld [vmem:[#allocation2 + $0x100] sm:$0xf]
        %v388 = vld [vmem:[#allocation2 + $0x104] sm:$0xff]
        %v389 = vld [vmem:[#allocation2 + $0x10c] sm:$0xff]
        %v390 = vld [vmem:[#allocation2 + $0x114] sm:$0xf]
        %v391 = vld [vmem:[#allocation2 + $0x118] sm:$0xff]
        %v392 = vld [vmem:[#allocation2 + $0x120] sm:$0xff]
        %v393 = vld [vmem:[#allocation2 + $0x128] sm:$0xf]
        %v394 = vld [vmem:[#allocation2 + $0x12c] sm:$0xff]
        %v395 = vld [vmem:[#allocation2 + $0x134] sm:$0xff]
        %v396 = vld [vmem:[#allocation2 + $0x13c] sm:$0xf]
        %v397 = vld [vmem:[#allocation2 + $0x140] sm:$0xff]
        %v398 = vld [vmem:[#allocation2 + $0x148] sm:$0xff]
        %v399 = vld [vmem:[#allocation2 + $0x150] sm:$0xf]
        %v400 = vld [vmem:[#allocation2 + $0x154] sm:$0xff]
        %v401 = vld [vmem:[#allocation2 + $0x15c] sm:$0xff]
        %v402 = vld [vmem:[#allocation2 + $0x164] sm:$0xf]
        %v403 = vld [vmem:[#allocation2 + $0x168] sm:$0xff]
        %v404 = vld [vmem:[#allocation2 + $0x170] sm:$0xff]
        %v405 = vld [vmem:[#allocation2 + $0x178] sm:$0xf]
        %v406 = vld [vmem:[#allocation2 + $0x17c] sm:$0xff]
        %v407 = vld [vmem:[#allocation2 + $0x184] sm:$0xff]
        %v408 = vld [vmem:[#allocation2 + $0x18c] sm:$0xf]
        %v409 = vld [vmem:[#allocation5] sm:$0xff]
        %v410 = vld [vmem:[#allocation5 + $0x8] sm:$0xff]
        %v411 = vld [vmem:[#allocation5 + $0x10] sm:$0xf]
        %v412 = vld [vmem:[#allocation5 + $0x14] sm:$0xff]
        %v413 = vld [vmem:[#allocation5 + $0x1c] sm:$0xff]
        %v414 = vld [vmem:[#allocation5 + $0x24] sm:$0xf]
        %v415 = vld [vmem:[#allocation5 + $0x28] sm:$0xff]
        %v416 = vld [vmem:[#allocation5 + $0x30] sm:$0xff]
        %v417 = vld [vmem:[#allocation5 + $0x38] sm:$0xf]
        %v418 = vld [vmem:[#allocation5 + $0x3c] sm:$0xff]
        %v419 = vld [vmem:[#allocation5 + $0x44] sm:$0xff]
        %v420 = vld [vmem:[#allocation5 + $0x4c] sm:$0xf]
        %v421 = vld [vmem:[#allocation5 + $0x50] sm:$0xff]
        %v422 = vld [vmem:[#allocation5 + $0x58] sm:$0xff]
        %v423 = vld [vmem:[#allocation5 + $0x60] sm:$0xf]
        %v424 = vld [vmem:[#allocation5 + $0x64] sm:$0xff]
        %v425 = vld [vmem:[#allocation5 + $0x6c] sm:$0xff]
        %v426 = vld [vmem:[#allocation5 + $0x74] sm:$0xf]
        %v427 = vld [vmem:[#allocation5 + $0x78] sm:$0xff]
        %v428 = vld [vmem:[#allocation5 + $0x80] sm:$0xff]
        %v429 = vld [vmem:[#allocation5 + $0x88] sm:$0xf]
        %v430 = vld [vmem:[#allocation5 + $0x8c] sm:$0xff]
        %v431 = vld [vmem:[#allocation5 + $0x94] sm:$0xff]
        %v432 = vld [vmem:[#allocation5 + $0x9c] sm:$0xf]
        %v433 = vld [vmem:[#allocation5 + $0xa0] sm:$0xff]
        %v434 = vld [vmem:[#allocation5 + $0xa8] sm:$0xff]
        %v435 = vld [vmem:[#allocation5 + $0xb0] sm:$0xf]
        %v436 = vld [vmem:[#allocation5 + $0xb4] sm:$0xff]
        %v437 = vld [vmem:[#allocation5 + $0xbc] sm:$0xff]
        %v438 = vld [vmem:[#allocation5 + $0xc4] sm:$0xf]
        %v439 = vld [vmem:[#allocation5 + $0xc8] sm:$0xff]
        %v440 = vld [vmem:[#allocation5 + $0xd0] sm:$0xff]
        %v441 = vld [vmem:[#allocation5 + $0xd8] sm:$0xf]
        %v442 = vld [vmem:[#allocation5 + $0xdc] sm:$0xff]
        %v443 = vld [vmem:[#allocation5 + $0xe4] sm:$0xff]
        %v444 = vld [vmem:[#allocation5 + $0xec] sm:$0xf]
        %v445 = vld [vmem:[#allocation5 + $0xf0] sm:$0xff]
        %v446 = vld [vmem:[#allocation5 + $0xf8] sm:$0xff]
        %v447 = vld [vmem:[#allocation5 + $0x100] sm:$0xf]
        %v448 = vld [vmem:[#allocation5 + $0x104] sm:$0xff]
        %v449 = vld [vmem:[#allocation5 + $0x10c] sm:$0xff]
        %v450 = vld [vmem:[#allocation5 + $0x114] sm:$0xf]
        %v451 = vld [vmem:[#allocation5 + $0x118] sm:$0xff]
        %v452 = vld [vmem:[#allocation5 + $0x120] sm:$0xff]
        %v453 = vld [vmem:[#allocation5 + $0x128] sm:$0xf]
        %v454 = vld [vmem:[#allocation5 + $0x12c] sm:$0xff]
        %v455 = vld [vmem:[#allocation5 + $0x134] sm:$0xff]
        %v456 = vld [vmem:[#allocation5 + $0x13c] sm:$0xf]
        %v457 = vld [vmem:[#allocation5 + $0x140] sm:$0xff]
        %v458 = vld [vmem:[#allocation5 + $0x148] sm:$0xff]
        %v459 = vld [vmem:[#allocation5 + $0x150] sm:$0xf]
        %v460 = vld [vmem:[#allocation5 + $0x154] sm:$0xff]
        %v461 = vld [vmem:[#allocation5 + $0x15c] sm:$0xff]
        %v462 = vld [vmem:[#allocation5 + $0x164] sm:$0xf]
        %v463 = vld [vmem:[#allocation5 + $0x168] sm:$0xff]
        %v464 = vld [vmem:[#allocation5 + $0x170] sm:$0xff]
        %v465 = vld [vmem:[#allocation5 + $0x178] sm:$0xf]
        %v466 = vld [vmem:[#allocation5 + $0x17c] sm:$0xff]
        %v467 = vld [vmem:[#allocation5 + $0x184] sm:$0xff]
        %v468 = vld [vmem:[#allocation5 + $0x18c] sm:$0xf]
        %v469 = vld [vmem:[%s4] sm:$0x1f]
        %v470 = vld [vmem:[%s339] sm:$0xf]
        %v471 = vld [vmem:[%s339 + $0x4] sm:$0xf]
        %v472 = vld [vmem:[%s339 + $0x8] sm:$0xf]
        %v473 = vld [vmem:[%s339 + $0xc] sm:$0xf]
        %v474 = vld [vmem:[%s339 + $0x10] sm:$0xf]
        %v475 = vld [vmem:[%s339 + $0x14] sm:$0xf]
        %v476 = vld [vmem:[%s339 + $0x18] sm:$0xf]
        %v477 = vld [vmem:[%s339 + $0x1c] sm:$0xf]
        %v478 = vld [vmem:[%s339 + $0x20] sm:$0xf]
        %v479 = vld [vmem:[%s339 + $0x24] sm:$0xf]
        %v488 = vunpack.c.l.b16 %v470
        %v489 = vunpack.c.l.b16 %v471
        %v490 = vunpack.c.l.b16 %v472
        %v491 = vunpack.c.l.b16 %v473
        %v492 = vunpack.c.l.b16 %v475
        %v493 = vunpack.c.l.b16 %v476
        %v494 = vunpack.c.l.b16 %v477
        %v495 = vunpack.c.l.b16 %v478
        %v496 = vpack.c.b16 %v489, %v488
        %v497 = vpack.c.b16 %v491, %v490
        %v498 = vpack.c.b16 %v493, %v492
        %v499 = vpack.c.b16 %v495, %v494
        %vm500 = vsmask.f32 7424
        %v502 = vshrl.u32 %v496, 16
        %v504 = vshll.u32 %v496, 16
        %v506 = vrot.slane %v504, 1
        %v507 = vor.u32 %v502, %v506
        %v509 = vshll.u32 %v497, 16
        %v511 = vrot.slane %v509, 1
        %v512 = vsel %vm500, %v507, %v511
        %v513 = vshrl.u32 %v497, 16
        %v515 = vor.u32 %v513, %v511
        %v517 = vshrl.u32 %v498, 16
        %v519 = vshll.u32 %v498, 16
        %v521 = vrot.slane %v519, 1
        %v522 = vor.u32 %v517, %v521
        %v524 = vshll.u32 %v499, 16
        %v526 = vrot.slane %v524, 1
        %v527 = vsel %vm500, %v522, %v526
        %v528 = vshrl.u32 %v499, 16
        %v530 = vor.u32 %v528, %v526
        %531 = vrot.lane.b32.xlu0 %v512, 32
        %v532 = vpop.permute.xlu0 %531
        %533 = vrot.lane.b32.xlu0 %v515, 32
        %v534 = vpop.permute.xlu0 %533
        %535 = vrot.lane.b32.xlu0 %v527, 32
        %v536 = vpop.permute.xlu0 %535
        %537 = vrot.lane.b32.xlu0 %v530, 32
        %v538 = vpop.permute.xlu0 %537
        %v541 = vunpack.c.l.b16 %v474
        %v542 = vunpack.c.l.b16 %v479
        %v543 = vpack.c.b16 %v541, %v541
        %v544 = vpack.c.b16 %v542, %v542
        %vm545 = vcmask 1046528
        %v546 = vrot.slane %v496, 1
        %v547 = vrot.slane %v497, 1
        %v548 = vsel %vm545, %v546, %v547
        %v549 = vrot.slane %v543, 1
        %v550 = vsel %vm545, %v547, %v549
        %v551 = vrot.slane %v498, 1
        %v552 = vrot.slane %v499, 1
        %v553 = vsel %vm545, %v551, %v552
        %v554 = vrot.slane %v544, 1
        %v555 = vsel %vm545, %v552, %v554
        %556 = vrot.lane.b32.xlu0 %v548, 64
        %v557 = vpop.permute.xlu0 %556
        %558 = vrot.lane.b32.xlu0 %v550, 64
        %v559 = vpop.permute.xlu0 %558
        %560 = vrot.lane.b32.xlu0 %v553, 64
        %v561 = vpop.permute.xlu0 %560
        %562 = vrot.lane.b32.xlu0 %v555, 64
        %v563 = vpop.permute.xlu0 %562
        %vm564 = vsmask.f32 6400
        %v565 = vrot.slane %v502, 1
        %v566 = vrot.slane %v504, 2
        %v567 = vor.u32 %v565, %v566
        %v568 = vrot.slane %v513, 1
        %v569 = vrot.slane %v509, 2
        %v570 = vor.u32 %v568, %v569
        %v571 = vsel %vm564, %v567, %v570
        %v573 = vshrl.u32 %v543, 16
        %v575 = vrot.slane %v573, 1
        %v576 = vshll.u32 %v543, 16
        %v578 = vrot.slane %v576, 2
        %v579 = vor.u32 %v575, %v578
        %v580 = vsel %vm564, %v570, %v579
        %v581 = vrot.slane %v517, 1
        %v582 = vrot.slane %v519, 2
        %v583 = vor.u32 %v581, %v582
        %v584 = vrot.slane %v528, 1
        %v585 = vrot.slane %v524, 2
        %v586 = vor.u32 %v584, %v585
        %v587 = vsel %vm564, %v583, %v586
        %v589 = vshrl.u32 %v544, 16
        %v591 = vrot.slane %v589, 1
        %v592 = vshll.u32 %v544, 16
        %v594 = vrot.slane %v592, 2
        %v595 = vor.u32 %v591, %v594
        %v596 = vsel %vm564, %v586, %v595
        %597 = vrot.lane.b32.xlu0 %v571, 96
        %v598 = vpop.permute.xlu0 %597
        %599 = vrot.lane.b32.xlu0 %v580, 96
        %v600 = vpop.permute.xlu0 %599
        %601 = vrot.lane.b32.xlu0 %v587, 96
        %v602 = vpop.permute.xlu0 %601
        %603 = vrot.lane.b32.xlu0 %v596, 96
        %v604 = vpop.permute.xlu0 %603
        %vm605 = vcmask 1045504
        %v606 = vrot.slane %v496, 2
        %v607 = vrot.slane %v497, 2
        %v608 = vsel %vm605, %v606, %v607
        %v609 = vrot.slane %v543, 2
        %v610 = vsel %vm605, %v607, %v609
        %v611 = vrot.slane %v498, 2
        %v612 = vrot.slane %v499, 2
        %v613 = vsel %vm605, %v611, %v612
        %v614 = vrot.slane %v544, 2
        %v615 = vsel %vm605, %v612, %v614
        %vm616 = vcmask 261120
        %v618 = vsel %vm616, %v496, %v532
        %v620 = vsel %vm616, %v497, %v534
        %v622 = vsel %vm616, %v498, %v536
        %v624 = vsel %vm616, %v499, %v538
        %vm625 = vcmask 523264
        %v627 = vsel %vm625, %v618, %v557
        %v629 = vsel %vm625, %v620, %v559
        %v631 = vsel %vm625, %v622, %v561
        %v633 = vsel %vm625, %v624, %v563
        %vm634 = vcmask 785408
        %v636 = vsel %vm634, %v627, %v598
        %v638 = vsel %vm634, %v629, %v600
        %v640 = vsel %vm634, %v631, %v602
        %v642 = vsel %vm634, %v633, %v604
        %v647 = vcombine.low %v636, %v608
        %v648 = vcombine.high %v636, %v608
        %v650 = vunpack.c.l.s4 1966171168
        %v651 = vunpack.c.0.s8 %v650
        %v652 = vlaneseq
        %v653 = vshrl.u32 %v652, 7
        %v654 = vsub.s32 %v651, %v653
        %v655 = vrot.slane %v647, %v654
        %v657 = vunpack.c.l.s4 1966171168
        %v658 = vunpack.c.0.s8 %v657
        %v659 = vlaneseq
        %v660 = vshrl.u32 %v659, 7
        %v661 = vsub.s32 %v658, %v660
        %v662 = vrot.slane %v648, %v661
        %v663 = vcombine.high %v655, %v655
        %v664 = vcombine.high %v662, %v662
        %v666 = vunpack.c.l.s4 1966171168
        %v667 = vunpack.c.0.s8 %v666
        %v668 = vlaneseq
        %v669 = vshrl.u32 %v668, 7
        %v670 = vsub.s32 %v667, %v669
        %v671 = vrot.slane %v655, %v670
        %v673 = vunpack.c.l.s4 1966171168
        %v674 = vunpack.c.0.s8 %v673
        %v675 = vlaneseq
        %v676 = vshrl.u32 %v675, 7
        %v677 = vsub.s32 %v674, %v676
        %v678 = vrot.slane %v662, %v677
        %v680 = vunpack.c.l.s4 1966171168
        %v681 = vunpack.c.0.s8 %v680
        %v682 = vlaneseq
        %v683 = vshrl.u32 %v682, 7
        %v684 = vsub.s32 %v681, %v683
        %v685 = vrot.slane %v663, %v684
        %v687 = vunpack.c.l.s4 1966171168
        %v688 = vunpack.c.0.s8 %v687
        %v689 = vlaneseq
        %v690 = vshrl.u32 %v689, 7
        %v691 = vsub.s32 %v688, %v690
        %v692 = vrot.slane %v664, %v691
        %v693 = vcombine.high %v671, %v671
        %v694 = vcombine.high %v678, %v678
        %v695 = vcombine.high %v685, %v685
        %v696 = vcombine.high %v692, %v692
        %v697 = vcombine.low %v638, %v610
        %v698 = vcombine.high %v638, %v610
        %v700 = vunpack.c.l.s4 1966171168
        %v701 = vunpack.c.0.s8 %v700
        %v702 = vlaneseq
        %v703 = vshrl.u32 %v702, 7
        %v704 = vsub.s32 %v701, %v703
        %v705 = vrot.slane %v697, %v704
        %v707 = vunpack.c.l.s4 1966171168
        %v708 = vunpack.c.0.s8 %v707
        %v709 = vlaneseq
        %v710 = vshrl.u32 %v709, 7
        %v711 = vsub.s32 %v708, %v710
        %v712 = vrot.slane %v698, %v711
        %v713 = vcombine.high %v705, %v705
        %v714 = vcombine.high %v712, %v712
        %v716 = vunpack.c.l.s4 1966171168
        %v717 = vunpack.c.0.s8 %v716
        %v718 = vlaneseq
        %v719 = vshrl.u32 %v718, 7
        %v720 = vsub.s32 %v717, %v719
        %v721 = vrot.slane %v705, %v720
        %v723 = vunpack.c.l.s4 1966171168
        %v724 = vunpack.c.0.s8 %v723
        %v725 = vlaneseq
        %v726 = vshrl.u32 %v725, 7
        %v727 = vsub.s32 %v724, %v726
        %v728 = vrot.slane %v712, %v727
        %v730 = vunpack.c.l.s4 1966171168
        %v731 = vunpack.c.0.s8 %v730
        %v732 = vlaneseq
        %v733 = vshrl.u32 %v732, 7
        %v734 = vsub.s32 %v731, %v733
        %v735 = vrot.slane %v713, %v734
        %v737 = vunpack.c.l.s4 1966171168
        %v738 = vunpack.c.0.s8 %v737
        %v739 = vlaneseq
        %v740 = vshrl.u32 %v739, 7
        %v741 = vsub.s32 %v738, %v740
        %v742 = vrot.slane %v714, %v741
        %v743 = vcombine.high %v721, %v721
        %v744 = vcombine.high %v728, %v728
        %v745 = vcombine.high %v735, %v735
        %v746 = vcombine.high %v742, %v742
        %v747 = vcombine.low %v640, %v613
        %v748 = vcombine.high %v640, %v613
        %v750 = vunpack.c.l.s4 1966171168
        %v751 = vunpack.c.0.s8 %v750
        %v752 = vlaneseq
        %v753 = vshrl.u32 %v752, 7
        %v754 = vsub.s32 %v751, %v753
        %v755 = vrot.slane %v747, %v754
        %v757 = vunpack.c.l.s4 1966171168
        %v758 = vunpack.c.0.s8 %v757
        %v759 = vlaneseq
        %v760 = vshrl.u32 %v759, 7
        %v761 = vsub.s32 %v758, %v760
        %v762 = vrot.slane %v748, %v761
        %v763 = vcombine.high %v755, %v755
        %v764 = vcombine.high %v762, %v762
        %v766 = vunpack.c.l.s4 1966171168
        %v767 = vunpack.c.0.s8 %v766
        %v768 = vlaneseq
        %v769 = vshrl.u32 %v768, 7
        %v770 = vsub.s32 %v767, %v769
        %v771 = vrot.slane %v755, %v770
        %v773 = vunpack.c.l.s4 1966171168
        %v774 = vunpack.c.0.s8 %v773
        %v775 = vlaneseq
        %v776 = vshrl.u32 %v775, 7
        %v777 = vsub.s32 %v774, %v776
        %v778 = vrot.slane %v762, %v777
        %v780 = vunpack.c.l.s4 1966171168
        %v781 = vunpack.c.0.s8 %v780
        %v782 = vlaneseq
        %v783 = vshrl.u32 %v782, 7
        %v784 = vsub.s32 %v781, %v783
        %v785 = vrot.slane %v763, %v784
        %v787 = vunpack.c.l.s4 1966171168
        %v788 = vunpack.c.0.s8 %v787
        %v789 = vlaneseq
        %v790 = vshrl.u32 %v789, 7
        %v791 = vsub.s32 %v788, %v790
        %v792 = vrot.slane %v764, %v791
        %v793 = vcombine.high %v771, %v771
        %v794 = vcombine.high %v778, %v778
        %v795 = vcombine.high %v785, %v785
        %v796 = vcombine.high %v792, %v792
        %v797 = vcombine.low %v642, %v615
        %v798 = vcombine.high %v642, %v615
        %v800 = vunpack.c.l.s4 1966171168
        %v801 = vunpack.c.0.s8 %v800
        %v802 = vlaneseq
        %v803 = vshrl.u32 %v802, 7
        %v804 = vsub.s32 %v801, %v803
        %v805 = vrot.slane %v797, %v804
        %v807 = vunpack.c.l.s4 1966171168
        %v808 = vunpack.c.0.s8 %v807
        %v809 = vlaneseq
        %v810 = vshrl.u32 %v809, 7
        %v811 = vsub.s32 %v808, %v810
        %v812 = vrot.slane %v798, %v811
        %v813 = vcombine.high %v805, %v805
        %v814 = vcombine.high %v812, %v812
        %v816 = vunpack.c.l.s4 1966171168
        %v817 = vunpack.c.0.s8 %v816
        %v818 = vlaneseq
        %v819 = vshrl.u32 %v818, 7
        %v820 = vsub.s32 %v817, %v819
        %v821 = vrot.slane %v805, %v820
        %v823 = vunpack.c.l.s4 1966171168
        %v824 = vunpack.c.0.s8 %v823
        %v825 = vlaneseq
        %v826 = vshrl.u32 %v825, 7
        %v827 = vsub.s32 %v824, %v826
        %v828 = vrot.slane %v812, %v827
        %v830 = vunpack.c.l.s4 1966171168
        %v831 = vunpack.c.0.s8 %v830
        %v832 = vlaneseq
        %v833 = vshrl.u32 %v832, 7
        %v834 = vsub.s32 %v831, %v833
        %v835 = vrot.slane %v813, %v834
        %v837 = vunpack.c.l.s4 1966171168
        %v838 = vunpack.c.0.s8 %v837
        %v839 = vlaneseq
        %v840 = vshrl.u32 %v839, 7
        %v841 = vsub.s32 %v838, %v840
        %v842 = vrot.slane %v814, %v841
        %v843 = vcombine.high %v821, %v821
        %v844 = vcombine.high %v828, %v828
        %v845 = vcombine.high %v835, %v835
        %v846 = vcombine.high %v842, %v842
        %v847 = vunpack.i.l.s16 %v671
        %v848 = vunpack.i.h.s16 %v671
        %v849 = vunpack.i.l.s16 %v685
        %v850 = vunpack.i.h.s16 %v685
        %v851 = vunpack.i.l.s16 %v693
        %v852 = vunpack.i.h.s16 %v693
        %v853 = vunpack.i.l.s16 %v695
        %v854 = vunpack.i.h.s16 %v695
        %v855 = vunpack.i.l.s16 %v678
        %v856 = vunpack.i.h.s16 %v678
        %v857 = vunpack.i.l.s16 %v692
        %v858 = vunpack.i.h.s16 %v692
        %v859 = vunpack.i.l.s16 %v694
        %v860 = vunpack.i.h.s16 %v694
        %v861 = vunpack.i.l.s16 %v696
        %v862 = vunpack.i.h.s16 %v696
        %v863 = vunpack.i.l.s16 %v721
        %v864 = vunpack.i.h.s16 %v721
        %v865 = vunpack.i.l.s16 %v735
        %v866 = vunpack.i.h.s16 %v735
        %v867 = vunpack.i.l.s16 %v743
        %v868 = vunpack.i.h.s16 %v743
        %v869 = vunpack.i.l.s16 %v745
        %v870 = vunpack.i.h.s16 %v745
        %v871 = vunpack.i.l.s16 %v728
        %v872 = vunpack.i.h.s16 %v728
        %v873 = vunpack.i.l.s16 %v742
        %v874 = vunpack.i.h.s16 %v742
        %v875 = vunpack.i.l.s16 %v744
        %v876 = vunpack.i.h.s16 %v744
        %v877 = vunpack.i.l.s16 %v746
        %v878 = vunpack.i.l.s16 %v771
        %v879 = vunpack.i.h.s16 %v771
        %v880 = vunpack.i.l.s16 %v785
        %v881 = vunpack.i.h.s16 %v785
        %v882 = vunpack.i.l.s16 %v793
        %v883 = vunpack.i.h.s16 %v793
        %v884 = vunpack.i.l.s16 %v795
        %v885 = vunpack.i.h.s16 %v795
        %v886 = vunpack.i.l.s16 %v778
        %v887 = vunpack.i.h.s16 %v778
        %v888 = vunpack.i.l.s16 %v792
        %v889 = vunpack.i.h.s16 %v792
        %v890 = vunpack.i.l.s16 %v794
        %v891 = vunpack.i.h.s16 %v794
        %v892 = vunpack.i.l.s16 %v796
        %v893 = vunpack.i.h.s16 %v796
        %v894 = vunpack.i.l.s16 %v821
        %v895 = vunpack.i.h.s16 %v821
        %v896 = vunpack.i.l.s16 %v835
        %v897 = vunpack.i.h.s16 %v835
        %v898 = vunpack.i.l.s16 %v843
        %v899 = vunpack.i.h.s16 %v843
        %v900 = vunpack.i.l.s16 %v845
        %v901 = vunpack.i.h.s16 %v845
        %v902 = vunpack.i.l.s16 %v828
        %v903 = vunpack.i.h.s16 %v828
        %v904 = vunpack.i.l.s16 %v842
        %v905 = vunpack.i.h.s16 %v842
        %v906 = vunpack.i.l.s16 %v844
        %v907 = vunpack.i.h.s16 %v844
        %v908 = vunpack.i.l.s16 %v846
        %v909 = vpack.i.b16 %v848, %v847
        %v910 = vpack.i.b16 %v850, %v849
        %v911 = vpack.i.b16 %v852, %v851
        %v912 = vpack.i.b16 %v854, %v853
        %v913 = vpack.i.b16 %v856, %v855
        %v914 = vpack.i.b16 %v858, %v857
        %v915 = vpack.i.b16 %v860, %v859
        %v916 = vpack.i.b16 %v862, %v861
        %v917 = vpack.i.b16 %v864, %v863
        %v918 = vpack.i.b16 %v866, %v865
        %v919 = vpack.i.b16 %v868, %v867
        %v920 = vpack.i.b16 %v870, %v869
        %v921 = vpack.i.b16 %v872, %v871
        %v922 = vpack.i.b16 %v874, %v873
        %v923 = vpack.i.b16 %v876, %v875
        %v924 = vpack.i.b16 %v878, %v877
        %v925 = vpack.i.b16 %v880, %v879
        %v926 = vpack.i.b16 %v882, %v881
        %v927 = vpack.i.b16 %v884, %v883
        %v928 = vpack.i.b16 %v886, %v885
        %v929 = vpack.i.b16 %v888, %v887
        %v930 = vpack.i.b16 %v890, %v889
        %v931 = vpack.i.b16 %v892, %v891
        %v932 = vpack.i.b16 %v894, %v893
        %v933 = vpack.i.b16 %v896, %v895
        %v934 = vpack.i.b16 %v898, %v897
        %v935 = vpack.i.b16 %v900, %v899
        %v936 = vpack.i.b16 %v902, %v901
        %v937 = vpack.i.b16 %v904, %v903
        %v938 = vpack.i.b16 %v906, %v905
        %v939 = vpack.i.b16 %v908, %v907
        %v940 = vcombine.low %v909, %v910
        %v941 = vcombine.low %v911, %v912
        %v942 = vcombine.low %v913, %v914
        %v943 = vcombine.low %v915, %v916
        %v945 = vunpack.c.l.s4 1966171168
        %v946 = vunpack.c.0.s8 %v945
        %v947 = vlaneseq
        %v948 = vshrl.u32 %v947, 7
        %v949 = vsub.s32 %v946, %v948
        %v950 = vrot.slane %v940, %v949
        %v952 = vunpack.c.l.s4 1966171168
        %v953 = vunpack.c.0.s8 %v952
        %v954 = vlaneseq
        %v955 = vshrl.u32 %v954, 7
        %v956 = vsub.s32 %v953, %v955
        %v957 = vrot.slane %v941, %v956
        %v959 = vunpack.c.l.s4 1966171168
        %v960 = vunpack.c.0.s8 %v959
        %v961 = vlaneseq
        %v962 = vshrl.u32 %v961, 7
        %v963 = vsub.s32 %v960, %v962
        %v964 = vrot.slane %v942, %v963
        %v966 = vunpack.c.l.s4 1966171168
        %v967 = vunpack.c.0.s8 %v966
        %v968 = vlaneseq
        %v969 = vshrl.u32 %v968, 7
        %v970 = vsub.s32 %v967, %v969
        %v971 = vrot.slane %v943, %v970
        %v972 = vcombine.low %v950, %v957
        %v973 = vcombine.high %v950, %v957
        %v974 = vcombine.low %v964, %v971
        %v975 = vcombine.high %v964, %v971
        %v977 = vunpack.c.l.s4 1966171168
        %v978 = vunpack.c.0.s8 %v977
        %v979 = vlaneseq
        %v980 = vshrl.u32 %v979, 7
        %v981 = vsub.s32 %v978, %v980
        %v982 = vrot.slane %v972, %v981
        %v984 = vunpack.c.l.s4 1966171168
        %v985 = vunpack.c.0.s8 %v984
        %v986 = vlaneseq
        %v987 = vshrl.u32 %v986, 7
        %v988 = vsub.s32 %v985, %v987
        %v989 = vrot.slane %v973, %v988
        %v991 = vunpack.c.l.s4 1966171168
        %v992 = vunpack.c.0.s8 %v991
        %v993 = vlaneseq
        %v994 = vshrl.u32 %v993, 7
        %v995 = vsub.s32 %v992, %v994
        %v996 = vrot.slane %v974, %v995
        %v998 = vunpack.c.l.s4 1966171168
        %v999 = vunpack.c.0.s8 %v998
        %v1000 = vlaneseq
        %v1001 = vshrl.u32 %v1000, 7
        %v1002 = vsub.s32 %v999, %v1001
        %v1003 = vrot.slane %v975, %v1002
        %v1004 = vcombine.low %v982, %v996
        %v1005 = vcombine.low %v989, %v1003
        %v1006 = vcombine.low %v917, %v918
        %v1007 = vcombine.low %v919, %v920
        %v1008 = vcombine.low %v921, %v922
        %v1009 = vcombine.low %v923, %v924
        %v1011 = vunpack.c.l.s4 1966171168
        %v1012 = vunpack.c.0.s8 %v1011
        %v1013 = vlaneseq
        %v1014 = vshrl.u32 %v1013, 7
        %v1015 = vsub.s32 %v1012, %v1014
        %v1016 = vrot.slane %v1006, %v1015
        %v1018 = vunpack.c.l.s4 1966171168
        %v1019 = vunpack.c.0.s8 %v1018
        %v1020 = vlaneseq
        %v1021 = vshrl.u32 %v1020, 7
        %v1022 = vsub.s32 %v1019, %v1021
        %v1023 = vrot.slane %v1007, %v1022
        %v1025 = vunpack.c.l.s4 1966171168
        %v1026 = vunpack.c.0.s8 %v1025
        %v1027 = vlaneseq
        %v1028 = vshrl.u32 %v1027, 7
        %v1029 = vsub.s32 %v1026, %v1028
        %v1030 = vrot.slane %v1008, %v1029
        %v1032 = vunpack.c.l.s4 1966171168
        %v1033 = vunpack.c.0.s8 %v1032
        %v1034 = vlaneseq
        %v1035 = vshrl.u32 %v1034, 7
        %v1036 = vsub.s32 %v1033, %v1035
        %v1037 = vrot.slane %v1009, %v1036
        %v1038 = vcombine.low %v1016, %v1023
        %v1039 = vcombine.high %v1016, %v1023
        %v1040 = vcombine.low %v1030, %v1037
        %v1041 = vcombine.high %v1030, %v1037
        %v1043 = vunpack.c.l.s4 1966171168
        %v1044 = vunpack.c.0.s8 %v1043
        %v1045 = vlaneseq
        %v1046 = vshrl.u32 %v1045, 7
        %v1047 = vsub.s32 %v1044, %v1046
        %v1048 = vrot.slane %v1038, %v1047
        %v1050 = vunpack.c.l.s4 1966171168
        %v1051 = vunpack.c.0.s8 %v1050
        %v1052 = vlaneseq
        %v1053 = vshrl.u32 %v1052, 7
        %v1054 = vsub.s32 %v1051, %v1053
        %v1055 = vrot.slane %v1039, %v1054
        %v1057 = vunpack.c.l.s4 1966171168
        %v1058 = vunpack.c.0.s8 %v1057
        %v1059 = vlaneseq
        %v1060 = vshrl.u32 %v1059, 7
        %v1061 = vsub.s32 %v1058, %v1060
        %v1062 = vrot.slane %v1040, %v1061
        %v1064 = vunpack.c.l.s4 1966171168
        %v1065 = vunpack.c.0.s8 %v1064
        %v1066 = vlaneseq
        %v1067 = vshrl.u32 %v1066, 7
        %v1068 = vsub.s32 %v1065, %v1067
        %v1069 = vrot.slane %v1041, %v1068
        %v1070 = vcombine.low %v1048, %v1062
        %v1071 = vcombine.low %v1055, %v1069
        %v1072 = vcombine.low %v925, %v926
        %v1073 = vcombine.low %v927, %v928
        %v1074 = vcombine.low %v929, %v930
        %v1075 = vcombine.low %v931, %v932
        %v1077 = vunpack.c.l.s4 1966171168
        %v1078 = vunpack.c.0.s8 %v1077
        %v1079 = vlaneseq
        %v1080 = vshrl.u32 %v1079, 7
        %v1081 = vsub.s32 %v1078, %v1080
        %v1082 = vrot.slane %v1072, %v1081
        %v1084 = vunpack.c.l.s4 1966171168
        %v1085 = vunpack.c.0.s8 %v1084
        %v1086 = vlaneseq
        %v1087 = vshrl.u32 %v1086, 7
        %v1088 = vsub.s32 %v1085, %v1087
        %v1089 = vrot.slane %v1073, %v1088
        %v1091 = vunpack.c.l.s4 1966171168
        %v1092 = vunpack.c.0.s8 %v1091
        %v1093 = vlaneseq
        %v1094 = vshrl.u32 %v1093, 7
        %v1095 = vsub.s32 %v1092, %v1094
        %v1096 = vrot.slane %v1074, %v1095
        %v1098 = vunpack.c.l.s4 1966171168
        %v1099 = vunpack.c.0.s8 %v1098
        %v1100 = vlaneseq
        %v1101 = vshrl.u32 %v1100, 7
        %v1102 = vsub.s32 %v1099, %v1101
        %v1103 = vrot.slane %v1075, %v1102
        %v1104 = vcombine.low %v1082, %v1089
        %v1105 = vcombine.high %v1082, %v1089
        %v1106 = vcombine.low %v1096, %v1103
        %v1107 = vcombine.high %v1096, %v1103
        %v1109 = vunpack.c.l.s4 1966171168
        %v1110 = vunpack.c.0.s8 %v1109
        %v1111 = vlaneseq
        %v1112 = vshrl.u32 %v1111, 7
        %v1113 = vsub.s32 %v1110, %v1112
        %v1114 = vrot.slane %v1104, %v1113
        %v1116 = vunpack.c.l.s4 1966171168
        %v1117 = vunpack.c.0.s8 %v1116
        %v1118 = vlaneseq
        %v1119 = vshrl.u32 %v1118, 7
        %v1120 = vsub.s32 %v1117, %v1119
        %v1121 = vrot.slane %v1105, %v1120
        %v1123 = vunpack.c.l.s4 1966171168
        %v1124 = vunpack.c.0.s8 %v1123
        %v1125 = vlaneseq
        %v1126 = vshrl.u32 %v1125, 7
        %v1127 = vsub.s32 %v1124, %v1126
        %v1128 = vrot.slane %v1106, %v1127
        %v1130 = vunpack.c.l.s4 1966171168
        %v1131 = vunpack.c.0.s8 %v1130
        %v1132 = vlaneseq
        %v1133 = vshrl.u32 %v1132, 7
        %v1134 = vsub.s32 %v1131, %v1133
        %v1135 = vrot.slane %v1107, %v1134
        %v1136 = vcombine.low %v1114, %v1128
        %v1137 = vcombine.low %v1121, %v1135
        %v1138 = vcombine.low %v933, %v934
        %v1139 = vcombine.low %v935, %v936
        %v1140 = vcombine.low %v937, %v938
        %v1142 = vunpack.c.l.s4 1966171168
        %v1143 = vunpack.c.0.s8 %v1142
        %v1144 = vlaneseq
        %v1145 = vshrl.u32 %v1144, 7
        %v1146 = vsub.s32 %v1143, %v1145
        %v1147 = vrot.slane %v1138, %v1146
        %v1149 = vunpack.c.l.s4 1966171168
        %v1150 = vunpack.c.0.s8 %v1149
        %v1151 = vlaneseq
        %v1152 = vshrl.u32 %v1151, 7
        %v1153 = vsub.s32 %v1150, %v1152
        %v1154 = vrot.slane %v1139, %v1153
        %v1156 = vunpack.c.l.s4 1966171168
        %v1157 = vunpack.c.0.s8 %v1156
        %v1158 = vlaneseq
        %v1159 = vshrl.u32 %v1158, 7
        %v1160 = vsub.s32 %v1157, %v1159
        %v1161 = vrot.slane %v1140, %v1160
        %v1163 = vunpack.c.l.s4 1966171168
        %v1164 = vunpack.c.0.s8 %v1163
        %v1165 = vlaneseq
        %v1166 = vshrl.u32 %v1165, 7
        %v1167 = vsub.s32 %v1164, %v1166
        %v1168 = vrot.slane %v939, %v1167
        %v1169 = vcombine.low %v1147, %v1154
        %v1170 = vcombine.high %v1147, %v1154
        %v1171 = vcombine.low %v1161, %v1168
        %v1172 = vcombine.high %v1161, %v1168
        %v1174 = vunpack.c.l.s4 1966171168
        %v1175 = vunpack.c.0.s8 %v1174
        %v1176 = vlaneseq
        %v1177 = vshrl.u32 %v1176, 7
        %v1178 = vsub.s32 %v1175, %v1177
        %v1179 = vrot.slane %v1169, %v1178
        %v1181 = vunpack.c.l.s4 1966171168
        %v1182 = vunpack.c.0.s8 %v1181
        %v1183 = vlaneseq
        %v1184 = vshrl.u32 %v1183, 7
        %v1185 = vsub.s32 %v1182, %v1184
        %v1186 = vrot.slane %v1170, %v1185
        %v1188 = vunpack.c.l.s4 1966171168
        %v1189 = vunpack.c.0.s8 %v1188
        %v1190 = vlaneseq
        %v1191 = vshrl.u32 %v1190, 7
        %v1192 = vsub.s32 %v1189, %v1191
        %v1193 = vrot.slane %v1171, %v1192
        %v1195 = vunpack.c.l.s4 1966171168
        %v1196 = vunpack.c.0.s8 %v1195
        %v1197 = vlaneseq
        %v1198 = vshrl.u32 %v1197, 7
        %v1199 = vsub.s32 %v1196, %v1198
        %v1200 = vrot.slane %v1172, %v1199
        %v1201 = vcombine.low %v1179, %v1193
        %v1202 = vcombine.low %v1186, %v1200
        %v1267 = vunpack.c.l.b16 %v349
        %v1268 = vunpack.c.h.b16 %v349
        %v1269 = vunpack.c.l.b16 %v350
        %v1270 = vunpack.c.h.b16 %v350
        %v1271 = vunpack.c.l.b16 %v351
        %v1272 = vunpack.c.l.b16 %v352
        %v1273 = vunpack.c.h.b16 %v352
        %v1274 = vunpack.c.l.b16 %v353
        %v1275 = vunpack.c.h.b16 %v353
        %v1276 = vunpack.c.l.b16 %v354
        %v1277 = vunpack.c.l.b16 %v355
        %v1278 = vunpack.c.h.b16 %v355
        %v1279 = vunpack.c.l.b16 %v356
        %v1280 = vunpack.c.h.b16 %v356
        %v1281 = vunpack.c.l.b16 %v357
        %v1282 = vunpack.c.l.b16 %v358
        %v1283 = vunpack.c.h.b16 %v358
        %v1284 = vunpack.c.l.b16 %v359
        %v1285 = vunpack.c.h.b16 %v359
        %v1286 = vunpack.c.l.b16 %v360
        %v1287 = vunpack.c.l.b16 %v361
        %v1288 = vunpack.c.h.b16 %v361
        %v1289 = vunpack.c.l.b16 %v362
        %v1290 = vunpack.c.h.b16 %v362
        %v1291 = vunpack.c.l.b16 %v363
        %v1292 = vunpack.c.l.b16 %v364
        %v1293 = vunpack.c.h.b16 %v364
        %v1294 = vunpack.c.l.b16 %v365
        %v1295 = vunpack.c.h.b16 %v365
        %v1296 = vunpack.c.l.b16 %v366
        %v1297 = vunpack.c.l.b16 %v367
        %v1298 = vunpack.c.h.b16 %v367
        %v1299 = vunpack.c.l.b16 %v368
        %v1300 = vunpack.c.h.b16 %v368
        %v1301 = vunpack.c.l.b16 %v369
        %v1302 = vunpack.c.l.b16 %v370
        %v1303 = vunpack.c.h.b16 %v370
        %v1304 = vunpack.c.l.b16 %v371
        %v1305 = vunpack.c.h.b16 %v371
        %v1306 = vunpack.c.l.b16 %v372
        %v1307 = vunpack.c.l.b16 %v373
        %v1308 = vunpack.c.h.b16 %v373
        %v1309 = vunpack.c.l.b16 %v374
        %v1310 = vunpack.c.h.b16 %v374
        %v1311 = vunpack.c.l.b16 %v375
        %v1312 = vunpack.c.l.b16 %v376
        %v1313 = vunpack.c.h.b16 %v376
        %v1314 = vunpack.c.l.b16 %v377
        %v1315 = vunpack.c.h.b16 %v377
        %v1316 = vunpack.c.l.b16 %v378
        %v1317 = vunpack.c.l.b16 %v379
        %v1318 = vunpack.c.h.b16 %v379
        %v1319 = vunpack.c.l.b16 %v380
        %v1320 = vunpack.c.h.b16 %v380
        %v1321 = vunpack.c.l.b16 %v381
        %v1322 = vunpack.c.l.b16 %v382
        %v1323 = vunpack.c.h.b16 %v382
        %v1324 = vunpack.c.l.b16 %v383
        %v1325 = vunpack.c.h.b16 %v383
        %v1326 = vunpack.c.l.b16 %v384
        %v1327 = vunpack.c.l.b16 %v385
        %v1328 = vunpack.c.h.b16 %v385
        %v1329 = vunpack.c.l.b16 %v386
        %v1330 = vunpack.c.h.b16 %v386
        %v1331 = vunpack.c.l.b16 %v387
        %v1332 = vunpack.c.l.b16 %v388
        %v1333 = vunpack.c.h.b16 %v388
        %v1334 = vunpack.c.l.b16 %v389
        %v1335 = vunpack.c.h.b16 %v389
        %v1336 = vunpack.c.l.b16 %v390
        %v1337 = vunpack.c.l.b16 %v391
        %v1338 = vunpack.c.h.b16 %v391
        %v1339 = vunpack.c.l.b16 %v392
        %v1340 = vunpack.c.h.b16 %v392
        %v1341 = vunpack.c.l.b16 %v393
        %v1342 = vunpack.c.l.b16 %v394
        %v1343 = vunpack.c.h.b16 %v394
        %v1344 = vunpack.c.l.b16 %v395
        %v1345 = vunpack.c.h.b16 %v395
        %v1346 = vunpack.c.l.b16 %v396
        %v1347 = vunpack.c.l.b16 %v397
        %v1348 = vunpack.c.h.b16 %v397
        %v1349 = vunpack.c.l.b16 %v398
        %v1350 = vunpack.c.h.b16 %v398
        %v1351 = vunpack.c.l.b16 %v399
        %v1352 = vunpack.c.l.b16 %v400
        %v1353 = vunpack.c.h.b16 %v400
        %v1354 = vunpack.c.l.b16 %v401
        %v1355 = vunpack.c.h.b16 %v401
        %v1356 = vunpack.c.l.b16 %v402
        %v1357 = vunpack.c.l.b16 %v403
        %v1358 = vunpack.c.h.b16 %v403
        %v1359 = vunpack.c.l.b16 %v404
        %v1360 = vunpack.c.h.b16 %v404
        %v1361 = vunpack.c.l.b16 %v405
        %v1362 = vunpack.c.l.b16 %v406
        %v1363 = vunpack.c.h.b16 %v406
        %v1364 = vunpack.c.l.b16 %v407
        %v1365 = vunpack.c.h.b16 %v407
        %v1366 = vunpack.c.l.b16 %v408
        %v1367 = vpack.c.b16 %v1272, %v1267
        %v1368 = vpack.c.b16 %v1273, %v1268
        %v1369 = vpack.c.b16 %v1274, %v1269
        %v1370 = vpack.c.b16 %v1275, %v1270
        %v1371 = vpack.c.b16 %v1276, %v1271
        %v1372 = vpack.c.b16 %v1282, %v1277
        %v1373 = vpack.c.b16 %v1283, %v1278
        %v1374 = vpack.c.b16 %v1284, %v1279
        %v1375 = vpack.c.b16 %v1285, %v1280
        %v1376 = vpack.c.b16 %v1286, %v1281
        %v1377 = vpack.c.b16 %v1292, %v1287
        %v1378 = vpack.c.b16 %v1293, %v1288
        %v1379 = vpack.c.b16 %v1294, %v1289
        %v1380 = vpack.c.b16 %v1295, %v1290
        %v1381 = vpack.c.b16 %v1296, %v1291
        %v1382 = vpack.c.b16 %v1302, %v1297
        %v1383 = vpack.c.b16 %v1303, %v1298
        %v1384 = vpack.c.b16 %v1304, %v1299
        %v1385 = vpack.c.b16 %v1305, %v1300
        %v1386 = vpack.c.b16 %v1306, %v1301
        %v1387 = vpack.c.b16 %v1312, %v1307
        %v1388 = vpack.c.b16 %v1313, %v1308
        %v1389 = vpack.c.b16 %v1314, %v1309
        %v1390 = vpack.c.b16 %v1315, %v1310
        %v1391 = vpack.c.b16 %v1316, %v1311
        %v1392 = vpack.c.b16 %v1322, %v1317
        %v1393 = vpack.c.b16 %v1323, %v1318
        %v1394 = vpack.c.b16 %v1324, %v1319
        %v1395 = vpack.c.b16 %v1325, %v1320
        %v1396 = vpack.c.b16 %v1326, %v1321
        %v1397 = vpack.c.b16 %v1332, %v1327
        %v1398 = vpack.c.b16 %v1333, %v1328
        %v1399 = vpack.c.b16 %v1334, %v1329
        %v1400 = vpack.c.b16 %v1335, %v1330
        %v1401 = vpack.c.b16 %v1336, %v1331
        %v1402 = vpack.c.b16 %v1342, %v1337
        %v1403 = vpack.c.b16 %v1343, %v1338
        %v1404 = vpack.c.b16 %v1344, %v1339
        %v1405 = vpack.c.b16 %v1345, %v1340
        %v1406 = vpack.c.b16 %v1346, %v1341
        %v1407 = vpack.c.b16 %v1352, %v1347
        %v1408 = vpack.c.b16 %v1353, %v1348
        %v1409 = vpack.c.b16 %v1354, %v1349
        %v1410 = vpack.c.b16 %v1355, %v1350
        %v1411 = vpack.c.b16 %v1356, %v1351
        %v1412 = vpack.c.b16 %v1362, %v1357
        %v1413 = vpack.c.b16 %v1363, %v1358
        %v1414 = vpack.c.b16 %v1364, %v1359
        %v1415 = vpack.c.b16 %v1365, %v1360
        %v1416 = vpack.c.b16 %v1366, %v1361
        %v1468 = vsel %vm616, %v1005, 0
        %v1471 = vsel %vm616, %v1071, 0
        %v1474 = vsel %vm616, %v1137, 0
        %v1477 = vsel %vm616, %v1202, 0
        %1479 = vmatprep.subr.bf16.mxu0 %v1403
        %1480 = vmatpush1.bf16.msra.mxu0 %v1402
        %1481 = vmatprep.subr.bf16.mxu0 %v1398
        %1482 = vmatpush1.bf16.msra.mxu0 %v1397
        %1483 = vmatprep.subr.bf16.mxu0 %v1393
        %1484 = vmatpush1.bf16.msra.mxu0 %v1392
        %1485 = vmatprep.subr.bf16.mxu0 %v1388
        %1486 = vmatpush1.bf16.msra.mxu0 %v1387
        %1487 = vmatprep.subr.bf16.mxu0 %v1383
        %1488 = vmatpush1.bf16.msra.mxu0 %v1382
        %1489 = vmatprep.subr.bf16.mxu0 %v1378
        %1490 = vmatpush1.bf16.msra.mxu0 %v1377
        %1491 = vmatprep.subr.bf16.mxu0 %v1373
        %1492 = vmatpush1.bf16.msra.mxu0 %v1372
        %1493 = vmatprep.subr.bf16.mxu0 %v1368
        %1494 = vmatpush1.bf16.msra.mxu0 %v1367
        %1495 = vmatprep.subr.bf16.mxu0 0
        %1496 = vmatpush2.bf16.msra.mxu0 0
        %1497 = vmatprep.subr.bf16.mxu0 0
        %1498 = vmatpush2.bf16.msra.mxu0 0
        %1499 = vmatprep.subr.bf16.mxu0 0
        %1500 = vmatpush2.bf16.msra.mxu0 0
        %1501 = vmatprep.subr.bf16.mxu0 0
        %1502 = vmatpush2.bf16.msra.mxu0 0
        %1503 = vmatprep.subr.bf16.mxu0 0
        %1504 = vmatpush2.bf16.msra.mxu0 0
        %1505 = vmatprep.subr.bf16.mxu0 0
        %1506 = vmatpush2.bf16.msra.mxu0 0
        %1507 = vmatprep.subr.bf16.mxu0 %v1413
        %1508 = vmatpush2.bf16.msra.mxu0 %v1412
        %1509 = vmatprep.subr.bf16.mxu0 %v1408
        %1510 = vmatpush2.bf16.msra.mxu0 %v1407
        %1511 = vmatprep.mubr.bf16.mxu0 %v1468
        %1512 = vmatmul.mubr.bf16.gmra.mxu0 %v1004
        %v1513 = vpop.f32.mrf.mxu0
        %v1514 = vadd.f32 0.0, %v1513
        %v1515 = vpop.f32.mrf.mxu0
        %v1516 = vadd.f32 0.0, %v1515
        %v1517 = vpop.f32.mrf.mxu0
        %v1518 = vadd.f32 0.0, %v1517
        %v1519 = vpop.f32.mrf.mxu0
        %v1520 = vadd.f32 0.0, %v1519
        %1521 = vmatprep.mubr.bf16.mxu0 %v1471
        %1522 = vmatmul.mubr.bf16.gmra.mxu0 %v1070
        %v1523 = vpop.f32.mrf.mxu0
        %v1524 = vadd.f32 0.0, %v1523
        %v1525 = vpop.f32.mrf.mxu0
        %v1526 = vadd.f32 0.0, %v1525
        %v1527 = vpop.f32.mrf.mxu0
        %v1528 = vadd.f32 0.0, %v1527
        %v1529 = vpop.f32.mrf.mxu0
        %v1530 = vadd.f32 0.0, %v1529
        %1531 = vmatprep.mubr.bf16.mxu0 %v1474
        %1532 = vmatmul.mubr.bf16.gmra.mxu0 %v1136
        %v1533 = vpop.f32.mrf.mxu0
        %v1534 = vadd.f32 0.0, %v1533
        %v1535 = vpop.f32.mrf.mxu0
        %v1536 = vadd.f32 0.0, %v1535
        %v1537 = vpop.f32.mrf.mxu0
        %v1538 = vadd.f32 0.0, %v1537
        %v1539 = vpop.f32.mrf.mxu0
        %v1540 = vadd.f32 0.0, %v1539
        %1541 = vmatprep.mubr.bf16.mxu0 %v1477
        %1542 = vmatmul.mubr.bf16.gmra.mxu0 %v1201
        %v1543 = vpop.f32.mrf.mxu0
        %v1544 = vadd.f32 0.0, %v1543
        %v1545 = vpop.f32.mrf.mxu0
        %v1546 = vadd.f32 0.0, %v1545
        %v1547 = vpop.f32.mrf.mxu0
        %v1548 = vadd.f32 0.0, %v1547
        %v1549 = vpop.f32.mrf.mxu0
        %v1550 = vadd.f32 0.0, %v1549
        %1551 = vdwg.mxu0
        %1552 = vmatprep.subr.bf16.mxu0 %v1405
        %1553 = vmatpush1.bf16.msra.mxu0 %v1404
        %1554 = vmatprep.subr.bf16.mxu0 %v1400
        %1555 = vmatpush1.bf16.msra.mxu0 %v1399
        %1556 = vmatprep.subr.bf16.mxu0 %v1395
        %1557 = vmatpush1.bf16.msra.mxu0 %v1394
        %1558 = vmatprep.subr.bf16.mxu0 %v1390
        %1559 = vmatpush1.bf16.msra.mxu0 %v1389
        %1560 = vmatprep.subr.bf16.mxu0 %v1385
        %1561 = vmatpush1.bf16.msra.mxu0 %v1384
        %1562 = vmatprep.subr.bf16.mxu0 %v1380
        %1563 = vmatpush1.bf16.msra.mxu0 %v1379
        %1564 = vmatprep.subr.bf16.mxu0 %v1375
        %1565 = vmatpush1.bf16.msra.mxu0 %v1374
        %1566 = vmatprep.subr.bf16.mxu0 %v1370
        %1567 = vmatpush1.bf16.msra.mxu0 %v1369
        %1568 = vmatprep.subr.bf16.mxu0 0
        %1569 = vmatpush2.bf16.msra.mxu0 0
        %1570 = vmatprep.subr.bf16.mxu0 0
        %1571 = vmatpush2.bf16.msra.mxu0 0
        %1572 = vmatprep.subr.bf16.mxu0 0
        %1573 = vmatpush2.bf16.msra.mxu0 0
        %1574 = vmatprep.subr.bf16.mxu0 0
        %1575 = vmatpush2.bf16.msra.mxu0 0
        %1576 = vmatprep.subr.bf16.mxu0 0
        %1577 = vmatpush2.bf16.msra.mxu0 0
        %1578 = vmatprep.subr.bf16.mxu0 0
        %1579 = vmatpush2.bf16.msra.mxu0 0
        %1580 = vmatprep.subr.bf16.mxu0 %v1415
        %1581 = vmatpush2.bf16.msra.mxu0 %v1414
        %1582 = vmatprep.subr.bf16.mxu0 %v1410
        %1583 = vmatpush2.bf16.msra.mxu0 %v1409
        %1584 = vmatprep.mubr.bf16.mxu0 %v1468
        %1585 = vmatmul.mubr.bf16.gmra.mxu0 %v1004
        %v1586 = vpop.f32.mrf.mxu0
        %v1587 = vadd.f32 0.0, %v1586
        %v1588 = vpop.f32.mrf.mxu0
        %v1589 = vadd.f32 0.0, %v1588
        %v1590 = vpop.f32.mrf.mxu0
        %v1591 = vadd.f32 0.0, %v1590
        %v1592 = vpop.f32.mrf.mxu0
        %v1593 = vadd.f32 0.0, %v1592
        %1594 = vmatprep.mubr.bf16.mxu0 %v1471
        %1595 = vmatmul.mubr.bf16.gmra.mxu0 %v1070
        %v1596 = vpop.f32.mrf.mxu0
        %v1597 = vadd.f32 0.0, %v1596
        %v1598 = vpop.f32.mrf.mxu0
        %v1599 = vadd.f32 0.0, %v1598
        %v1600 = vpop.f32.mrf.mxu0
        %v1601 = vadd.f32 0.0, %v1600
        %v1602 = vpop.f32.mrf.mxu0
        %v1603 = vadd.f32 0.0, %v1602
        %1604 = vmatprep.mubr.bf16.mxu0 %v1474
        %1605 = vmatmul.mubr.bf16.gmra.mxu0 %v1136
        %v1606 = vpop.f32.mrf.mxu0
        %v1607 = vadd.f32 0.0, %v1606
        %v1608 = vpop.f32.mrf.mxu0
        %v1609 = vadd.f32 0.0, %v1608
        %v1610 = vpop.f32.mrf.mxu0
        %v1611 = vadd.f32 0.0, %v1610
        %v1612 = vpop.f32.mrf.mxu0
        %v1613 = vadd.f32 0.0, %v1612
        %1614 = vmatprep.mubr.bf16.mxu0 %v1477
        %1615 = vmatmul.mubr.bf16.gmra.mxu0 %v1201
        %v1616 = vpop.f32.mrf.mxu0
        %v1617 = vadd.f32 0.0, %v1616
        %v1618 = vpop.f32.mrf.mxu0
        %v1619 = vadd.f32 0.0, %v1618
        %v1620 = vpop.f32.mrf.mxu0
        %v1621 = vadd.f32 0.0, %v1620
        %v1622 = vpop.f32.mrf.mxu0
        %v1623 = vadd.f32 0.0, %v1622
        %1624 = vdwg.mxu0
        %1625 = vmatprep.subr.bf16.mxu0 0
        %1626 = vmatpush1.bf16.msra.mxu0 %v1406
        %1627 = vmatprep.subr.bf16.mxu0 0
        %1628 = vmatpush1.bf16.msra.mxu0 %v1401
        %1629 = vmatprep.subr.bf16.mxu0 0
        %1630 = vmatpush1.bf16.msra.mxu0 %v1396
        %1631 = vmatprep.subr.bf16.mxu0 0
        %1632 = vmatpush1.bf16.msra.mxu0 %v1391
        %1633 = vmatprep.subr.bf16.mxu0 0
        %1634 = vmatpush1.bf16.msra.mxu0 %v1386
        %1635 = vmatprep.subr.bf16.mxu0 0
        %1636 = vmatpush1.bf16.msra.mxu0 %v1381
        %1637 = vmatprep.subr.bf16.mxu0 0
        %1638 = vmatpush1.bf16.msra.mxu0 %v1376
        %1639 = vmatprep.subr.bf16.mxu0 0
        %1640 = vmatpush1.bf16.msra.mxu0 %v1371
        %1641 = vmatprep.subr.bf16.mxu0 0
        %1642 = vmatpush2.bf16.msra.mxu0 0
        %1643 = vmatprep.subr.bf16.mxu0 0
        %1644 = vmatpush2.bf16.msra.mxu0 0
        %1645 = vmatprep.subr.bf16.mxu0 0
        %1646 = vmatpush2.bf16.msra.mxu0 0
        %1647 = vmatprep.subr.bf16.mxu0 0
        %1648 = vmatpush2.bf16.msra.mxu0 0
        %1649 = vmatprep.subr.bf16.mxu0 0
        %1650 = vmatpush2.bf16.msra.mxu0 0
        %1651 = vmatprep.subr.bf16.mxu0 0
        %1652 = vmatpush2.bf16.msra.mxu0 0
        %1653 = vmatprep.subr.bf16.mxu0 0
        %1654 = vmatpush2.bf16.msra.mxu0 %v1416
        %1655 = vmatprep.subr.bf16.mxu0 0
        %1656 = vmatpush2.bf16.msra.mxu0 %v1411
        %1657 = vmatprep.mubr.bf16.mxu0 %v1468
        %1658 = vmatmul.mubr.bf16.gmra.mxu0 %v1004
        %v1659 = vpop.f32.mrf.mxu0
        %v1660 = vadd.f32 0.0, %v1659
        %v1661 = vpop.f32.mrf.mxu0
        %v1662 = vpop.f32.mrf.mxu0
        %v1663 = vadd.f32 0.0, %v1662
        %v1664 = vpop.f32.mrf.mxu0
        %1665 = vmatprep.mubr.bf16.mxu0 %v1471
        %1666 = vmatmul.mubr.bf16.gmra.mxu0 %v1070
        %v1667 = vpop.f32.mrf.mxu0
        %v1668 = vadd.f32 0.0, %v1667
        %v1669 = vpop.f32.mrf.mxu0
        %v1670 = vpop.f32.mrf.mxu0
        %v1671 = vadd.f32 0.0, %v1670
        %v1672 = vpop.f32.mrf.mxu0
        %1673 = vmatprep.mubr.bf16.mxu0 %v1474
        %1674 = vmatmul.mubr.bf16.gmra.mxu0 %v1136
        %v1675 = vpop.f32.mrf.mxu0
        %v1676 = vadd.f32 0.0, %v1675
        %v1677 = vpop.f32.mrf.mxu0
        %v1678 = vpop.f32.mrf.mxu0
        %v1679 = vadd.f32 0.0, %v1678
        %v1680 = vpop.f32.mrf.mxu0
        %1681 = vmatprep.mubr.bf16.mxu0 %v1477
        %1682 = vmatmul.mubr.bf16.gmra.mxu0 %v1201
        %v1683 = vpop.f32.mrf.mxu0
        %v1684 = vadd.f32 0.0, %v1683
        %v1685 = vpop.f32.mrf.mxu0
        %v1686 = vpop.f32.mrf.mxu0
        %v1687 = vadd.f32 0.0, %v1686
        %v1688 = vpop.f32.mrf.mxu0
        %1689 = vdwg.mxu0
        %v1730 = vcombine.low %v1514, %v1516
        %v1731 = vcombine.high %v1514, %v1516
        %v1732 = vcombine.low %v1587, %v1589
        %v1733 = vcombine.high %v1587, %v1589
        %v1734 = vcombine.high %v1660, %v1660
        %v1736 = vunpack.c.l.s4 1966171168
        %v1737 = vunpack.c.0.s8 %v1736
        %v1738 = vlaneseq
        %v1739 = vshrl.u32 %v1738, 7
        %v1740 = vsub.s32 %v1737, %v1739
        %v1741 = vrot.slane %v1730, %v1740
        %v1743 = vunpack.c.l.s4 1966171168
        %v1744 = vunpack.c.0.s8 %v1743
        %v1745 = vlaneseq
        %v1746 = vshrl.u32 %v1745, 7
        %v1747 = vsub.s32 %v1744, %v1746
        %v1748 = vrot.slane %v1731, %v1747
        %v1750 = vunpack.c.l.s4 1966171168
        %v1751 = vunpack.c.0.s8 %v1750
        %v1752 = vlaneseq
        %v1753 = vshrl.u32 %v1752, 7
        %v1754 = vsub.s32 %v1751, %v1753
        %v1755 = vrot.slane %v1732, %v1754
        %v1757 = vunpack.c.l.s4 1966171168
        %v1758 = vunpack.c.0.s8 %v1757
        %v1759 = vlaneseq
        %v1760 = vshrl.u32 %v1759, 7
        %v1761 = vsub.s32 %v1758, %v1760
        %v1762 = vrot.slane %v1733, %v1761
        %v1764 = vunpack.c.l.s4 1966171168
        %v1765 = vunpack.c.0.s8 %v1764
        %v1766 = vlaneseq
        %v1767 = vshrl.u32 %v1766, 7
        %v1768 = vsub.s32 %v1765, %v1767
        %v1769 = vrot.slane %v1660, %v1768
        %v1771 = vunpack.c.l.s4 1966171168
        %v1772 = vunpack.c.0.s8 %v1771
        %v1773 = vlaneseq
        %v1774 = vshrl.u32 %v1773, 7
        %v1775 = vsub.s32 %v1772, %v1774
        %v1776 = vrot.slane %v1734, %v1775
        %v1777 = vcombine.low %v1741, %v1755
        %v1778 = vcombine.high %v1741, %v1755
        %v1779 = vcombine.low %v1748, %v1762
        %v1780 = vcombine.high %v1748, %v1762
        %v1781 = vcombine.high %v1769, %v1769
        %v1782 = vcombine.high %v1776, %v1776
        %v1784 = vunpack.c.l.s4 1966171168
        %v1785 = vunpack.c.0.s8 %v1784
        %v1786 = vlaneseq
        %v1787 = vshrl.u32 %v1786, 7
        %v1788 = vsub.s32 %v1785, %v1787
        %v1789 = vrot.slane %v1777, %v1788
        %v1791 = vunpack.c.l.s4 1966171168
        %v1792 = vunpack.c.0.s8 %v1791
        %v1793 = vlaneseq
        %v1794 = vshrl.u32 %v1793, 7
        %v1795 = vsub.s32 %v1792, %v1794
        %v1796 = vrot.slane %v1779, %v1795
        %v1798 = vunpack.c.l.s4 1966171168
        %v1799 = vunpack.c.0.s8 %v1798
        %v1800 = vlaneseq
        %v1801 = vshrl.u32 %v1800, 7
        %v1802 = vsub.s32 %v1799, %v1801
        %v1803 = vrot.slane %v1778, %v1802
        %v1805 = vunpack.c.l.s4 1966171168
        %v1806 = vunpack.c.0.s8 %v1805
        %v1807 = vlaneseq
        %v1808 = vshrl.u32 %v1807, 7
        %v1809 = vsub.s32 %v1806, %v1808
        %v1810 = vrot.slane %v1780, %v1809
        %v1812 = vunpack.c.l.s4 1966171168
        %v1813 = vunpack.c.0.s8 %v1812
        %v1814 = vlaneseq
        %v1815 = vshrl.u32 %v1814, 7
        %v1816 = vsub.s32 %v1813, %v1815
        %v1817 = vrot.slane %v1769, %v1816
        %v1819 = vunpack.c.l.s4 1966171168
        %v1820 = vunpack.c.0.s8 %v1819
        %v1821 = vlaneseq
        %v1822 = vshrl.u32 %v1821, 7
        %v1823 = vsub.s32 %v1820, %v1822
        %v1824 = vrot.slane %v1776, %v1823
        %v1826 = vunpack.c.l.s4 1966171168
        %v1827 = vunpack.c.0.s8 %v1826
        %v1828 = vlaneseq
        %v1829 = vshrl.u32 %v1828, 7
        %v1830 = vsub.s32 %v1827, %v1829
        %v1831 = vrot.slane %v1781, %v1830
        %v1833 = vunpack.c.l.s4 1966171168
        %v1834 = vunpack.c.0.s8 %v1833
        %v1835 = vlaneseq
        %v1836 = vshrl.u32 %v1835, 7
        %v1837 = vsub.s32 %v1834, %v1836
        %v1838 = vrot.slane %v1782, %v1837
        %v1839 = vcombine.low %v1789, %v1817
        %v1840 = vcombine.high %v1789, %v1817
        %v1841 = vcombine.low %v1796, %v1824
        %v1842 = vcombine.high %v1796, %v1824
        %v1843 = vcombine.low %v1803, %v1831
        %v1844 = vcombine.high %v1803, %v1831
        %v1845 = vcombine.low %v1810, %v1838
        %v1846 = vcombine.high %v1810, %v1838
        %v1847 = vcombine.low %v1518, %v1520
        %v1848 = vcombine.high %v1518, %v1520
        %v1849 = vcombine.low %v1591, %v1593
        %v1850 = vcombine.high %v1591, %v1593
        %v1851 = vcombine.high %v1663, %v1663
        %v1853 = vunpack.c.l.s4 1966171168
        %v1854 = vunpack.c.0.s8 %v1853
        %v1855 = vlaneseq
        %v1856 = vshrl.u32 %v1855, 7
        %v1857 = vsub.s32 %v1854, %v1856
        %v1858 = vrot.slane %v1847, %v1857
        %v1860 = vunpack.c.l.s4 1966171168
        %v1861 = vunpack.c.0.s8 %v1860
        %v1862 = vlaneseq
        %v1863 = vshrl.u32 %v1862, 7
        %v1864 = vsub.s32 %v1861, %v1863
        %v1865 = vrot.slane %v1848, %v1864
        %v1867 = vunpack.c.l.s4 1966171168
        %v1868 = vunpack.c.0.s8 %v1867
        %v1869 = vlaneseq
        %v1870 = vshrl.u32 %v1869, 7
        %v1871 = vsub.s32 %v1868, %v1870
        %v1872 = vrot.slane %v1849, %v1871
        %v1874 = vunpack.c.l.s4 1966171168
        %v1875 = vunpack.c.0.s8 %v1874
        %v1876 = vlaneseq
        %v1877 = vshrl.u32 %v1876, 7
        %v1878 = vsub.s32 %v1875, %v1877
        %v1879 = vrot.slane %v1850, %v1878
        %v1881 = vunpack.c.l.s4 1966171168
        %v1882 = vunpack.c.0.s8 %v1881
        %v1883 = vlaneseq
        %v1884 = vshrl.u32 %v1883, 7
        %v1885 = vsub.s32 %v1882, %v1884
        %v1886 = vrot.slane %v1663, %v1885
        %v1888 = vunpack.c.l.s4 1966171168
        %v1889 = vunpack.c.0.s8 %v1888
        %v1890 = vlaneseq
        %v1891 = vshrl.u32 %v1890, 7
        %v1892 = vsub.s32 %v1889, %v1891
        %v1893 = vrot.slane %v1851, %v1892
        %v1894 = vcombine.low %v1858, %v1872
        %v1895 = vcombine.high %v1858, %v1872
        %v1896 = vcombine.low %v1865, %v1879
        %v1897 = vcombine.high %v1865, %v1879
        %v1898 = vcombine.high %v1886, %v1886
        %v1899 = vcombine.high %v1893, %v1893
        %v1901 = vunpack.c.l.s4 1966171168
        %v1902 = vunpack.c.0.s8 %v1901
        %v1903 = vlaneseq
        %v1904 = vshrl.u32 %v1903, 7
        %v1905 = vsub.s32 %v1902, %v1904
        %v1906 = vrot.slane %v1894, %v1905
        %v1908 = vunpack.c.l.s4 1966171168
        %v1909 = vunpack.c.0.s8 %v1908
        %v1910 = vlaneseq
        %v1911 = vshrl.u32 %v1910, 7
        %v1912 = vsub.s32 %v1909, %v1911
        %v1913 = vrot.slane %v1896, %v1912
        %v1915 = vunpack.c.l.s4 1966171168
        %v1916 = vunpack.c.0.s8 %v1915
        %v1917 = vlaneseq
        %v1918 = vshrl.u32 %v1917, 7
        %v1919 = vsub.s32 %v1916, %v1918
        %v1920 = vrot.slane %v1895, %v1919
        %v1922 = vunpack.c.l.s4 1966171168
        %v1923 = vunpack.c.0.s8 %v1922
        %v1924 = vlaneseq
        %v1925 = vshrl.u32 %v1924, 7
        %v1926 = vsub.s32 %v1923, %v1925
        %v1927 = vrot.slane %v1897, %v1926
        %v1929 = vunpack.c.l.s4 1966171168
        %v1930 = vunpack.c.0.s8 %v1929
        %v1931 = vlaneseq
        %v1932 = vshrl.u32 %v1931, 7
        %v1933 = vsub.s32 %v1930, %v1932
        %v1934 = vrot.slane %v1886, %v1933
        %v1936 = vunpack.c.l.s4 1966171168
        %v1937 = vunpack.c.0.s8 %v1936
        %v1938 = vlaneseq
        %v1939 = vshrl.u32 %v1938, 7
        %v1940 = vsub.s32 %v1937, %v1939
        %v1941 = vrot.slane %v1893, %v1940
        %v1943 = vunpack.c.l.s4 1966171168
        %v1944 = vunpack.c.0.s8 %v1943
        %v1945 = vlaneseq
        %v1946 = vshrl.u32 %v1945, 7
        %v1947 = vsub.s32 %v1944, %v1946
        %v1948 = vrot.slane %v1898, %v1947
        %v1950 = vunpack.c.l.s4 1966171168
        %v1951 = vunpack.c.0.s8 %v1950
        %v1952 = vlaneseq
        %v1953 = vshrl.u32 %v1952, 7
        %v1954 = vsub.s32 %v1951, %v1953
        %v1955 = vrot.slane %v1899, %v1954
        %v1956 = vcombine.low %v1906, %v1934
        %v1957 = vcombine.high %v1906, %v1934
        %v1958 = vcombine.low %v1913, %v1941
        %v1959 = vcombine.high %v1913, %v1941
        %v1960 = vcombine.low %v1920, %v1948
        %v1961 = vcombine.high %v1920, %v1948
        %v1962 = vcombine.low %v1927, %v1955
        %v1963 = vcombine.high %v1927, %v1955
        %v1964 = vcombine.low %v1524, %v1526
        %v1965 = vcombine.high %v1524, %v1526
        %v1966 = vcombine.low %v1597, %v1599
        %v1967 = vcombine.high %v1597, %v1599
        %v1968 = vcombine.high %v1668, %v1668
        %v1970 = vunpack.c.l.s4 1966171168
        %v1971 = vunpack.c.0.s8 %v1970
        %v1972 = vlaneseq
        %v1973 = vshrl.u32 %v1972, 7
        %v1974 = vsub.s32 %v1971, %v1973
        %v1975 = vrot.slane %v1964, %v1974
        %v1977 = vunpack.c.l.s4 1966171168
        %v1978 = vunpack.c.0.s8 %v1977
        %v1979 = vlaneseq
        %v1980 = vshrl.u32 %v1979, 7
        %v1981 = vsub.s32 %v1978, %v1980
        %v1982 = vrot.slane %v1965, %v1981
        %v1984 = vunpack.c.l.s4 1966171168
        %v1985 = vunpack.c.0.s8 %v1984
        %v1986 = vlaneseq
        %v1987 = vshrl.u32 %v1986, 7
        %v1988 = vsub.s32 %v1985, %v1987
        %v1989 = vrot.slane %v1966, %v1988
        %v1991 = vunpack.c.l.s4 1966171168
        %v1992 = vunpack.c.0.s8 %v1991
        %v1993 = vlaneseq
        %v1994 = vshrl.u32 %v1993, 7
        %v1995 = vsub.s32 %v1992, %v1994
        %v1996 = vrot.slane %v1967, %v1995
        %v1998 = vunpack.c.l.s4 1966171168
        %v1999 = vunpack.c.0.s8 %v1998
        %v2000 = vlaneseq
        %v2001 = vshrl.u32 %v2000, 7
        %v2002 = vsub.s32 %v1999, %v2001
        %v2003 = vrot.slane %v1668, %v2002
        %v2005 = vunpack.c.l.s4 1966171168
        %v2006 = vunpack.c.0.s8 %v2005
        %v2007 = vlaneseq
        %v2008 = vshrl.u32 %v2007, 7
        %v2009 = vsub.s32 %v2006, %v2008
        %v2010 = vrot.slane %v1968, %v2009
        %v2011 = vcombine.low %v1975, %v1989
        %v2012 = vcombine.high %v1975, %v1989
        %v2013 = vcombine.low %v1982, %v1996
        %v2014 = vcombine.high %v1982, %v1996
        %v2015 = vcombine.high %v2003, %v2003
        %v2016 = vcombine.high %v2010, %v2010
        %v2018 = vunpack.c.l.s4 1966171168
        %v2019 = vunpack.c.0.s8 %v2018
        %v2020 = vlaneseq
        %v2021 = vshrl.u32 %v2020, 7
        %v2022 = vsub.s32 %v2019, %v2021
        %v2023 = vrot.slane %v2011, %v2022
        %v2025 = vunpack.c.l.s4 1966171168
        %v2026 = vunpack.c.0.s8 %v2025
        %v2027 = vlaneseq
        %v2028 = vshrl.u32 %v2027, 7
        %v2029 = vsub.s32 %v2026, %v2028
        %v2030 = vrot.slane %v2013, %v2029
        %v2032 = vunpack.c.l.s4 1966171168
        %v2033 = vunpack.c.0.s8 %v2032
        %v2034 = vlaneseq
        %v2035 = vshrl.u32 %v2034, 7
        %v2036 = vsub.s32 %v2033, %v2035
        %v2037 = vrot.slane %v2012, %v2036
        %v2039 = vunpack.c.l.s4 1966171168
        %v2040 = vunpack.c.0.s8 %v2039
        %v2041 = vlaneseq
        %v2042 = vshrl.u32 %v2041, 7
        %v2043 = vsub.s32 %v2040, %v2042
        %v2044 = vrot.slane %v2014, %v2043
        %v2046 = vunpack.c.l.s4 1966171168
        %v2047 = vunpack.c.0.s8 %v2046
        %v2048 = vlaneseq
        %v2049 = vshrl.u32 %v2048, 7
        %v2050 = vsub.s32 %v2047, %v2049
        %v2051 = vrot.slane %v2003, %v2050
        %v2053 = vunpack.c.l.s4 1966171168
        %v2054 = vunpack.c.0.s8 %v2053
        %v2055 = vlaneseq
        %v2056 = vshrl.u32 %v2055, 7
        %v2057 = vsub.s32 %v2054, %v2056
        %v2058 = vrot.slane %v2010, %v2057
        %v2060 = vunpack.c.l.s4 1966171168
        %v2061 = vunpack.c.0.s8 %v2060
        %v2062 = vlaneseq
        %v2063 = vshrl.u32 %v2062, 7
        %v2064 = vsub.s32 %v2061, %v2063
        %v2065 = vrot.slane %v2015, %v2064
        %v2067 = vunpack.c.l.s4 1966171168
        %v2068 = vunpack.c.0.s8 %v2067
        %v2069 = vlaneseq
        %v2070 = vshrl.u32 %v2069, 7
        %v2071 = vsub.s32 %v2068, %v2070
        %v2072 = vrot.slane %v2016, %v2071
        %v2073 = vcombine.low %v2023, %v2051
        %v2074 = vcombine.high %v2023, %v2051
        %v2075 = vcombine.low %v2030, %v2058
        %v2076 = vcombine.high %v2030, %v2058
        %v2077 = vcombine.low %v2037, %v2065
        %v2078 = vcombine.high %v2037, %v2065
        %v2079 = vcombine.low %v2044, %v2072
        %v2080 = vcombine.high %v2044, %v2072
        %v2081 = vcombine.low %v1528, %v1530
        %v2082 = vcombine.high %v1528, %v1530
        %v2083 = vcombine.low %v1601, %v1603
        %v2084 = vcombine.high %v1601, %v1603
        %v2085 = vcombine.high %v1671, %v1671
        %v2087 = vunpack.c.l.s4 1966171168
        %v2088 = vunpack.c.0.s8 %v2087
        %v2089 = vlaneseq
        %v2090 = vshrl.u32 %v2089, 7
        %v2091 = vsub.s32 %v2088, %v2090
        %v2092 = vrot.slane %v2081, %v2091
        %v2094 = vunpack.c.l.s4 1966171168
        %v2095 = vunpack.c.0.s8 %v2094
        %v2096 = vlaneseq
        %v2097 = vshrl.u32 %v2096, 7
        %v2098 = vsub.s32 %v2095, %v2097
        %v2099 = vrot.slane %v2082, %v2098
        %v2101 = vunpack.c.l.s4 1966171168
        %v2102 = vunpack.c.0.s8 %v2101
        %v2103 = vlaneseq
        %v2104 = vshrl.u32 %v2103, 7
        %v2105 = vsub.s32 %v2102, %v2104
        %v2106 = vrot.slane %v2083, %v2105
        %v2108 = vunpack.c.l.s4 1966171168
        %v2109 = vunpack.c.0.s8 %v2108
        %v2110 = vlaneseq
        %v2111 = vshrl.u32 %v2110, 7
        %v2112 = vsub.s32 %v2109, %v2111
        %v2113 = vrot.slane %v2084, %v2112
        %v2115 = vunpack.c.l.s4 1966171168
        %v2116 = vunpack.c.0.s8 %v2115
        %v2117 = vlaneseq
        %v2118 = vshrl.u32 %v2117, 7
        %v2119 = vsub.s32 %v2116, %v2118
        %v2120 = vrot.slane %v1671, %v2119
        %v2122 = vunpack.c.l.s4 1966171168
        %v2123 = vunpack.c.0.s8 %v2122
        %v2124 = vlaneseq
        %v2125 = vshrl.u32 %v2124, 7
        %v2126 = vsub.s32 %v2123, %v2125
        %v2127 = vrot.slane %v2085, %v2126
        %v2128 = vcombine.low %v2092, %v2106
        %v2129 = vcombine.high %v2092, %v2106
        %v2130 = vcombine.low %v2099, %v2113
        %v2131 = vcombine.high %v2099, %v2113
        %v2132 = vcombine.high %v2120, %v2120
        %v2133 = vcombine.high %v2127, %v2127
        %v2135 = vunpack.c.l.s4 1966171168
        %v2136 = vunpack.c.0.s8 %v2135
        %v2137 = vlaneseq
        %v2138 = vshrl.u32 %v2137, 7
        %v2139 = vsub.s32 %v2136, %v2138
        %v2140 = vrot.slane %v2128, %v2139
        %v2142 = vunpack.c.l.s4 1966171168
        %v2143 = vunpack.c.0.s8 %v2142
        %v2144 = vlaneseq
        %v2145 = vshrl.u32 %v2144, 7
        %v2146 = vsub.s32 %v2143, %v2145
        %v2147 = vrot.slane %v2130, %v2146
        %v2149 = vunpack.c.l.s4 1966171168
        %v2150 = vunpack.c.0.s8 %v2149
        %v2151 = vlaneseq
        %v2152 = vshrl.u32 %v2151, 7
        %v2153 = vsub.s32 %v2150, %v2152
        %v2154 = vrot.slane %v2129, %v2153
        %v2156 = vunpack.c.l.s4 1966171168
        %v2157 = vunpack.c.0.s8 %v2156
        %v2158 = vlaneseq
        %v2159 = vshrl.u32 %v2158, 7
        %v2160 = vsub.s32 %v2157, %v2159
        %v2161 = vrot.slane %v2131, %v2160
        %v2163 = vunpack.c.l.s4 1966171168
        %v2164 = vunpack.c.0.s8 %v2163
        %v2165 = vlaneseq
        %v2166 = vshrl.u32 %v2165, 7
        %v2167 = vsub.s32 %v2164, %v2166
        %v2168 = vrot.slane %v2120, %v2167
        %v2170 = vunpack.c.l.s4 1966171168
        %v2171 = vunpack.c.0.s8 %v2170
        %v2172 = vlaneseq
        %v2173 = vshrl.u32 %v2172, 7
        %v2174 = vsub.s32 %v2171, %v2173
        %v2175 = vrot.slane %v2127, %v2174
        %v2177 = vunpack.c.l.s4 1966171168
        %v2178 = vunpack.c.0.s8 %v2177
        %v2179 = vlaneseq
        %v2180 = vshrl.u32 %v2179, 7
        %v2181 = vsub.s32 %v2178, %v2180
        %v2182 = vrot.slane %v2132, %v2181
        %v2184 = vunpack.c.l.s4 1966171168
        %v2185 = vunpack.c.0.s8 %v2184
        %v2186 = vlaneseq
        %v2187 = vshrl.u32 %v2186, 7
        %v2188 = vsub.s32 %v2185, %v2187
        %v2189 = vrot.slane %v2133, %v2188
        %v2190 = vcombine.low %v2140, %v2168
        %v2191 = vcombine.high %v2140, %v2168
        %v2192 = vcombine.low %v2147, %v2175
        %v2193 = vcombine.high %v2147, %v2175
        %v2194 = vcombine.low %v2154, %v2182
        %v2195 = vcombine.high %v2154, %v2182
        %v2196 = vcombine.low %v2161, %v2189
        %v2197 = vcombine.high %v2161, %v2189
        %v2198 = vcombine.low %v1534, %v1536
        %v2199 = vcombine.high %v1534, %v1536
        %v2200 = vcombine.low %v1607, %v1609
        %v2201 = vcombine.high %v1607, %v1609
        %v2202 = vcombine.high %v1676, %v1676
        %v2204 = vunpack.c.l.s4 1966171168
        %v2205 = vunpack.c.0.s8 %v2204
        %v2206 = vlaneseq
        %v2207 = vshrl.u32 %v2206, 7
        %v2208 = vsub.s32 %v2205, %v2207
        %v2209 = vrot.slane %v2198, %v2208
        %v2211 = vunpack.c.l.s4 1966171168
        %v2212 = vunpack.c.0.s8 %v2211
        %v2213 = vlaneseq
        %v2214 = vshrl.u32 %v2213, 7
        %v2215 = vsub.s32 %v2212, %v2214
        %v2216 = vrot.slane %v2199, %v2215
        %v2218 = vunpack.c.l.s4 1966171168
        %v2219 = vunpack.c.0.s8 %v2218
        %v2220 = vlaneseq
        %v2221 = vshrl.u32 %v2220, 7
        %v2222 = vsub.s32 %v2219, %v2221
        %v2223 = vrot.slane %v2200, %v2222
        %v2225 = vunpack.c.l.s4 1966171168
        %v2226 = vunpack.c.0.s8 %v2225
        %v2227 = vlaneseq
        %v2228 = vshrl.u32 %v2227, 7
        %v2229 = vsub.s32 %v2226, %v2228
        %v2230 = vrot.slane %v2201, %v2229
        %v2232 = vunpack.c.l.s4 1966171168
        %v2233 = vunpack.c.0.s8 %v2232
        %v2234 = vlaneseq
        %v2235 = vshrl.u32 %v2234, 7
        %v2236 = vsub.s32 %v2233, %v2235
        %v2237 = vrot.slane %v1676, %v2236
        %v2239 = vunpack.c.l.s4 1966171168
        %v2240 = vunpack.c.0.s8 %v2239
        %v2241 = vlaneseq
        %v2242 = vshrl.u32 %v2241, 7
        %v2243 = vsub.s32 %v2240, %v2242
        %v2244 = vrot.slane %v2202, %v2243
        %v2245 = vcombine.low %v2209, %v2223
        %v2246 = vcombine.high %v2209, %v2223
        %v2247 = vcombine.low %v2216, %v2230
        %v2248 = vcombine.high %v2216, %v2230
        %v2249 = vcombine.high %v2237, %v2237
        %v2250 = vcombine.high %v2244, %v2244
        %v2252 = vunpack.c.l.s4 1966171168
        %v2253 = vunpack.c.0.s8 %v2252
        %v2254 = vlaneseq
        %v2255 = vshrl.u32 %v2254, 7
        %v2256 = vsub.s32 %v2253, %v2255
        %v2257 = vrot.slane %v2245, %v2256
        %v2259 = vunpack.c.l.s4 1966171168
        %v2260 = vunpack.c.0.s8 %v2259
        %v2261 = vlaneseq
        %v2262 = vshrl.u32 %v2261, 7
        %v2263 = vsub.s32 %v2260, %v2262
        %v2264 = vrot.slane %v2247, %v2263
        %v2266 = vunpack.c.l.s4 1966171168
        %v2267 = vunpack.c.0.s8 %v2266
        %v2268 = vlaneseq
        %v2269 = vshrl.u32 %v2268, 7
        %v2270 = vsub.s32 %v2267, %v2269
        %v2271 = vrot.slane %v2246, %v2270
        %v2273 = vunpack.c.l.s4 1966171168
        %v2274 = vunpack.c.0.s8 %v2273
        %v2275 = vlaneseq
        %v2276 = vshrl.u32 %v2275, 7
        %v2277 = vsub.s32 %v2274, %v2276
        %v2278 = vrot.slane %v2248, %v2277
        %v2280 = vunpack.c.l.s4 1966171168
        %v2281 = vunpack.c.0.s8 %v2280
        %v2282 = vlaneseq
        %v2283 = vshrl.u32 %v2282, 7
        %v2284 = vsub.s32 %v2281, %v2283
        %v2285 = vrot.slane %v2237, %v2284
        %v2287 = vunpack.c.l.s4 1966171168
        %v2288 = vunpack.c.0.s8 %v2287
        %v2289 = vlaneseq
        %v2290 = vshrl.u32 %v2289, 7
        %v2291 = vsub.s32 %v2288, %v2290
        %v2292 = vrot.slane %v2244, %v2291
        %v2294 = vunpack.c.l.s4 1966171168
        %v2295 = vunpack.c.0.s8 %v2294
        %v2296 = vlaneseq
        %v2297 = vshrl.u32 %v2296, 7
        %v2298 = vsub.s32 %v2295, %v2297
        %v2299 = vrot.slane %v2249, %v2298
        %v2301 = vunpack.c.l.s4 1966171168
        %v2302 = vunpack.c.0.s8 %v2301
        %v2303 = vlaneseq
        %v2304 = vshrl.u32 %v2303, 7
        %v2305 = vsub.s32 %v2302, %v2304
        %v2306 = vrot.slane %v2250, %v2305
        %v2307 = vcombine.low %v2257, %v2285
        %v2308 = vcombine.high %v2257, %v2285
        %v2309 = vcombine.low %v2264, %v2292
        %v2310 = vcombine.high %v2264, %v2292
        %v2311 = vcombine.low %v2271, %v2299
        %v2312 = vcombine.high %v2271, %v2299
        %v2313 = vcombine.low %v2278, %v2306
        %v2314 = vcombine.high %v2278, %v2306
        %v2315 = vcombine.low %v1538, %v1540
        %v2316 = vcombine.high %v1538, %v1540
        %v2317 = vcombine.low %v1611, %v1613
        %v2318 = vcombine.high %v1611, %v1613
        %v2319 = vcombine.high %v1679, %v1679
        %v2321 = vunpack.c.l.s4 1966171168
        %v2322 = vunpack.c.0.s8 %v2321
        %v2323 = vlaneseq
        %v2324 = vshrl.u32 %v2323, 7
        %v2325 = vsub.s32 %v2322, %v2324
        %v2326 = vrot.slane %v2315, %v2325
        %v2328 = vunpack.c.l.s4 1966171168
        %v2329 = vunpack.c.0.s8 %v2328
        %v2330 = vlaneseq
        %v2331 = vshrl.u32 %v2330, 7
        %v2332 = vsub.s32 %v2329, %v2331
        %v2333 = vrot.slane %v2316, %v2332
        %v2335 = vunpack.c.l.s4 1966171168
        %v2336 = vunpack.c.0.s8 %v2335
        %v2337 = vlaneseq
        %v2338 = vshrl.u32 %v2337, 7
        %v2339 = vsub.s32 %v2336, %v2338
        %v2340 = vrot.slane %v2317, %v2339
        %v2342 = vunpack.c.l.s4 1966171168
        %v2343 = vunpack.c.0.s8 %v2342
        %v2344 = vlaneseq
        %v2345 = vshrl.u32 %v2344, 7
        %v2346 = vsub.s32 %v2343, %v2345
        %v2347 = vrot.slane %v2318, %v2346
        %v2349 = vunpack.c.l.s4 1966171168
        %v2350 = vunpack.c.0.s8 %v2349
        %v2351 = vlaneseq
        %v2352 = vshrl.u32 %v2351, 7
        %v2353 = vsub.s32 %v2350, %v2352
        %v2354 = vrot.slane %v1679, %v2353
        %v2356 = vunpack.c.l.s4 1966171168
        %v2357 = vunpack.c.0.s8 %v2356
        %v2358 = vlaneseq
        %v2359 = vshrl.u32 %v2358, 7
        %v2360 = vsub.s32 %v2357, %v2359
        %v2361 = vrot.slane %v2319, %v2360
        %v2362 = vcombine.low %v2326, %v2340
        %v2363 = vcombine.high %v2326, %v2340
        %v2364 = vcombine.low %v2333, %v2347
        %v2365 = vcombine.high %v2333, %v2347
        %v2366 = vcombine.high %v2354, %v2354
        %v2367 = vcombine.high %v2361, %v2361
        %v2369 = vunpack.c.l.s4 1966171168
        %v2370 = vunpack.c.0.s8 %v2369
        %v2371 = vlaneseq
        %v2372 = vshrl.u32 %v2371, 7
        %v2373 = vsub.s32 %v2370, %v2372
        %v2374 = vrot.slane %v2362, %v2373
        %v2376 = vunpack.c.l.s4 1966171168
        %v2377 = vunpack.c.0.s8 %v2376
        %v2378 = vlaneseq
        %v2379 = vshrl.u32 %v2378, 7
        %v2380 = vsub.s32 %v2377, %v2379
        %v2381 = vrot.slane %v2364, %v2380
        %v2383 = vunpack.c.l.s4 1966171168
        %v2384 = vunpack.c.0.s8 %v2383
        %v2385 = vlaneseq
        %v2386 = vshrl.u32 %v2385, 7
        %v2387 = vsub.s32 %v2384, %v2386
        %v2388 = vrot.slane %v2363, %v2387
        %v2390 = vunpack.c.l.s4 1966171168
        %v2391 = vunpack.c.0.s8 %v2390
        %v2392 = vlaneseq
        %v2393 = vshrl.u32 %v2392, 7
        %v2394 = vsub.s32 %v2391, %v2393
        %v2395 = vrot.slane %v2365, %v2394
        %v2397 = vunpack.c.l.s4 1966171168
        %v2398 = vunpack.c.0.s8 %v2397
        %v2399 = vlaneseq
        %v2400 = vshrl.u32 %v2399, 7
        %v2401 = vsub.s32 %v2398, %v2400
        %v2402 = vrot.slane %v2354, %v2401
        %v2404 = vunpack.c.l.s4 1966171168
        %v2405 = vunpack.c.0.s8 %v2404
        %v2406 = vlaneseq
        %v2407 = vshrl.u32 %v2406, 7
        %v2408 = vsub.s32 %v2405, %v2407
        %v2409 = vrot.slane %v2361, %v2408
        %v2411 = vunpack.c.l.s4 1966171168
        %v2412 = vunpack.c.0.s8 %v2411
        %v2413 = vlaneseq
        %v2414 = vshrl.u32 %v2413, 7
        %v2415 = vsub.s32 %v2412, %v2414
        %v2416 = vrot.slane %v2366, %v2415
        %v2418 = vunpack.c.l.s4 1966171168
        %v2419 = vunpack.c.0.s8 %v2418
        %v2420 = vlaneseq
        %v2421 = vshrl.u32 %v2420, 7
        %v2422 = vsub.s32 %v2419, %v2421
        %v2423 = vrot.slane %v2367, %v2422
        %v2424 = vcombine.low %v2374, %v2402
        %v2425 = vcombine.high %v2374, %v2402
        %v2426 = vcombine.low %v2381, %v2409
        %v2427 = vcombine.high %v2381, %v2409
        %v2428 = vcombine.low %v2388, %v2416
        %v2429 = vcombine.high %v2388, %v2416
        %v2430 = vcombine.low %v2395, %v2423
        %v2431 = vcombine.high %v2395, %v2423
        %v2432 = vcombine.low %v1544, %v1546
        %v2433 = vcombine.high %v1544, %v1546
        %v2434 = vcombine.low %v1617, %v1619
        %v2435 = vcombine.high %v1617, %v1619
        %v2436 = vcombine.high %v1684, %v1684
        %v2438 = vunpack.c.l.s4 1966171168
        %v2439 = vunpack.c.0.s8 %v2438
        %v2440 = vlaneseq
        %v2441 = vshrl.u32 %v2440, 7
        %v2442 = vsub.s32 %v2439, %v2441
        %v2443 = vrot.slane %v2432, %v2442
        %v2445 = vunpack.c.l.s4 1966171168
        %v2446 = vunpack.c.0.s8 %v2445
        %v2447 = vlaneseq
        %v2448 = vshrl.u32 %v2447, 7
        %v2449 = vsub.s32 %v2446, %v2448
        %v2450 = vrot.slane %v2433, %v2449
        %v2452 = vunpack.c.l.s4 1966171168
        %v2453 = vunpack.c.0.s8 %v2452
        %v2454 = vlaneseq
        %v2455 = vshrl.u32 %v2454, 7
        %v2456 = vsub.s32 %v2453, %v2455
        %v2457 = vrot.slane %v2434, %v2456
        %v2459 = vunpack.c.l.s4 1966171168
        %v2460 = vunpack.c.0.s8 %v2459
        %v2461 = vlaneseq
        %v2462 = vshrl.u32 %v2461, 7
        %v2463 = vsub.s32 %v2460, %v2462
        %v2464 = vrot.slane %v2435, %v2463
        %v2466 = vunpack.c.l.s4 1966171168
        %v2467 = vunpack.c.0.s8 %v2466
        %v2468 = vlaneseq
        %v2469 = vshrl.u32 %v2468, 7
        %v2470 = vsub.s32 %v2467, %v2469
        %v2471 = vrot.slane %v1684, %v2470
        %v2473 = vunpack.c.l.s4 1966171168
        %v2474 = vunpack.c.0.s8 %v2473
        %v2475 = vlaneseq
        %v2476 = vshrl.u32 %v2475, 7
        %v2477 = vsub.s32 %v2474, %v2476
        %v2478 = vrot.slane %v2436, %v2477
        %v2479 = vcombine.low %v2443, %v2457
        %v2480 = vcombine.high %v2443, %v2457
        %v2481 = vcombine.low %v2450, %v2464
        %v2482 = vcombine.high %v2450, %v2464
        %v2483 = vcombine.high %v2471, %v2471
        %v2484 = vcombine.high %v2478, %v2478
        %v2486 = vunpack.c.l.s4 1966171168
        %v2487 = vunpack.c.0.s8 %v2486
        %v2488 = vlaneseq
        %v2489 = vshrl.u32 %v2488, 7
        %v2490 = vsub.s32 %v2487, %v2489
        %v2491 = vrot.slane %v2479, %v2490
        %v2493 = vunpack.c.l.s4 1966171168
        %v2494 = vunpack.c.0.s8 %v2493
        %v2495 = vlaneseq
        %v2496 = vshrl.u32 %v2495, 7
        %v2497 = vsub.s32 %v2494, %v2496
        %v2498 = vrot.slane %v2481, %v2497
        %v2500 = vunpack.c.l.s4 1966171168
        %v2501 = vunpack.c.0.s8 %v2500
        %v2502 = vlaneseq
        %v2503 = vshrl.u32 %v2502, 7
        %v2504 = vsub.s32 %v2501, %v2503
        %v2505 = vrot.slane %v2480, %v2504
        %v2507 = vunpack.c.l.s4 1966171168
        %v2508 = vunpack.c.0.s8 %v2507
        %v2509 = vlaneseq
        %v2510 = vshrl.u32 %v2509, 7
        %v2511 = vsub.s32 %v2508, %v2510
        %v2512 = vrot.slane %v2482, %v2511
        %v2514 = vunpack.c.l.s4 1966171168
        %v2515 = vunpack.c.0.s8 %v2514
        %v2516 = vlaneseq
        %v2517 = vshrl.u32 %v2516, 7
        %v2518 = vsub.s32 %v2515, %v2517
        %v2519 = vrot.slane %v2471, %v2518
        %v2521 = vunpack.c.l.s4 1966171168
        %v2522 = vunpack.c.0.s8 %v2521
        %v2523 = vlaneseq
        %v2524 = vshrl.u32 %v2523, 7
        %v2525 = vsub.s32 %v2522, %v2524
        %v2526 = vrot.slane %v2478, %v2525
        %v2528 = vunpack.c.l.s4 1966171168
        %v2529 = vunpack.c.0.s8 %v2528
        %v2530 = vlaneseq
        %v2531 = vshrl.u32 %v2530, 7
        %v2532 = vsub.s32 %v2529, %v2531
        %v2533 = vrot.slane %v2483, %v2532
        %v2535 = vunpack.c.l.s4 1966171168
        %v2536 = vunpack.c.0.s8 %v2535
        %v2537 = vlaneseq
        %v2538 = vshrl.u32 %v2537, 7
        %v2539 = vsub.s32 %v2536, %v2538
        %v2540 = vrot.slane %v2484, %v2539
        %v2541 = vcombine.low %v2491, %v2519
        %v2542 = vcombine.high %v2491, %v2519
        %v2543 = vcombine.low %v2498, %v2526
        %v2544 = vcombine.high %v2498, %v2526
        %v2545 = vcombine.low %v2505, %v2533
        %v2546 = vcombine.high %v2505, %v2533
        %v2547 = vcombine.low %v2512, %v2540
        %v2548 = vcombine.high %v2512, %v2540
        %v2549 = vcombine.low %v1548, %v1550
        %v2550 = vcombine.high %v1548, %v1550
        %v2551 = vcombine.low %v1621, %v1623
        %v2552 = vcombine.high %v1621, %v1623
        %v2553 = vcombine.high %v1687, %v1687
        %v2555 = vunpack.c.l.s4 1966171168
        %v2556 = vunpack.c.0.s8 %v2555
        %v2557 = vlaneseq
        %v2558 = vshrl.u32 %v2557, 7
        %v2559 = vsub.s32 %v2556, %v2558
        %v2560 = vrot.slane %v2549, %v2559
        %v2562 = vunpack.c.l.s4 1966171168
        %v2563 = vunpack.c.0.s8 %v2562
        %v2564 = vlaneseq
        %v2565 = vshrl.u32 %v2564, 7
        %v2566 = vsub.s32 %v2563, %v2565
        %v2567 = vrot.slane %v2550, %v2566
        %v2569 = vunpack.c.l.s4 1966171168
        %v2570 = vunpack.c.0.s8 %v2569
        %v2571 = vlaneseq
        %v2572 = vshrl.u32 %v2571, 7
        %v2573 = vsub.s32 %v2570, %v2572
        %v2574 = vrot.slane %v2551, %v2573
        %v2576 = vunpack.c.l.s4 1966171168
        %v2577 = vunpack.c.0.s8 %v2576
        %v2578 = vlaneseq
        %v2579 = vshrl.u32 %v2578, 7
        %v2580 = vsub.s32 %v2577, %v2579
        %v2581 = vrot.slane %v2552, %v2580
        %v2583 = vunpack.c.l.s4 1966171168
        %v2584 = vunpack.c.0.s8 %v2583
        %v2585 = vlaneseq
        %v2586 = vshrl.u32 %v2585, 7
        %v2587 = vsub.s32 %v2584, %v2586
        %v2588 = vrot.slane %v1687, %v2587
        %v2590 = vunpack.c.l.s4 1966171168
        %v2591 = vunpack.c.0.s8 %v2590
        %v2592 = vlaneseq
        %v2593 = vshrl.u32 %v2592, 7
        %v2594 = vsub.s32 %v2591, %v2593
        %v2595 = vrot.slane %v2553, %v2594
        %v2596 = vcombine.low %v2560, %v2574
        %v2597 = vcombine.high %v2560, %v2574
        %v2598 = vcombine.low %v2567, %v2581
        %v2599 = vcombine.high %v2567, %v2581
        %v2600 = vcombine.high %v2588, %v2588
        %v2601 = vcombine.high %v2595, %v2595
        %v2603 = vunpack.c.l.s4 1966171168
        %v2604 = vunpack.c.0.s8 %v2603
        %v2605 = vlaneseq
        %v2606 = vshrl.u32 %v2605, 7
        %v2607 = vsub.s32 %v2604, %v2606
        %v2608 = vrot.slane %v2596, %v2607
        %v2610 = vunpack.c.l.s4 1966171168
        %v2611 = vunpack.c.0.s8 %v2610
        %v2612 = vlaneseq
        %v2613 = vshrl.u32 %v2612, 7
        %v2614 = vsub.s32 %v2611, %v2613
        %v2615 = vrot.slane %v2598, %v2614
        %v2617 = vunpack.c.l.s4 1966171168
        %v2618 = vunpack.c.0.s8 %v2617
        %v2619 = vlaneseq
        %v2620 = vshrl.u32 %v2619, 7
        %v2621 = vsub.s32 %v2618, %v2620
        %v2622 = vrot.slane %v2597, %v2621
        %v2624 = vunpack.c.l.s4 1966171168
        %v2625 = vunpack.c.0.s8 %v2624
        %v2626 = vlaneseq
        %v2627 = vshrl.u32 %v2626, 7
        %v2628 = vsub.s32 %v2625, %v2627
        %v2629 = vrot.slane %v2599, %v2628
        %v2631 = vunpack.c.l.s4 1966171168
        %v2632 = vunpack.c.0.s8 %v2631
        %v2633 = vlaneseq
        %v2634 = vshrl.u32 %v2633, 7
        %v2635 = vsub.s32 %v2632, %v2634
        %v2636 = vrot.slane %v2588, %v2635
        %v2638 = vunpack.c.l.s4 1966171168
        %v2639 = vunpack.c.0.s8 %v2638
        %v2640 = vlaneseq
        %v2641 = vshrl.u32 %v2640, 7
        %v2642 = vsub.s32 %v2639, %v2641
        %v2643 = vrot.slane %v2595, %v2642
        %v2645 = vunpack.c.l.s4 1966171168
        %v2646 = vunpack.c.0.s8 %v2645
        %v2647 = vlaneseq
        %v2648 = vshrl.u32 %v2647, 7
        %v2649 = vsub.s32 %v2646, %v2648
        %v2650 = vrot.slane %v2600, %v2649
        %v2652 = vunpack.c.l.s4 1966171168
        %v2653 = vunpack.c.0.s8 %v2652
        %v2654 = vlaneseq
        %v2655 = vshrl.u32 %v2654, 7
        %v2656 = vsub.s32 %v2653, %v2655
        %v2657 = vrot.slane %v2601, %v2656
        %v2658 = vcombine.low %v2608, %v2636
        %v2659 = vcombine.high %v2608, %v2636
        %v2660 = vcombine.low %v2615, %v2643
        %v2661 = vcombine.low %v2622, %v2650
        %v2662 = vcombine.high %v2622, %v2650
        %v2663 = vcombine.low %v2629, %v2657
        %v2726 = vld [vmem:[%s345] sm:$0xf]
        %v2727 = vld [vmem:[%s345 + $0x4] sm:$0xf]
        %v2728 = vld [vmem:[%s345 + $0x8] sm:$0xf]
        %v2729 = vld [vmem:[%s345 + $0xc] sm:$0xf]
        %v2730 = vld [vmem:[%s345 + $0x10] sm:$0xf]
        %v2731 = vld [vmem:[%s345 + $0x14] sm:$0xf]
        %v2732 = vld [vmem:[%s345 + $0x18] sm:$0xf]
        %v2733 = vld [vmem:[%s345 + $0x1c] sm:$0xf]
        %v2734 = vld [vmem:[%s345 + $0x20] sm:$0xf]
        %v2735 = vld [vmem:[%s345 + $0x24] sm:$0xf]
        %v2744 = vunpack.c.l.b16 %v2726
        %v2745 = vunpack.c.l.b16 %v2727
        %v2746 = vunpack.c.l.b16 %v2728
        %v2747 = vunpack.c.l.b16 %v2729
        %v2748 = vunpack.c.l.b16 %v2731
        %v2749 = vunpack.c.l.b16 %v2732
        %v2750 = vunpack.c.l.b16 %v2733
        %v2751 = vunpack.c.l.b16 %v2734
        %v2752 = vpack.c.b16 %v2745, %v2744
        %v2753 = vpack.c.b16 %v2747, %v2746
        %v2754 = vpack.c.b16 %v2749, %v2748
        %v2755 = vpack.c.b16 %v2751, %v2750
        %v2757 = vshrl.u32 %v2752, 16
        %v2759 = vshll.u32 %v2752, 16
        %v2761 = vrot.slane %v2759, 1
        %v2762 = vor.u32 %v2757, %v2761
        %v2764 = vshll.u32 %v2753, 16
        %v2766 = vrot.slane %v2764, 1
        %v2767 = vsel %vm500, %v2762, %v2766
        %v2768 = vshrl.u32 %v2753, 16
        %v2770 = vor.u32 %v2768, %v2766
        %v2772 = vshrl.u32 %v2754, 16
        %v2774 = vshll.u32 %v2754, 16
        %v2776 = vrot.slane %v2774, 1
        %v2777 = vor.u32 %v2772, %v2776
        %v2779 = vshll.u32 %v2755, 16
        %v2781 = vrot.slane %v2779, 1
        %v2782 = vsel %vm500, %v2777, %v2781
        %v2783 = vshrl.u32 %v2755, 16
        %v2785 = vor.u32 %v2783, %v2781
        %2786 = vrot.lane.b32.xlu0 %v2767, 32
        %v2787 = vpop.permute.xlu0 %2786
        %2788 = vrot.lane.b32.xlu0 %v2770, 32
        %v2789 = vpop.permute.xlu0 %2788
        %2790 = vrot.lane.b32.xlu0 %v2782, 32
        %v2791 = vpop.permute.xlu0 %2790
        %2792 = vrot.lane.b32.xlu0 %v2785, 32
        %v2793 = vpop.permute.xlu0 %2792
        %v2796 = vunpack.c.l.b16 %v2730
        %v2797 = vunpack.c.l.b16 %v2735
        %v2798 = vpack.c.b16 %v2796, %v2796
        %v2799 = vpack.c.b16 %v2797, %v2797
        %v2800 = vrot.slane %v2752, 1
        %v2801 = vrot.slane %v2753, 1
        %v2802 = vsel %vm545, %v2800, %v2801
        %v2803 = vrot.slane %v2798, 1
        %v2804 = vsel %vm545, %v2801, %v2803
        %v2805 = vrot.slane %v2754, 1
        %v2806 = vrot.slane %v2755, 1
        %v2807 = vsel %vm545, %v2805, %v2806
        %v2808 = vrot.slane %v2799, 1
        %v2809 = vsel %vm545, %v2806, %v2808
        %2810 = vrot.lane.b32.xlu0 %v2802, 64
        %v2811 = vpop.permute.xlu0 %2810
        %2812 = vrot.lane.b32.xlu0 %v2804, 64
        %v2813 = vpop.permute.xlu0 %2812
        %2814 = vrot.lane.b32.xlu0 %v2807, 64
        %v2815 = vpop.permute.xlu0 %2814
        %2816 = vrot.lane.b32.xlu0 %v2809, 64
        %v2817 = vpop.permute.xlu0 %2816
        %v2818 = vrot.slane %v2757, 1
        %v2819 = vrot.slane %v2759, 2
        %v2820 = vor.u32 %v2818, %v2819
        %v2821 = vrot.slane %v2768, 1
        %v2822 = vrot.slane %v2764, 2
        %v2823 = vor.u32 %v2821, %v2822
        %v2824 = vsel %vm564, %v2820, %v2823
        %v2826 = vshrl.u32 %v2798, 16
        %v2828 = vrot.slane %v2826, 1
        %v2829 = vshll.u32 %v2798, 16
        %v2831 = vrot.slane %v2829, 2
        %v2832 = vor.u32 %v2828, %v2831
        %v2833 = vsel %vm564, %v2823, %v2832
        %v2834 = vrot.slane %v2772, 1
        %v2835 = vrot.slane %v2774, 2
        %v2836 = vor.u32 %v2834, %v2835
        %v2837 = vrot.slane %v2783, 1
        %v2838 = vrot.slane %v2779, 2
        %v2839 = vor.u32 %v2837, %v2838
        %v2840 = vsel %vm564, %v2836, %v2839
        %v2842 = vshrl.u32 %v2799, 16
        %v2844 = vrot.slane %v2842, 1
        %v2845 = vshll.u32 %v2799, 16
        %v2847 = vrot.slane %v2845, 2
        %v2848 = vor.u32 %v2844, %v2847
        %v2849 = vsel %vm564, %v2839, %v2848
        %2850 = vrot.lane.b32.xlu0 %v2824, 96
        %v2851 = vpop.permute.xlu0 %2850
        %2852 = vrot.lane.b32.xlu0 %v2833, 96
        %v2853 = vpop.permute.xlu0 %2852
        %2854 = vrot.lane.b32.xlu0 %v2840, 96
        %v2855 = vpop.permute.xlu0 %2854
        %2856 = vrot.lane.b32.xlu0 %v2849, 96
        %v2857 = vpop.permute.xlu0 %2856
        %v2858 = vrot.slane %v2752, 2
        %v2859 = vrot.slane %v2753, 2
        %v2860 = vsel %vm605, %v2858, %v2859
        %v2861 = vrot.slane %v2798, 2
        %v2862 = vsel %vm605, %v2859, %v2861
        %v2863 = vrot.slane %v2754, 2
        %v2864 = vrot.slane %v2755, 2
        %v2865 = vsel %vm605, %v2863, %v2864
        %v2866 = vrot.slane %v2799, 2
        %v2867 = vsel %vm605, %v2864, %v2866
        %v2869 = vsel %vm616, %v2752, %v2787
        %v2871 = vsel %vm616, %v2753, %v2789
        %v2873 = vsel %vm616, %v2754, %v2791
        %v2875 = vsel %vm616, %v2755, %v2793
        %v2877 = vsel %vm625, %v2869, %v2811
        %v2879 = vsel %vm625, %v2871, %v2813
        %v2881 = vsel %vm625, %v2873, %v2815
        %v2883 = vsel %vm625, %v2875, %v2817
        %v2885 = vsel %vm634, %v2877, %v2851
        %v2887 = vsel %vm634, %v2879, %v2853
        %v2889 = vsel %vm634, %v2881, %v2855
        %v2891 = vsel %vm634, %v2883, %v2857
        %v2896 = vcombine.low %v2885, %v2860
        %v2897 = vcombine.high %v2885, %v2860
        %v2899 = vunpack.c.l.s4 1966171168
        %v2900 = vunpack.c.0.s8 %v2899
        %v2901 = vlaneseq
        %v2902 = vshrl.u32 %v2901, 7
        %v2903 = vsub.s32 %v2900, %v2902
        %v2904 = vrot.slane %v2896, %v2903
        %v2906 = vunpack.c.l.s4 1966171168
        %v2907 = vunpack.c.0.s8 %v2906
        %v2908 = vlaneseq
        %v2909 = vshrl.u32 %v2908, 7
        %v2910 = vsub.s32 %v2907, %v2909
        %v2911 = vrot.slane %v2897, %v2910
        %v2912 = vcombine.high %v2904, %v2904
        %v2913 = vcombine.high %v2911, %v2911
        %v2915 = vunpack.c.l.s4 1966171168
        %v2916 = vunpack.c.0.s8 %v2915
        %v2917 = vlaneseq
        %v2918 = vshrl.u32 %v2917, 7
        %v2919 = vsub.s32 %v2916, %v2918
        %v2920 = vrot.slane %v2904, %v2919
        %v2922 = vunpack.c.l.s4 1966171168
        %v2923 = vunpack.c.0.s8 %v2922
        %v2924 = vlaneseq
        %v2925 = vshrl.u32 %v2924, 7
        %v2926 = vsub.s32 %v2923, %v2925
        %v2927 = vrot.slane %v2911, %v2926
        %v2929 = vunpack.c.l.s4 1966171168
        %v2930 = vunpack.c.0.s8 %v2929
        %v2931 = vlaneseq
        %v2932 = vshrl.u32 %v2931, 7
        %v2933 = vsub.s32 %v2930, %v2932
        %v2934 = vrot.slane %v2912, %v2933
        %v2936 = vunpack.c.l.s4 1966171168
        %v2937 = vunpack.c.0.s8 %v2936
        %v2938 = vlaneseq
        %v2939 = vshrl.u32 %v2938, 7
        %v2940 = vsub.s32 %v2937, %v2939
        %v2941 = vrot.slane %v2913, %v2940
        %v2942 = vcombine.high %v2920, %v2920
        %v2943 = vcombine.high %v2927, %v2927
        %v2944 = vcombine.high %v2934, %v2934
        %v2945 = vcombine.high %v2941, %v2941
        %v2946 = vcombine.low %v2887, %v2862
        %v2947 = vcombine.high %v2887, %v2862
        %v2949 = vunpack.c.l.s4 1966171168
        %v2950 = vunpack.c.0.s8 %v2949
        %v2951 = vlaneseq
        %v2952 = vshrl.u32 %v2951, 7
        %v2953 = vsub.s32 %v2950, %v2952
        %v2954 = vrot.slane %v2946, %v2953
        %v2956 = vunpack.c.l.s4 1966171168
        %v2957 = vunpack.c.0.s8 %v2956
        %v2958 = vlaneseq
        %v2959 = vshrl.u32 %v2958, 7
        %v2960 = vsub.s32 %v2957, %v2959
        %v2961 = vrot.slane %v2947, %v2960
        %v2962 = vcombine.high %v2954, %v2954
        %v2963 = vcombine.high %v2961, %v2961
        %v2965 = vunpack.c.l.s4 1966171168
        %v2966 = vunpack.c.0.s8 %v2965
        %v2967 = vlaneseq
        %v2968 = vshrl.u32 %v2967, 7
        %v2969 = vsub.s32 %v2966, %v2968
        %v2970 = vrot.slane %v2954, %v2969
        %v2972 = vunpack.c.l.s4 1966171168
        %v2973 = vunpack.c.0.s8 %v2972
        %v2974 = vlaneseq
        %v2975 = vshrl.u32 %v2974, 7
        %v2976 = vsub.s32 %v2973, %v2975
        %v2977 = vrot.slane %v2961, %v2976
        %v2979 = vunpack.c.l.s4 1966171168
        %v2980 = vunpack.c.0.s8 %v2979
        %v2981 = vlaneseq
        %v2982 = vshrl.u32 %v2981, 7
        %v2983 = vsub.s32 %v2980, %v2982
        %v2984 = vrot.slane %v2962, %v2983
        %v2986 = vunpack.c.l.s4 1966171168
        %v2987 = vunpack.c.0.s8 %v2986
        %v2988 = vlaneseq
        %v2989 = vshrl.u32 %v2988, 7
        %v2990 = vsub.s32 %v2987, %v2989
        %v2991 = vrot.slane %v2963, %v2990
        %v2992 = vcombine.high %v2970, %v2970
        %v2993 = vcombine.high %v2977, %v2977
        %v2994 = vcombine.high %v2984, %v2984
        %v2995 = vcombine.high %v2991, %v2991
        %v2996 = vcombine.low %v2889, %v2865
        %v2997 = vcombine.high %v2889, %v2865
        %v2999 = vunpack.c.l.s4 1966171168
        %v3000 = vunpack.c.0.s8 %v2999
        %v3001 = vlaneseq
        %v3002 = vshrl.u32 %v3001, 7
        %v3003 = vsub.s32 %v3000, %v3002
        %v3004 = vrot.slane %v2996, %v3003
        %v3006 = vunpack.c.l.s4 1966171168
        %v3007 = vunpack.c.0.s8 %v3006
        %v3008 = vlaneseq
        %v3009 = vshrl.u32 %v3008, 7
        %v3010 = vsub.s32 %v3007, %v3009
        %v3011 = vrot.slane %v2997, %v3010
        %v3012 = vcombine.high %v3004, %v3004
        %v3013 = vcombine.high %v3011, %v3011
        %v3015 = vunpack.c.l.s4 1966171168
        %v3016 = vunpack.c.0.s8 %v3015
        %v3017 = vlaneseq
        %v3018 = vshrl.u32 %v3017, 7
        %v3019 = vsub.s32 %v3016, %v3018
        %v3020 = vrot.slane %v3004, %v3019
        %v3022 = vunpack.c.l.s4 1966171168
        %v3023 = vunpack.c.0.s8 %v3022
        %v3024 = vlaneseq
        %v3025 = vshrl.u32 %v3024, 7
        %v3026 = vsub.s32 %v3023, %v3025
        %v3027 = vrot.slane %v3011, %v3026
        %v3029 = vunpack.c.l.s4 1966171168
        %v3030 = vunpack.c.0.s8 %v3029
        %v3031 = vlaneseq
        %v3032 = vshrl.u32 %v3031, 7
        %v3033 = vsub.s32 %v3030, %v3032
        %v3034 = vrot.slane %v3012, %v3033
        %v3036 = vunpack.c.l.s4 1966171168
        %v3037 = vunpack.c.0.s8 %v3036
        %v3038 = vlaneseq
        %v3039 = vshrl.u32 %v3038, 7
        %v3040 = vsub.s32 %v3037, %v3039
        %v3041 = vrot.slane %v3013, %v3040
        %v3042 = vcombine.high %v3020, %v3020
        %v3043 = vcombine.high %v3027, %v3027
        %v3044 = vcombine.high %v3034, %v3034
        %v3045 = vcombine.high %v3041, %v3041
        %v3046 = vcombine.low %v2891, %v2867
        %v3047 = vcombine.high %v2891, %v2867
        %v3049 = vunpack.c.l.s4 1966171168
        %v3050 = vunpack.c.0.s8 %v3049
        %v3051 = vlaneseq
        %v3052 = vshrl.u32 %v3051, 7
        %v3053 = vsub.s32 %v3050, %v3052
        %v3054 = vrot.slane %v3046, %v3053
        %v3056 = vunpack.c.l.s4 1966171168
        %v3057 = vunpack.c.0.s8 %v3056
        %v3058 = vlaneseq
        %v3059 = vshrl.u32 %v3058, 7
        %v3060 = vsub.s32 %v3057, %v3059
        %v3061 = vrot.slane %v3047, %v3060
        %v3062 = vcombine.high %v3054, %v3054
        %v3063 = vcombine.high %v3061, %v3061
        %v3065 = vunpack.c.l.s4 1966171168
        %v3066 = vunpack.c.0.s8 %v3065
        %v3067 = vlaneseq
        %v3068 = vshrl.u32 %v3067, 7
        %v3069 = vsub.s32 %v3066, %v3068
        %v3070 = vrot.slane %v3054, %v3069
        %v3072 = vunpack.c.l.s4 1966171168
        %v3073 = vunpack.c.0.s8 %v3072
        %v3074 = vlaneseq
        %v3075 = vshrl.u32 %v3074, 7
        %v3076 = vsub.s32 %v3073, %v3075
        %v3077 = vrot.slane %v3061, %v3076
        %v3079 = vunpack.c.l.s4 1966171168
        %v3080 = vunpack.c.0.s8 %v3079
        %v3081 = vlaneseq
        %v3082 = vshrl.u32 %v3081, 7
        %v3083 = vsub.s32 %v3080, %v3082
        %v3084 = vrot.slane %v3062, %v3083
        %v3086 = vunpack.c.l.s4 1966171168
        %v3087 = vunpack.c.0.s8 %v3086
        %v3088 = vlaneseq
        %v3089 = vshrl.u32 %v3088, 7
        %v3090 = vsub.s32 %v3087, %v3089
        %v3091 = vrot.slane %v3063, %v3090
        %v3092 = vcombine.high %v3070, %v3070
        %v3093 = vcombine.high %v3077, %v3077
        %v3094 = vcombine.high %v3084, %v3084
        %v3095 = vcombine.high %v3091, %v3091
        %v3096 = vunpack.i.l.s16 %v2920
        %v3097 = vunpack.i.h.s16 %v2920
        %v3098 = vunpack.i.l.s16 %v2934
        %v3099 = vunpack.i.h.s16 %v2934
        %v3100 = vunpack.i.l.s16 %v2942
        %v3101 = vunpack.i.h.s16 %v2942
        %v3102 = vunpack.i.l.s16 %v2944
        %v3103 = vunpack.i.h.s16 %v2944
        %v3104 = vunpack.i.l.s16 %v2927
        %v3105 = vunpack.i.h.s16 %v2927
        %v3106 = vunpack.i.l.s16 %v2941
        %v3107 = vunpack.i.h.s16 %v2941
        %v3108 = vunpack.i.l.s16 %v2943
        %v3109 = vunpack.i.h.s16 %v2943
        %v3110 = vunpack.i.l.s16 %v2945
        %v3111 = vunpack.i.h.s16 %v2945
        %v3112 = vunpack.i.l.s16 %v2970
        %v3113 = vunpack.i.h.s16 %v2970
        %v3114 = vunpack.i.l.s16 %v2984
        %v3115 = vunpack.i.h.s16 %v2984
        %v3116 = vunpack.i.l.s16 %v2992
        %v3117 = vunpack.i.h.s16 %v2992
        %v3118 = vunpack.i.l.s16 %v2994
        %v3119 = vunpack.i.h.s16 %v2994
        %v3120 = vunpack.i.l.s16 %v2977
        %v3121 = vunpack.i.h.s16 %v2977
        %v3122 = vunpack.i.l.s16 %v2991
        %v3123 = vunpack.i.h.s16 %v2991
        %v3124 = vunpack.i.l.s16 %v2993
        %v3125 = vunpack.i.h.s16 %v2993
        %v3126 = vunpack.i.l.s16 %v2995
        %v3127 = vunpack.i.l.s16 %v3020
        %v3128 = vunpack.i.h.s16 %v3020
        %v3129 = vunpack.i.l.s16 %v3034
        %v3130 = vunpack.i.h.s16 %v3034
        %v3131 = vunpack.i.l.s16 %v3042
        %v3132 = vunpack.i.h.s16 %v3042
        %v3133 = vunpack.i.l.s16 %v3044
        %v3134 = vunpack.i.h.s16 %v3044
        %v3135 = vunpack.i.l.s16 %v3027
        %v3136 = vunpack.i.h.s16 %v3027
        %v3137 = vunpack.i.l.s16 %v3041
        %v3138 = vunpack.i.h.s16 %v3041
        %v3139 = vunpack.i.l.s16 %v3043
        %v3140 = vunpack.i.h.s16 %v3043
        %v3141 = vunpack.i.l.s16 %v3045
        %v3142 = vunpack.i.h.s16 %v3045
        %v3143 = vunpack.i.l.s16 %v3070
        %v3144 = vunpack.i.h.s16 %v3070
        %v3145 = vunpack.i.l.s16 %v3084
        %v3146 = vunpack.i.h.s16 %v3084
        %v3147 = vunpack.i.l.s16 %v3092
        %v3148 = vunpack.i.h.s16 %v3092
        %v3149 = vunpack.i.l.s16 %v3094
        %v3150 = vunpack.i.h.s16 %v3094
        %v3151 = vunpack.i.l.s16 %v3077
        %v3152 = vunpack.i.h.s16 %v3077
        %v3153 = vunpack.i.l.s16 %v3091
        %v3154 = vunpack.i.h.s16 %v3091
        %v3155 = vunpack.i.l.s16 %v3093
        %v3156 = vunpack.i.h.s16 %v3093
        %v3157 = vunpack.i.l.s16 %v3095
        %v3158 = vpack.i.b16 %v3097, %v3096
        %v3159 = vpack.i.b16 %v3099, %v3098
        %v3160 = vpack.i.b16 %v3101, %v3100
        %v3161 = vpack.i.b16 %v3103, %v3102
        %v3162 = vpack.i.b16 %v3105, %v3104
        %v3163 = vpack.i.b16 %v3107, %v3106
        %v3164 = vpack.i.b16 %v3109, %v3108
        %v3165 = vpack.i.b16 %v3111, %v3110
        %v3166 = vpack.i.b16 %v3113, %v3112
        %v3167 = vpack.i.b16 %v3115, %v3114
        %v3168 = vpack.i.b16 %v3117, %v3116
        %v3169 = vpack.i.b16 %v3119, %v3118
        %v3170 = vpack.i.b16 %v3121, %v3120
        %v3171 = vpack.i.b16 %v3123, %v3122
        %v3172 = vpack.i.b16 %v3125, %v3124
        %v3173 = vpack.i.b16 %v3127, %v3126
        %v3174 = vpack.i.b16 %v3129, %v3128
        %v3175 = vpack.i.b16 %v3131, %v3130
        %v3176 = vpack.i.b16 %v3133, %v3132
        %v3177 = vpack.i.b16 %v3135, %v3134
        %v3178 = vpack.i.b16 %v3137, %v3136
        %v3179 = vpack.i.b16 %v3139, %v3138
        %v3180 = vpack.i.b16 %v3141, %v3140
        %v3181 = vpack.i.b16 %v3143, %v3142
        %v3182 = vpack.i.b16 %v3145, %v3144
        %v3183 = vpack.i.b16 %v3147, %v3146
        %v3184 = vpack.i.b16 %v3149, %v3148
        %v3185 = vpack.i.b16 %v3151, %v3150
        %v3186 = vpack.i.b16 %v3153, %v3152
        %v3187 = vpack.i.b16 %v3155, %v3154
        %v3188 = vpack.i.b16 %v3157, %v3156
        %v3189 = vcombine.low %v3158, %v3159
        %v3190 = vcombine.low %v3160, %v3161
        %v3191 = vcombine.low %v3162, %v3163
        %v3192 = vcombine.low %v3164, %v3165
        %v3194 = vunpack.c.l.s4 1966171168
        %v3195 = vunpack.c.0.s8 %v3194
        %v3196 = vlaneseq
        %v3197 = vshrl.u32 %v3196, 7
        %v3198 = vsub.s32 %v3195, %v3197
        %v3199 = vrot.slane %v3189, %v3198
        %v3201 = vunpack.c.l.s4 1966171168
        %v3202 = vunpack.c.0.s8 %v3201
        %v3203 = vlaneseq
        %v3204 = vshrl.u32 %v3203, 7
        %v3205 = vsub.s32 %v3202, %v3204
        %v3206 = vrot.slane %v3190, %v3205
        %v3208 = vunpack.c.l.s4 1966171168
        %v3209 = vunpack.c.0.s8 %v3208
        %v3210 = vlaneseq
        %v3211 = vshrl.u32 %v3210, 7
        %v3212 = vsub.s32 %v3209, %v3211
        %v3213 = vrot.slane %v3191, %v3212
        %v3215 = vunpack.c.l.s4 1966171168
        %v3216 = vunpack.c.0.s8 %v3215
        %v3217 = vlaneseq
        %v3218 = vshrl.u32 %v3217, 7
        %v3219 = vsub.s32 %v3216, %v3218
        %v3220 = vrot.slane %v3192, %v3219
        %v3221 = vcombine.low %v3199, %v3206
        %v3222 = vcombine.high %v3199, %v3206
        %v3223 = vcombine.low %v3213, %v3220
        %v3224 = vcombine.high %v3213, %v3220
        %v3226 = vunpack.c.l.s4 1966171168
        %v3227 = vunpack.c.0.s8 %v3226
        %v3228 = vlaneseq
        %v3229 = vshrl.u32 %v3228, 7
        %v3230 = vsub.s32 %v3227, %v3229
        %v3231 = vrot.slane %v3221, %v3230
        %v3233 = vunpack.c.l.s4 1966171168
        %v3234 = vunpack.c.0.s8 %v3233
        %v3235 = vlaneseq
        %v3236 = vshrl.u32 %v3235, 7
        %v3237 = vsub.s32 %v3234, %v3236
        %v3238 = vrot.slane %v3222, %v3237
        %v3240 = vunpack.c.l.s4 1966171168
        %v3241 = vunpack.c.0.s8 %v3240
        %v3242 = vlaneseq
        %v3243 = vshrl.u32 %v3242, 7
        %v3244 = vsub.s32 %v3241, %v3243
        %v3245 = vrot.slane %v3223, %v3244
        %v3247 = vunpack.c.l.s4 1966171168
        %v3248 = vunpack.c.0.s8 %v3247
        %v3249 = vlaneseq
        %v3250 = vshrl.u32 %v3249, 7
        %v3251 = vsub.s32 %v3248, %v3250
        %v3252 = vrot.slane %v3224, %v3251
        %v3253 = vcombine.low %v3231, %v3245
        %v3254 = vcombine.low %v3238, %v3252
        %v3255 = vcombine.low %v3166, %v3167
        %v3256 = vcombine.low %v3168, %v3169
        %v3257 = vcombine.low %v3170, %v3171
        %v3258 = vcombine.low %v3172, %v3173
        %v3260 = vunpack.c.l.s4 1966171168
        %v3261 = vunpack.c.0.s8 %v3260
        %v3262 = vlaneseq
        %v3263 = vshrl.u32 %v3262, 7
        %v3264 = vsub.s32 %v3261, %v3263
        %v3265 = vrot.slane %v3255, %v3264
        %v3267 = vunpack.c.l.s4 1966171168
        %v3268 = vunpack.c.0.s8 %v3267
        %v3269 = vlaneseq
        %v3270 = vshrl.u32 %v3269, 7
        %v3271 = vsub.s32 %v3268, %v3270
        %v3272 = vrot.slane %v3256, %v3271
        %v3274 = vunpack.c.l.s4 1966171168
        %v3275 = vunpack.c.0.s8 %v3274
        %v3276 = vlaneseq
        %v3277 = vshrl.u32 %v3276, 7
        %v3278 = vsub.s32 %v3275, %v3277
        %v3279 = vrot.slane %v3257, %v3278
        %v3281 = vunpack.c.l.s4 1966171168
        %v3282 = vunpack.c.0.s8 %v3281
        %v3283 = vlaneseq
        %v3284 = vshrl.u32 %v3283, 7
        %v3285 = vsub.s32 %v3282, %v3284
        %v3286 = vrot.slane %v3258, %v3285
        %v3287 = vcombine.low %v3265, %v3272
        %v3288 = vcombine.high %v3265, %v3272
        %v3289 = vcombine.low %v3279, %v3286
        %v3290 = vcombine.high %v3279, %v3286
        %v3292 = vunpack.c.l.s4 1966171168
        %v3293 = vunpack.c.0.s8 %v3292
        %v3294 = vlaneseq
        %v3295 = vshrl.u32 %v3294, 7
        %v3296 = vsub.s32 %v3293, %v3295
        %v3297 = vrot.slane %v3287, %v3296
        %v3299 = vunpack.c.l.s4 1966171168
        %v3300 = vunpack.c.0.s8 %v3299
        %v3301 = vlaneseq
        %v3302 = vshrl.u32 %v3301, 7
        %v3303 = vsub.s32 %v3300, %v3302
        %v3304 = vrot.slane %v3288, %v3303
        %v3306 = vunpack.c.l.s4 1966171168
        %v3307 = vunpack.c.0.s8 %v3306
        %v3308 = vlaneseq
        %v3309 = vshrl.u32 %v3308, 7
        %v3310 = vsub.s32 %v3307, %v3309
        %v3311 = vrot.slane %v3289, %v3310
        %v3313 = vunpack.c.l.s4 1966171168
        %v3314 = vunpack.c.0.s8 %v3313
        %v3315 = vlaneseq
        %v3316 = vshrl.u32 %v3315, 7
        %v3317 = vsub.s32 %v3314, %v3316
        %v3318 = vrot.slane %v3290, %v3317
        %v3319 = vcombine.low %v3297, %v3311
        %v3320 = vcombine.low %v3304, %v3318
        %v3321 = vcombine.low %v3174, %v3175
        %v3322 = vcombine.low %v3176, %v3177
        %v3323 = vcombine.low %v3178, %v3179
        %v3324 = vcombine.low %v3180, %v3181
        %v3326 = vunpack.c.l.s4 1966171168
        %v3327 = vunpack.c.0.s8 %v3326
        %v3328 = vlaneseq
        %v3329 = vshrl.u32 %v3328, 7
        %v3330 = vsub.s32 %v3327, %v3329
        %v3331 = vrot.slane %v3321, %v3330
        %v3333 = vunpack.c.l.s4 1966171168
        %v3334 = vunpack.c.0.s8 %v3333
        %v3335 = vlaneseq
        %v3336 = vshrl.u32 %v3335, 7
        %v3337 = vsub.s32 %v3334, %v3336
        %v3338 = vrot.slane %v3322, %v3337
        %v3340 = vunpack.c.l.s4 1966171168
        %v3341 = vunpack.c.0.s8 %v3340
        %v3342 = vlaneseq
        %v3343 = vshrl.u32 %v3342, 7
        %v3344 = vsub.s32 %v3341, %v3343
        %v3345 = vrot.slane %v3323, %v3344
        %v3347 = vunpack.c.l.s4 1966171168
        %v3348 = vunpack.c.0.s8 %v3347
        %v3349 = vlaneseq
        %v3350 = vshrl.u32 %v3349, 7
        %v3351 = vsub.s32 %v3348, %v3350
        %v3352 = vrot.slane %v3324, %v3351
        %v3353 = vcombine.low %v3331, %v3338
        %v3354 = vcombine.high %v3331, %v3338
        %v3355 = vcombine.low %v3345, %v3352
        %v3356 = vcombine.high %v3345, %v3352
        %v3358 = vunpack.c.l.s4 1966171168
        %v3359 = vunpack.c.0.s8 %v3358
        %v3360 = vlaneseq
        %v3361 = vshrl.u32 %v3360, 7
        %v3362 = vsub.s32 %v3359, %v3361
        %v3363 = vrot.slane %v3353, %v3362
        %v3365 = vunpack.c.l.s4 1966171168
        %v3366 = vunpack.c.0.s8 %v3365
        %v3367 = vlaneseq
        %v3368 = vshrl.u32 %v3367, 7
        %v3369 = vsub.s32 %v3366, %v3368
        %v3370 = vrot.slane %v3354, %v3369
        %v3372 = vunpack.c.l.s4 1966171168
        %v3373 = vunpack.c.0.s8 %v3372
        %v3374 = vlaneseq
        %v3375 = vshrl.u32 %v3374, 7
        %v3376 = vsub.s32 %v3373, %v3375
        %v3377 = vrot.slane %v3355, %v3376
        %v3379 = vunpack.c.l.s4 1966171168
        %v3380 = vunpack.c.0.s8 %v3379
        %v3381 = vlaneseq
        %v3382 = vshrl.u32 %v3381, 7
        %v3383 = vsub.s32 %v3380, %v3382
        %v3384 = vrot.slane %v3356, %v3383
        %v3385 = vcombine.low %v3363, %v3377
        %v3386 = vcombine.low %v3370, %v3384
        %v3387 = vcombine.low %v3182, %v3183
        %v3388 = vcombine.low %v3184, %v3185
        %v3389 = vcombine.low %v3186, %v3187
        %v3391 = vunpack.c.l.s4 1966171168
        %v3392 = vunpack.c.0.s8 %v3391
        %v3393 = vlaneseq
        %v3394 = vshrl.u32 %v3393, 7
        %v3395 = vsub.s32 %v3392, %v3394
        %v3396 = vrot.slane %v3387, %v3395
        %v3398 = vunpack.c.l.s4 1966171168
        %v3399 = vunpack.c.0.s8 %v3398
        %v3400 = vlaneseq
        %v3401 = vshrl.u32 %v3400, 7
        %v3402 = vsub.s32 %v3399, %v3401
        %v3403 = vrot.slane %v3388, %v3402
        %v3405 = vunpack.c.l.s4 1966171168
        %v3406 = vunpack.c.0.s8 %v3405
        %v3407 = vlaneseq
        %v3408 = vshrl.u32 %v3407, 7
        %v3409 = vsub.s32 %v3406, %v3408
        %v3410 = vrot.slane %v3389, %v3409
        %v3412 = vunpack.c.l.s4 1966171168
        %v3413 = vunpack.c.0.s8 %v3412
        %v3414 = vlaneseq
        %v3415 = vshrl.u32 %v3414, 7
        %v3416 = vsub.s32 %v3413, %v3415
        %v3417 = vrot.slane %v3188, %v3416
        %v3418 = vcombine.low %v3396, %v3403
        %v3419 = vcombine.high %v3396, %v3403
        %v3420 = vcombine.low %v3410, %v3417
        %v3421 = vcombine.high %v3410, %v3417
        %v3423 = vunpack.c.l.s4 1966171168
        %v3424 = vunpack.c.0.s8 %v3423
        %v3425 = vlaneseq
        %v3426 = vshrl.u32 %v3425, 7
        %v3427 = vsub.s32 %v3424, %v3426
        %v3428 = vrot.slane %v3418, %v3427
        %v3430 = vunpack.c.l.s4 1966171168
        %v3431 = vunpack.c.0.s8 %v3430
        %v3432 = vlaneseq
        %v3433 = vshrl.u32 %v3432, 7
        %v3434 = vsub.s32 %v3431, %v3433
        %v3435 = vrot.slane %v3419, %v3434
        %v3437 = vunpack.c.l.s4 1966171168
        %v3438 = vunpack.c.0.s8 %v3437
        %v3439 = vlaneseq
        %v3440 = vshrl.u32 %v3439, 7
        %v3441 = vsub.s32 %v3438, %v3440
        %v3442 = vrot.slane %v3420, %v3441
        %v3444 = vunpack.c.l.s4 1966171168
        %v3445 = vunpack.c.0.s8 %v3444
        %v3446 = vlaneseq
        %v3447 = vshrl.u32 %v3446, 7
        %v3448 = vsub.s32 %v3445, %v3447
        %v3449 = vrot.slane %v3421, %v3448
        %v3450 = vcombine.low %v3428, %v3442
        %v3451 = vcombine.low %v3435, %v3449
        %v3516 = vunpack.c.l.b16 %v409
        %v3517 = vunpack.c.h.b16 %v409
        %v3518 = vunpack.c.l.b16 %v410
        %v3519 = vunpack.c.h.b16 %v410
        %v3520 = vunpack.c.l.b16 %v411
        %v3521 = vunpack.c.l.b16 %v412
        %v3522 = vunpack.c.h.b16 %v412
        %v3523 = vunpack.c.l.b16 %v413
        %v3524 = vunpack.c.h.b16 %v413
        %v3525 = vunpack.c.l.b16 %v414
        %v3526 = vunpack.c.l.b16 %v415
        %v3527 = vunpack.c.h.b16 %v415
        %v3528 = vunpack.c.l.b16 %v416
        %v3529 = vunpack.c.h.b16 %v416
        %v3530 = vunpack.c.l.b16 %v417
        %v3531 = vunpack.c.l.b16 %v418
        %v3532 = vunpack.c.h.b16 %v418
        %v3533 = vunpack.c.l.b16 %v419
        %v3534 = vunpack.c.h.b16 %v419
        %v3535 = vunpack.c.l.b16 %v420
        %v3536 = vunpack.c.l.b16 %v421
        %v3537 = vunpack.c.h.b16 %v421
        %v3538 = vunpack.c.l.b16 %v422
        %v3539 = vunpack.c.h.b16 %v422
        %v3540 = vunpack.c.l.b16 %v423
        %v3541 = vunpack.c.l.b16 %v424
        %v3542 = vunpack.c.h.b16 %v424
        %v3543 = vunpack.c.l.b16 %v425
        %v3544 = vunpack.c.h.b16 %v425
        %v3545 = vunpack.c.l.b16 %v426
        %v3546 = vunpack.c.l.b16 %v427
        %v3547 = vunpack.c.h.b16 %v427
        %v3548 = vunpack.c.l.b16 %v428
        %v3549 = vunpack.c.h.b16 %v428
        %v3550 = vunpack.c.l.b16 %v429
        %v3551 = vunpack.c.l.b16 %v430
        %v3552 = vunpack.c.h.b16 %v430
        %v3553 = vunpack.c.l.b16 %v431
        %v3554 = vunpack.c.h.b16 %v431
        %v3555 = vunpack.c.l.b16 %v432
        %v3556 = vunpack.c.l.b16 %v433
        %v3557 = vunpack.c.h.b16 %v433
        %v3558 = vunpack.c.l.b16 %v434
        %v3559 = vunpack.c.h.b16 %v434
        %v3560 = vunpack.c.l.b16 %v435
        %v3561 = vunpack.c.l.b16 %v436
        %v3562 = vunpack.c.h.b16 %v436
        %v3563 = vunpack.c.l.b16 %v437
        %v3564 = vunpack.c.h.b16 %v437
        %v3565 = vunpack.c.l.b16 %v438
        %v3566 = vunpack.c.l.b16 %v439
        %v3567 = vunpack.c.h.b16 %v439
        %v3568 = vunpack.c.l.b16 %v440
        %v3569 = vunpack.c.h.b16 %v440
        %v3570 = vunpack.c.l.b16 %v441
        %v3571 = vunpack.c.l.b16 %v442
        %v3572 = vunpack.c.h.b16 %v442
        %v3573 = vunpack.c.l.b16 %v443
        %v3574 = vunpack.c.h.b16 %v443
        %v3575 = vunpack.c.l.b16 %v444
        %v3576 = vunpack.c.l.b16 %v445
        %v3577 = vunpack.c.h.b16 %v445
        %v3578 = vunpack.c.l.b16 %v446
        %v3579 = vunpack.c.h.b16 %v446
        %v3580 = vunpack.c.l.b16 %v447
        %v3581 = vunpack.c.l.b16 %v448
        %v3582 = vunpack.c.h.b16 %v448
        %v3583 = vunpack.c.l.b16 %v449
        %v3584 = vunpack.c.h.b16 %v449
        %v3585 = vunpack.c.l.b16 %v450
        %v3586 = vunpack.c.l.b16 %v451
        %v3587 = vunpack.c.h.b16 %v451
        %v3588 = vunpack.c.l.b16 %v452
        %v3589 = vunpack.c.h.b16 %v452
        %v3590 = vunpack.c.l.b16 %v453
        %v3591 = vunpack.c.l.b16 %v454
        %v3592 = vunpack.c.h.b16 %v454
        %v3593 = vunpack.c.l.b16 %v455
        %v3594 = vunpack.c.h.b16 %v455
        %v3595 = vunpack.c.l.b16 %v456
        %v3596 = vunpack.c.l.b16 %v457
        %v3597 = vunpack.c.h.b16 %v457
        %v3598 = vunpack.c.l.b16 %v458
        %v3599 = vunpack.c.h.b16 %v458
        %v3600 = vunpack.c.l.b16 %v459
        %v3601 = vunpack.c.l.b16 %v460
        %v3602 = vunpack.c.h.b16 %v460
        %v3603 = vunpack.c.l.b16 %v461
        %v3604 = vunpack.c.h.b16 %v461
        %v3605 = vunpack.c.l.b16 %v462
        %v3606 = vunpack.c.l.b16 %v463
        %v3607 = vunpack.c.h.b16 %v463
        %v3608 = vunpack.c.l.b16 %v464
        %v3609 = vunpack.c.h.b16 %v464
        %v3610 = vunpack.c.l.b16 %v465
        %v3611 = vunpack.c.l.b16 %v466
        %v3612 = vunpack.c.h.b16 %v466
        %v3613 = vunpack.c.l.b16 %v467
        %v3614 = vunpack.c.h.b16 %v467
        %v3615 = vunpack.c.l.b16 %v468
        %v3616 = vpack.c.b16 %v3521, %v3516
        %v3617 = vpack.c.b16 %v3522, %v3517
        %v3618 = vpack.c.b16 %v3523, %v3518
        %v3619 = vpack.c.b16 %v3524, %v3519
        %v3620 = vpack.c.b16 %v3525, %v3520
        %v3621 = vpack.c.b16 %v3531, %v3526
        %v3622 = vpack.c.b16 %v3532, %v3527
        %v3623 = vpack.c.b16 %v3533, %v3528
        %v3624 = vpack.c.b16 %v3534, %v3529
        %v3625 = vpack.c.b16 %v3535, %v3530
        %v3626 = vpack.c.b16 %v3541, %v3536
        %v3627 = vpack.c.b16 %v3542, %v3537
        %v3628 = vpack.c.b16 %v3543, %v3538
        %v3629 = vpack.c.b16 %v3544, %v3539
        %v3630 = vpack.c.b16 %v3545, %v3540
        %v3631 = vpack.c.b16 %v3551, %v3546
        %v3632 = vpack.c.b16 %v3552, %v3547
        %v3633 = vpack.c.b16 %v3553, %v3548
        %v3634 = vpack.c.b16 %v3554, %v3549
        %v3635 = vpack.c.b16 %v3555, %v3550
        %v3636 = vpack.c.b16 %v3561, %v3556
        %v3637 = vpack.c.b16 %v3562, %v3557
        %v3638 = vpack.c.b16 %v3563, %v3558
        %v3639 = vpack.c.b16 %v3564, %v3559
        %v3640 = vpack.c.b16 %v3565, %v3560
        %v3641 = vpack.c.b16 %v3571, %v3566
        %v3642 = vpack.c.b16 %v3572, %v3567
        %v3643 = vpack.c.b16 %v3573, %v3568
        %v3644 = vpack.c.b16 %v3574, %v3569
        %v3645 = vpack.c.b16 %v3575, %v3570
        %v3646 = vpack.c.b16 %v3581, %v3576
        %v3647 = vpack.c.b16 %v3582, %v3577
        %v3648 = vpack.c.b16 %v3583, %v3578
        %v3649 = vpack.c.b16 %v3584, %v3579
        %v3650 = vpack.c.b16 %v3585, %v3580
        %v3651 = vpack.c.b16 %v3591, %v3586
        %v3652 = vpack.c.b16 %v3592, %v3587
        %v3653 = vpack.c.b16 %v3593, %v3588
        %v3654 = vpack.c.b16 %v3594, %v3589
        %v3655 = vpack.c.b16 %v3595, %v3590
        %v3656 = vpack.c.b16 %v3601, %v3596
        %v3657 = vpack.c.b16 %v3602, %v3597
        %v3658 = vpack.c.b16 %v3603, %v3598
        %v3659 = vpack.c.b16 %v3604, %v3599
        %v3660 = vpack.c.b16 %v3605, %v3600
        %v3661 = vpack.c.b16 %v3611, %v3606
        %v3662 = vpack.c.b16 %v3612, %v3607
        %v3663 = vpack.c.b16 %v3613, %v3608
        %v3664 = vpack.c.b16 %v3614, %v3609
        %v3665 = vpack.c.b16 %v3615, %v3610
        %v3717 = vsel %vm616, %v3254, 0
        %v3720 = vsel %vm616, %v3320, 0
        %v3723 = vsel %vm616, %v3386, 0
        %v3726 = vsel %vm616, %v3451, 0
        %3728 = vmatprep.subr.bf16.mxu0 %v3652
        %3729 = vmatpush1.bf16.msra.mxu0 %v3651
        %3730 = vmatprep.subr.bf16.mxu0 %v3647
        %3731 = vmatpush1.bf16.msra.mxu0 %v3646
        %3732 = vmatprep.subr.bf16.mxu0 %v3642
        %3733 = vmatpush1.bf16.msra.mxu0 %v3641
        %3734 = vmatprep.subr.bf16.mxu0 %v3637
        %3735 = vmatpush1.bf16.msra.mxu0 %v3636
        %3736 = vmatprep.subr.bf16.mxu0 %v3632
        %3737 = vmatpush1.bf16.msra.mxu0 %v3631
        %3738 = vmatprep.subr.bf16.mxu0 %v3627
        %3739 = vmatpush1.bf16.msra.mxu0 %v3626
        %3740 = vmatprep.subr.bf16.mxu0 %v3622
        %3741 = vmatpush1.bf16.msra.mxu0 %v3621
        %3742 = vmatprep.subr.bf16.mxu0 %v3617
        %3743 = vmatpush1.bf16.msra.mxu0 %v3616
        %3744 = vmatprep.subr.bf16.mxu0 0
        %3745 = vmatpush2.bf16.msra.mxu0 0
        %3746 = vmatprep.subr.bf16.mxu0 0
        %3747 = vmatpush2.bf16.msra.mxu0 0
        %3748 = vmatprep.subr.bf16.mxu0 0
        %3749 = vmatpush2.bf16.msra.mxu0 0
        %3750 = vmatprep.subr.bf16.mxu0 0
        %3751 = vmatpush2.bf16.msra.mxu0 0
        %3752 = vmatprep.subr.bf16.mxu0 0
        %3753 = vmatpush2.bf16.msra.mxu0 0
        %3754 = vmatprep.subr.bf16.mxu0 0
        %3755 = vmatpush2.bf16.msra.mxu0 0
        %3756 = vmatprep.subr.bf16.mxu0 %v3662
        %3757 = vmatpush2.bf16.msra.mxu0 %v3661
        %3758 = vmatprep.subr.bf16.mxu0 %v3657
        %3759 = vmatpush2.bf16.msra.mxu0 %v3656
        %3760 = vmatprep.mubr.bf16.mxu0 %v3717
        %3761 = vmatmul.mubr.bf16.gmra.mxu0 %v3253
        %v3762 = vpop.f32.mrf.mxu0
        %v3763 = vadd.f32 0.0, %v3762
        %v3764 = vpop.f32.mrf.mxu0
        %v3765 = vadd.f32 0.0, %v3764
        %v3766 = vpop.f32.mrf.mxu0
        %v3767 = vadd.f32 0.0, %v3766
        %v3768 = vpop.f32.mrf.mxu0
        %v3769 = vadd.f32 0.0, %v3768
        %3770 = vmatprep.mubr.bf16.mxu0 %v3720
        %3771 = vmatmul.mubr.bf16.gmra.mxu0 %v3319
        %v3772 = vpop.f32.mrf.mxu0
        %v3773 = vadd.f32 0.0, %v3772
        %v3774 = vpop.f32.mrf.mxu0
        %v3775 = vadd.f32 0.0, %v3774
        %v3776 = vpop.f32.mrf.mxu0
        %v3777 = vadd.f32 0.0, %v3776
        %v3778 = vpop.f32.mrf.mxu0
        %v3779 = vadd.f32 0.0, %v3778
        %3780 = vmatprep.mubr.bf16.mxu0 %v3723
        %3781 = vmatmul.mubr.bf16.gmra.mxu0 %v3385
        %v3782 = vpop.f32.mrf.mxu0
        %v3783 = vadd.f32 0.0, %v3782
        %v3784 = vpop.f32.mrf.mxu0
        %v3785 = vadd.f32 0.0, %v3784
        %v3786 = vpop.f32.mrf.mxu0
        %v3787 = vadd.f32 0.0, %v3786
        %v3788 = vpop.f32.mrf.mxu0
        %v3789 = vadd.f32 0.0, %v3788
        %3790 = vmatprep.mubr.bf16.mxu0 %v3726
        %3791 = vmatmul.mubr.bf16.gmra.mxu0 %v3450
        %v3792 = vpop.f32.mrf.mxu0
        %v3793 = vadd.f32 0.0, %v3792
        %v3794 = vpop.f32.mrf.mxu0
        %v3795 = vadd.f32 0.0, %v3794
        %v3796 = vpop.f32.mrf.mxu0
        %v3797 = vadd.f32 0.0, %v3796
        %v3798 = vpop.f32.mrf.mxu0
        %v3799 = vadd.f32 0.0, %v3798
        %3800 = vdwg.mxu0
        %3801 = vmatprep.subr.bf16.mxu0 %v3654
        %3802 = vmatpush1.bf16.msra.mxu0 %v3653
        %3803 = vmatprep.subr.bf16.mxu0 %v3649
        %3804 = vmatpush1.bf16.msra.mxu0 %v3648
        %3805 = vmatprep.subr.bf16.mxu0 %v3644
        %3806 = vmatpush1.bf16.msra.mxu0 %v3643
        %3807 = vmatprep.subr.bf16.mxu0 %v3639
        %3808 = vmatpush1.bf16.msra.mxu0 %v3638
        %3809 = vmatprep.subr.bf16.mxu0 %v3634
        %3810 = vmatpush1.bf16.msra.mxu0 %v3633
        %3811 = vmatprep.subr.bf16.mxu0 %v3629
        %3812 = vmatpush1.bf16.msra.mxu0 %v3628
        %3813 = vmatprep.subr.bf16.mxu0 %v3624
        %3814 = vmatpush1.bf16.msra.mxu0 %v3623
        %3815 = vmatprep.subr.bf16.mxu0 %v3619
        %3816 = vmatpush1.bf16.msra.mxu0 %v3618
        %3817 = vmatprep.subr.bf16.mxu0 0
        %3818 = vmatpush2.bf16.msra.mxu0 0
        %3819 = vmatprep.subr.bf16.mxu0 0
        %3820 = vmatpush2.bf16.msra.mxu0 0
        %3821 = vmatprep.subr.bf16.mxu0 0
        %3822 = vmatpush2.bf16.msra.mxu0 0
        %3823 = vmatprep.subr.bf16.mxu0 0
        %3824 = vmatpush2.bf16.msra.mxu0 0
        %3825 = vmatprep.subr.bf16.mxu0 0
        %3826 = vmatpush2.bf16.msra.mxu0 0
        %3827 = vmatprep.subr.bf16.mxu0 0
        %3828 = vmatpush2.bf16.msra.mxu0 0
        %3829 = vmatprep.subr.bf16.mxu0 %v3664
        %3830 = vmatpush2.bf16.msra.mxu0 %v3663
        %3831 = vmatprep.subr.bf16.mxu0 %v3659
        %3832 = vmatpush2.bf16.msra.mxu0 %v3658
        %3833 = vmatprep.mubr.bf16.mxu0 %v3717
        %3834 = vmatmul.mubr.bf16.gmra.mxu0 %v3253
        %v3835 = vpop.f32.mrf.mxu0
        %v3836 = vadd.f32 0.0, %v3835
        %v3837 = vpop.f32.mrf.mxu0
        %v3838 = vadd.f32 0.0, %v3837
        %v3839 = vpop.f32.mrf.mxu0
        %v3840 = vadd.f32 0.0, %v3839
        %v3841 = vpop.f32.mrf.mxu0
        %v3842 = vadd.f32 0.0, %v3841
        %3843 = vmatprep.mubr.bf16.mxu0 %v3720
        %3844 = vmatmul.mubr.bf16.gmra.mxu0 %v3319
        %v3845 = vpop.f32.mrf.mxu0
        %v3846 = vadd.f32 0.0, %v3845
        %v3847 = vpop.f32.mrf.mxu0
        %v3848 = vadd.f32 0.0, %v3847
        %v3849 = vpop.f32.mrf.mxu0
        %v3850 = vadd.f32 0.0, %v3849
        %v3851 = vpop.f32.mrf.mxu0
        %v3852 = vadd.f32 0.0, %v3851
        %3853 = vmatprep.mubr.bf16.mxu0 %v3723
        %3854 = vmatmul.mubr.bf16.gmra.mxu0 %v3385
        %v3855 = vpop.f32.mrf.mxu0
        %v3856 = vadd.f32 0.0, %v3855
        %v3857 = vpop.f32.mrf.mxu0
        %v3858 = vadd.f32 0.0, %v3857
        %v3859 = vpop.f32.mrf.mxu0
        %v3860 = vadd.f32 0.0, %v3859
        %v3861 = vpop.f32.mrf.mxu0
        %v3862 = vadd.f32 0.0, %v3861
        %3863 = vmatprep.mubr.bf16.mxu0 %v3726
        %3864 = vmatmul.mubr.bf16.gmra.mxu0 %v3450
        %v3865 = vpop.f32.mrf.mxu0
        %v3866 = vadd.f32 0.0, %v3865
        %v3867 = vpop.f32.mrf.mxu0
        %v3868 = vadd.f32 0.0, %v3867
        %v3869 = vpop.f32.mrf.mxu0
        %v3870 = vadd.f32 0.0, %v3869
        %v3871 = vpop.f32.mrf.mxu0
        %v3872 = vadd.f32 0.0, %v3871
        %3873 = vdwg.mxu0
        %3874 = vmatprep.subr.bf16.mxu0 0
        %3875 = vmatpush1.bf16.msra.mxu0 %v3655
        %3876 = vmatprep.subr.bf16.mxu0 0
        %3877 = vmatpush1.bf16.msra.mxu0 %v3650
        %3878 = vmatprep.subr.bf16.mxu0 0
        %3879 = vmatpush1.bf16.msra.mxu0 %v3645
        %3880 = vmatprep.subr.bf16.mxu0 0
        %3881 = vmatpush1.bf16.msra.mxu0 %v3640
        %3882 = vmatprep.subr.bf16.mxu0 0
        %3883 = vmatpush1.bf16.msra.mxu0 %v3635
        %3884 = vmatprep.subr.bf16.mxu0 0
        %3885 = vmatpush1.bf16.msra.mxu0 %v3630
        %3886 = vmatprep.subr.bf16.mxu0 0
        %3887 = vmatpush1.bf16.msra.mxu0 %v3625
        %3888 = vmatprep.subr.bf16.mxu0 0
        %3889 = vmatpush1.bf16.msra.mxu0 %v3620
        %3890 = vmatprep.subr.bf16.mxu0 0
        %3891 = vmatpush2.bf16.msra.mxu0 0
        %3892 = vmatprep.subr.bf16.mxu0 0
        %3893 = vmatpush2.bf16.msra.mxu0 0
        %3894 = vmatprep.subr.bf16.mxu0 0
        %3895 = vmatpush2.bf16.msra.mxu0 0
        %3896 = vmatprep.subr.bf16.mxu0 0
        %3897 = vmatpush2.bf16.msra.mxu0 0
        %3898 = vmatprep.subr.bf16.mxu0 0
        %3899 = vmatpush2.bf16.msra.mxu0 0
        %3900 = vmatprep.subr.bf16.mxu0 0
        %3901 = vmatpush2.bf16.msra.mxu0 0
        %3902 = vmatprep.subr.bf16.mxu0 0
        %3903 = vmatpush2.bf16.msra.mxu0 %v3665
        %3904 = vmatprep.subr.bf16.mxu0 0
        %3905 = vmatpush2.bf16.msra.mxu0 %v3660
        %3906 = vmatprep.mubr.bf16.mxu0 %v3717
        %3907 = vmatmul.mubr.bf16.gmra.mxu0 %v3253
        %v3908 = vpop.f32.mrf.mxu0
        %v3909 = vadd.f32 0.0, %v3908
        %v3910 = vpop.f32.mrf.mxu0
        %v3911 = vpop.f32.mrf.mxu0
        %v3912 = vadd.f32 0.0, %v3911
        %v3913 = vpop.f32.mrf.mxu0
        %3914 = vmatprep.mubr.bf16.mxu0 %v3720
        %3915 = vmatmul.mubr.bf16.gmra.mxu0 %v3319
        %v3916 = vpop.f32.mrf.mxu0
        %v3917 = vadd.f32 0.0, %v3916
        %v3918 = vpop.f32.mrf.mxu0
        %v3919 = vpop.f32.mrf.mxu0
        %v3920 = vadd.f32 0.0, %v3919
        %v3921 = vpop.f32.mrf.mxu0
        %3922 = vmatprep.mubr.bf16.mxu0 %v3723
        %3923 = vmatmul.mubr.bf16.gmra.mxu0 %v3385
        %v3924 = vpop.f32.mrf.mxu0
        %v3925 = vadd.f32 0.0, %v3924
        %v3926 = vpop.f32.mrf.mxu0
        %v3927 = vpop.f32.mrf.mxu0
        %v3928 = vadd.f32 0.0, %v3927
        %v3929 = vpop.f32.mrf.mxu0
        %3930 = vmatprep.mubr.bf16.mxu0 %v3726
        %3931 = vmatmul.mubr.bf16.gmra.mxu0 %v3450
        %v3932 = vpop.f32.mrf.mxu0
        %v3933 = vadd.f32 0.0, %v3932
        %v3934 = vpop.f32.mrf.mxu0
        %v3935 = vpop.f32.mrf.mxu0
        %v3936 = vadd.f32 0.0, %v3935
        %v3937 = vpop.f32.mrf.mxu0
        %3938 = vdwg.mxu0
        %v3979 = vcombine.low %v3763, %v3765
        %v3980 = vcombine.high %v3763, %v3765
        %v3981 = vcombine.low %v3836, %v3838
        %v3982 = vcombine.high %v3836, %v3838
        %v3983 = vcombine.high %v3909, %v3909
        %v3985 = vunpack.c.l.s4 1966171168
        %v3986 = vunpack.c.0.s8 %v3985
        %v3987 = vlaneseq
        %v3988 = vshrl.u32 %v3987, 7
        %v3989 = vsub.s32 %v3986, %v3988
        %v3990 = vrot.slane %v3979, %v3989
        %v3992 = vunpack.c.l.s4 1966171168
        %v3993 = vunpack.c.0.s8 %v3992
        %v3994 = vlaneseq
        %v3995 = vshrl.u32 %v3994, 7
        %v3996 = vsub.s32 %v3993, %v3995
        %v3997 = vrot.slane %v3980, %v3996
        %v3999 = vunpack.c.l.s4 1966171168
        %v4000 = vunpack.c.0.s8 %v3999
        %v4001 = vlaneseq
        %v4002 = vshrl.u32 %v4001, 7
        %v4003 = vsub.s32 %v4000, %v4002
        %v4004 = vrot.slane %v3981, %v4003
        %v4006 = vunpack.c.l.s4 1966171168
        %v4007 = vunpack.c.0.s8 %v4006
        %v4008 = vlaneseq
        %v4009 = vshrl.u32 %v4008, 7
        %v4010 = vsub.s32 %v4007, %v4009
        %v4011 = vrot.slane %v3982, %v4010
        %v4013 = vunpack.c.l.s4 1966171168
        %v4014 = vunpack.c.0.s8 %v4013
        %v4015 = vlaneseq
        %v4016 = vshrl.u32 %v4015, 7
        %v4017 = vsub.s32 %v4014, %v4016
        %v4018 = vrot.slane %v3909, %v4017
        %v4020 = vunpack.c.l.s4 1966171168
        %v4021 = vunpack.c.0.s8 %v4020
        %v4022 = vlaneseq
        %v4023 = vshrl.u32 %v4022, 7
        %v4024 = vsub.s32 %v4021, %v4023
        %v4025 = vrot.slane %v3983, %v4024
        %v4026 = vcombine.low %v3990, %v4004
        %v4027 = vcombine.high %v3990, %v4004
        %v4028 = vcombine.low %v3997, %v4011
        %v4029 = vcombine.high %v3997, %v4011
        %v4030 = vcombine.high %v4018, %v4018
        %v4031 = vcombine.high %v4025, %v4025
        %v4033 = vunpack.c.l.s4 1966171168
        %v4034 = vunpack.c.0.s8 %v4033
        %v4035 = vlaneseq
        %v4036 = vshrl.u32 %v4035, 7
        %v4037 = vsub.s32 %v4034, %v4036
        %v4038 = vrot.slane %v4026, %v4037
        %v4040 = vunpack.c.l.s4 1966171168
        %v4041 = vunpack.c.0.s8 %v4040
        %v4042 = vlaneseq
        %v4043 = vshrl.u32 %v4042, 7
        %v4044 = vsub.s32 %v4041, %v4043
        %v4045 = vrot.slane %v4028, %v4044
        %v4047 = vunpack.c.l.s4 1966171168
        %v4048 = vunpack.c.0.s8 %v4047
        %v4049 = vlaneseq
        %v4050 = vshrl.u32 %v4049, 7
        %v4051 = vsub.s32 %v4048, %v4050
        %v4052 = vrot.slane %v4027, %v4051
        %v4054 = vunpack.c.l.s4 1966171168
        %v4055 = vunpack.c.0.s8 %v4054
        %v4056 = vlaneseq
        %v4057 = vshrl.u32 %v4056, 7
        %v4058 = vsub.s32 %v4055, %v4057
        %v4059 = vrot.slane %v4029, %v4058
        %v4061 = vunpack.c.l.s4 1966171168
        %v4062 = vunpack.c.0.s8 %v4061
        %v4063 = vlaneseq
        %v4064 = vshrl.u32 %v4063, 7
        %v4065 = vsub.s32 %v4062, %v4064
        %v4066 = vrot.slane %v4018, %v4065
        %v4068 = vunpack.c.l.s4 1966171168
        %v4069 = vunpack.c.0.s8 %v4068
        %v4070 = vlaneseq
        %v4071 = vshrl.u32 %v4070, 7
        %v4072 = vsub.s32 %v4069, %v4071
        %v4073 = vrot.slane %v4025, %v4072
        %v4075 = vunpack.c.l.s4 1966171168
        %v4076 = vunpack.c.0.s8 %v4075
        %v4077 = vlaneseq
        %v4078 = vshrl.u32 %v4077, 7
        %v4079 = vsub.s32 %v4076, %v4078
        %v4080 = vrot.slane %v4030, %v4079
        %v4082 = vunpack.c.l.s4 1966171168
        %v4083 = vunpack.c.0.s8 %v4082
        %v4084 = vlaneseq
        %v4085 = vshrl.u32 %v4084, 7
        %v4086 = vsub.s32 %v4083, %v4085
        %v4087 = vrot.slane %v4031, %v4086
        %v4088 = vcombine.low %v4038, %v4066
        %v4089 = vcombine.high %v4038, %v4066
        %v4090 = vcombine.low %v4045, %v4073
        %v4091 = vcombine.high %v4045, %v4073
        %v4092 = vcombine.low %v4052, %v4080
        %v4093 = vcombine.high %v4052, %v4080
        %v4094 = vcombine.low %v4059, %v4087
        %v4095 = vcombine.high %v4059, %v4087
        %v4096 = vcombine.low %v3767, %v3769
        %v4097 = vcombine.high %v3767, %v3769
        %v4098 = vcombine.low %v3840, %v3842
        %v4099 = vcombine.high %v3840, %v3842
        %v4100 = vcombine.high %v3912, %v3912
        %v4102 = vunpack.c.l.s4 1966171168
        %v4103 = vunpack.c.0.s8 %v4102
        %v4104 = vlaneseq
        %v4105 = vshrl.u32 %v4104, 7
        %v4106 = vsub.s32 %v4103, %v4105
        %v4107 = vrot.slane %v4096, %v4106
        %v4109 = vunpack.c.l.s4 1966171168
        %v4110 = vunpack.c.0.s8 %v4109
        %v4111 = vlaneseq
        %v4112 = vshrl.u32 %v4111, 7
        %v4113 = vsub.s32 %v4110, %v4112
        %v4114 = vrot.slane %v4097, %v4113
        %v4116 = vunpack.c.l.s4 1966171168
        %v4117 = vunpack.c.0.s8 %v4116
        %v4118 = vlaneseq
        %v4119 = vshrl.u32 %v4118, 7
        %v4120 = vsub.s32 %v4117, %v4119
        %v4121 = vrot.slane %v4098, %v4120
        %v4123 = vunpack.c.l.s4 1966171168
        %v4124 = vunpack.c.0.s8 %v4123
        %v4125 = vlaneseq
        %v4126 = vshrl.u32 %v4125, 7
        %v4127 = vsub.s32 %v4124, %v4126
        %v4128 = vrot.slane %v4099, %v4127
        %v4130 = vunpack.c.l.s4 1966171168
        %v4131 = vunpack.c.0.s8 %v4130
        %v4132 = vlaneseq
        %v4133 = vshrl.u32 %v4132, 7
        %v4134 = vsub.s32 %v4131, %v4133
        %v4135 = vrot.slane %v3912, %v4134
        %v4137 = vunpack.c.l.s4 1966171168
        %v4138 = vunpack.c.0.s8 %v4137
        %v4139 = vlaneseq
        %v4140 = vshrl.u32 %v4139, 7
        %v4141 = vsub.s32 %v4138, %v4140
        %v4142 = vrot.slane %v4100, %v4141
        %v4143 = vcombine.low %v4107, %v4121
        %v4144 = vcombine.high %v4107, %v4121
        %v4145 = vcombine.low %v4114, %v4128
        %v4146 = vcombine.high %v4114, %v4128
        %v4147 = vcombine.high %v4135, %v4135
        %v4148 = vcombine.high %v4142, %v4142
        %v4150 = vunpack.c.l.s4 1966171168
        %v4151 = vunpack.c.0.s8 %v4150
        %v4152 = vlaneseq
        %v4153 = vshrl.u32 %v4152, 7
        %v4154 = vsub.s32 %v4151, %v4153
        %v4155 = vrot.slane %v4143, %v4154
        %v4157 = vunpack.c.l.s4 1966171168
        %v4158 = vunpack.c.0.s8 %v4157
        %v4159 = vlaneseq
        %v4160 = vshrl.u32 %v4159, 7
        %v4161 = vsub.s32 %v4158, %v4160
        %v4162 = vrot.slane %v4145, %v4161
        %v4164 = vunpack.c.l.s4 1966171168
        %v4165 = vunpack.c.0.s8 %v4164
        %v4166 = vlaneseq
        %v4167 = vshrl.u32 %v4166, 7
        %v4168 = vsub.s32 %v4165, %v4167
        %v4169 = vrot.slane %v4144, %v4168
        %v4171 = vunpack.c.l.s4 1966171168
        %v4172 = vunpack.c.0.s8 %v4171
        %v4173 = vlaneseq
        %v4174 = vshrl.u32 %v4173, 7
        %v4175 = vsub.s32 %v4172, %v4174
        %v4176 = vrot.slane %v4146, %v4175
        %v4178 = vunpack.c.l.s4 1966171168
        %v4179 = vunpack.c.0.s8 %v4178
        %v4180 = vlaneseq
        %v4181 = vshrl.u32 %v4180, 7
        %v4182 = vsub.s32 %v4179, %v4181
        %v4183 = vrot.slane %v4135, %v4182
        %v4185 = vunpack.c.l.s4 1966171168
        %v4186 = vunpack.c.0.s8 %v4185
        %v4187 = vlaneseq
        %v4188 = vshrl.u32 %v4187, 7
        %v4189 = vsub.s32 %v4186, %v4188
        %v4190 = vrot.slane %v4142, %v4189
        %v4192 = vunpack.c.l.s4 1966171168
        %v4193 = vunpack.c.0.s8 %v4192
        %v4194 = vlaneseq
        %v4195 = vshrl.u32 %v4194, 7
        %v4196 = vsub.s32 %v4193, %v4195
        %v4197 = vrot.slane %v4147, %v4196
        %v4199 = vunpack.c.l.s4 1966171168
        %v4200 = vunpack.c.0.s8 %v4199
        %v4201 = vlaneseq
        %v4202 = vshrl.u32 %v4201, 7
        %v4203 = vsub.s32 %v4200, %v4202
        %v4204 = vrot.slane %v4148, %v4203
        %v4205 = vcombine.low %v4155, %v4183
        %v4206 = vcombine.high %v4155, %v4183
        %v4207 = vcombine.low %v4162, %v4190
        %v4208 = vcombine.high %v4162, %v4190
        %v4209 = vcombine.low %v4169, %v4197
        %v4210 = vcombine.high %v4169, %v4197
        %v4211 = vcombine.low %v4176, %v4204
        %v4212 = vcombine.high %v4176, %v4204
        %v4213 = vcombine.low %v3773, %v3775
        %v4214 = vcombine.high %v3773, %v3775
        %v4215 = vcombine.low %v3846, %v3848
        %v4216 = vcombine.high %v3846, %v3848
        %v4217 = vcombine.high %v3917, %v3917
        %v4219 = vunpack.c.l.s4 1966171168
        %v4220 = vunpack.c.0.s8 %v4219
        %v4221 = vlaneseq
        %v4222 = vshrl.u32 %v4221, 7
        %v4223 = vsub.s32 %v4220, %v4222
        %v4224 = vrot.slane %v4213, %v4223
        %v4226 = vunpack.c.l.s4 1966171168
        %v4227 = vunpack.c.0.s8 %v4226
        %v4228 = vlaneseq
        %v4229 = vshrl.u32 %v4228, 7
        %v4230 = vsub.s32 %v4227, %v4229
        %v4231 = vrot.slane %v4214, %v4230
        %v4233 = vunpack.c.l.s4 1966171168
        %v4234 = vunpack.c.0.s8 %v4233
        %v4235 = vlaneseq
        %v4236 = vshrl.u32 %v4235, 7
        %v4237 = vsub.s32 %v4234, %v4236
        %v4238 = vrot.slane %v4215, %v4237
        %v4240 = vunpack.c.l.s4 1966171168
        %v4241 = vunpack.c.0.s8 %v4240
        %v4242 = vlaneseq
        %v4243 = vshrl.u32 %v4242, 7
        %v4244 = vsub.s32 %v4241, %v4243
        %v4245 = vrot.slane %v4216, %v4244
        %v4247 = vunpack.c.l.s4 1966171168
        %v4248 = vunpack.c.0.s8 %v4247
        %v4249 = vlaneseq
        %v4250 = vshrl.u32 %v4249, 7
        %v4251 = vsub.s32 %v4248, %v4250
        %v4252 = vrot.slane %v3917, %v4251
        %v4254 = vunpack.c.l.s4 1966171168
        %v4255 = vunpack.c.0.s8 %v4254
        %v4256 = vlaneseq
        %v4257 = vshrl.u32 %v4256, 7
        %v4258 = vsub.s32 %v4255, %v4257
        %v4259 = vrot.slane %v4217, %v4258
        %v4260 = vcombine.low %v4224, %v4238
        %v4261 = vcombine.high %v4224, %v4238
        %v4262 = vcombine.low %v4231, %v4245
        %v4263 = vcombine.high %v4231, %v4245
        %v4264 = vcombine.high %v4252, %v4252
        %v4265 = vcombine.high %v4259, %v4259
        %v4267 = vunpack.c.l.s4 1966171168
        %v4268 = vunpack.c.0.s8 %v4267
        %v4269 = vlaneseq
        %v4270 = vshrl.u32 %v4269, 7
        %v4271 = vsub.s32 %v4268, %v4270
        %v4272 = vrot.slane %v4260, %v4271
        %v4274 = vunpack.c.l.s4 1966171168
        %v4275 = vunpack.c.0.s8 %v4274
        %v4276 = vlaneseq
        %v4277 = vshrl.u32 %v4276, 7
        %v4278 = vsub.s32 %v4275, %v4277
        %v4279 = vrot.slane %v4262, %v4278
        %v4281 = vunpack.c.l.s4 1966171168
        %v4282 = vunpack.c.0.s8 %v4281
        %v4283 = vlaneseq
        %v4284 = vshrl.u32 %v4283, 7
        %v4285 = vsub.s32 %v4282, %v4284
        %v4286 = vrot.slane %v4261, %v4285
        %v4288 = vunpack.c.l.s4 1966171168
        %v4289 = vunpack.c.0.s8 %v4288
        %v4290 = vlaneseq
        %v4291 = vshrl.u32 %v4290, 7
        %v4292 = vsub.s32 %v4289, %v4291
        %v4293 = vrot.slane %v4263, %v4292
        %v4295 = vunpack.c.l.s4 1966171168
        %v4296 = vunpack.c.0.s8 %v4295
        %v4297 = vlaneseq
        %v4298 = vshrl.u32 %v4297, 7
        %v4299 = vsub.s32 %v4296, %v4298
        %v4300 = vrot.slane %v4252, %v4299
        %v4302 = vunpack.c.l.s4 1966171168
        %v4303 = vunpack.c.0.s8 %v4302
        %v4304 = vlaneseq
        %v4305 = vshrl.u32 %v4304, 7
        %v4306 = vsub.s32 %v4303, %v4305
        %v4307 = vrot.slane %v4259, %v4306
        %v4309 = vunpack.c.l.s4 1966171168
        %v4310 = vunpack.c.0.s8 %v4309
        %v4311 = vlaneseq
        %v4312 = vshrl.u32 %v4311, 7
        %v4313 = vsub.s32 %v4310, %v4312
        %v4314 = vrot.slane %v4264, %v4313
        %v4316 = vunpack.c.l.s4 1966171168
        %v4317 = vunpack.c.0.s8 %v4316
        %v4318 = vlaneseq
        %v4319 = vshrl.u32 %v4318, 7
        %v4320 = vsub.s32 %v4317, %v4319
        %v4321 = vrot.slane %v4265, %v4320
        %v4322 = vcombine.low %v4272, %v4300
        %v4323 = vcombine.high %v4272, %v4300
        %v4324 = vcombine.low %v4279, %v4307
        %v4325 = vcombine.high %v4279, %v4307
        %v4326 = vcombine.low %v4286, %v4314
        %v4327 = vcombine.high %v4286, %v4314
        %v4328 = vcombine.low %v4293, %v4321
        %v4329 = vcombine.high %v4293, %v4321
        %v4330 = vcombine.low %v3777, %v3779
        %v4331 = vcombine.high %v3777, %v3779
        %v4332 = vcombine.low %v3850, %v3852
        %v4333 = vcombine.high %v3850, %v3852
        %v4334 = vcombine.high %v3920, %v3920
        %v4336 = vunpack.c.l.s4 1966171168
        %v4337 = vunpack.c.0.s8 %v4336
        %v4338 = vlaneseq
        %v4339 = vshrl.u32 %v4338, 7
        %v4340 = vsub.s32 %v4337, %v4339
        %v4341 = vrot.slane %v4330, %v4340
        %v4343 = vunpack.c.l.s4 1966171168
        %v4344 = vunpack.c.0.s8 %v4343
        %v4345 = vlaneseq
        %v4346 = vshrl.u32 %v4345, 7
        %v4347 = vsub.s32 %v4344, %v4346
        %v4348 = vrot.slane %v4331, %v4347
        %v4350 = vunpack.c.l.s4 1966171168
        %v4351 = vunpack.c.0.s8 %v4350
        %v4352 = vlaneseq
        %v4353 = vshrl.u32 %v4352, 7
        %v4354 = vsub.s32 %v4351, %v4353
        %v4355 = vrot.slane %v4332, %v4354
        %v4357 = vunpack.c.l.s4 1966171168
        %v4358 = vunpack.c.0.s8 %v4357
        %v4359 = vlaneseq
        %v4360 = vshrl.u32 %v4359, 7
        %v4361 = vsub.s32 %v4358, %v4360
        %v4362 = vrot.slane %v4333, %v4361
        %v4364 = vunpack.c.l.s4 1966171168
        %v4365 = vunpack.c.0.s8 %v4364
        %v4366 = vlaneseq
        %v4367 = vshrl.u32 %v4366, 7
        %v4368 = vsub.s32 %v4365, %v4367
        %v4369 = vrot.slane %v3920, %v4368
        %v4371 = vunpack.c.l.s4 1966171168
        %v4372 = vunpack.c.0.s8 %v4371
        %v4373 = vlaneseq
        %v4374 = vshrl.u32 %v4373, 7
        %v4375 = vsub.s32 %v4372, %v4374
        %v4376 = vrot.slane %v4334, %v4375
        %v4377 = vcombine.low %v4341, %v4355
        %v4378 = vcombine.high %v4341, %v4355
        %v4379 = vcombine.low %v4348, %v4362
        %v4380 = vcombine.high %v4348, %v4362
        %v4381 = vcombine.high %v4369, %v4369
        %v4382 = vcombine.high %v4376, %v4376
        %v4384 = vunpack.c.l.s4 1966171168
        %v4385 = vunpack.c.0.s8 %v4384
        %v4386 = vlaneseq
        %v4387 = vshrl.u32 %v4386, 7
        %v4388 = vsub.s32 %v4385, %v4387
        %v4389 = vrot.slane %v4377, %v4388
        %v4391 = vunpack.c.l.s4 1966171168
        %v4392 = vunpack.c.0.s8 %v4391
        %v4393 = vlaneseq
        %v4394 = vshrl.u32 %v4393, 7
        %v4395 = vsub.s32 %v4392, %v4394
        %v4396 = vrot.slane %v4379, %v4395
        %v4398 = vunpack.c.l.s4 1966171168
        %v4399 = vunpack.c.0.s8 %v4398
        %v4400 = vlaneseq
        %v4401 = vshrl.u32 %v4400, 7
        %v4402 = vsub.s32 %v4399, %v4401
        %v4403 = vrot.slane %v4378, %v4402
        %v4405 = vunpack.c.l.s4 1966171168
        %v4406 = vunpack.c.0.s8 %v4405
        %v4407 = vlaneseq
        %v4408 = vshrl.u32 %v4407, 7
        %v4409 = vsub.s32 %v4406, %v4408
        %v4410 = vrot.slane %v4380, %v4409
        %v4412 = vunpack.c.l.s4 1966171168
        %v4413 = vunpack.c.0.s8 %v4412
        %v4414 = vlaneseq
        %v4415 = vshrl.u32 %v4414, 7
        %v4416 = vsub.s32 %v4413, %v4415
        %v4417 = vrot.slane %v4369, %v4416
        %v4419 = vunpack.c.l.s4 1966171168
        %v4420 = vunpack.c.0.s8 %v4419
        %v4421 = vlaneseq
        %v4422 = vshrl.u32 %v4421, 7
        %v4423 = vsub.s32 %v4420, %v4422
        %v4424 = vrot.slane %v4376, %v4423
        %v4426 = vunpack.c.l.s4 1966171168
        %v4427 = vunpack.c.0.s8 %v4426
        %v4428 = vlaneseq
        %v4429 = vshrl.u32 %v4428, 7
        %v4430 = vsub.s32 %v4427, %v4429
        %v4431 = vrot.slane %v4381, %v4430
        %v4433 = vunpack.c.l.s4 1966171168
        %v4434 = vunpack.c.0.s8 %v4433
        %v4435 = vlaneseq
        %v4436 = vshrl.u32 %v4435, 7
        %v4437 = vsub.s32 %v4434, %v4436
        %v4438 = vrot.slane %v4382, %v4437
        %v4439 = vcombine.low %v4389, %v4417
        %v4440 = vcombine.high %v4389, %v4417
        %v4441 = vcombine.low %v4396, %v4424
        %v4442 = vcombine.high %v4396, %v4424
        %v4443 = vcombine.low %v4403, %v4431
        %v4444 = vcombine.high %v4403, %v4431
        %v4445 = vcombine.low %v4410, %v4438
        %v4446 = vcombine.high %v4410, %v4438
        %v4447 = vcombine.low %v3783, %v3785
        %v4448 = vcombine.high %v3783, %v3785
        %v4449 = vcombine.low %v3856, %v3858
        %v4450 = vcombine.high %v3856, %v3858
        %v4451 = vcombine.high %v3925, %v3925
        %v4453 = vunpack.c.l.s4 1966171168
        %v4454 = vunpack.c.0.s8 %v4453
        %v4455 = vlaneseq
        %v4456 = vshrl.u32 %v4455, 7
        %v4457 = vsub.s32 %v4454, %v4456
        %v4458 = vrot.slane %v4447, %v4457
        %v4460 = vunpack.c.l.s4 1966171168
        %v4461 = vunpack.c.0.s8 %v4460
        %v4462 = vlaneseq
        %v4463 = vshrl.u32 %v4462, 7
        %v4464 = vsub.s32 %v4461, %v4463
        %v4465 = vrot.slane %v4448, %v4464
        %v4467 = vunpack.c.l.s4 1966171168
        %v4468 = vunpack.c.0.s8 %v4467
        %v4469 = vlaneseq
        %v4470 = vshrl.u32 %v4469, 7
        %v4471 = vsub.s32 %v4468, %v4470
        %v4472 = vrot.slane %v4449, %v4471
        %v4474 = vunpack.c.l.s4 1966171168
        %v4475 = vunpack.c.0.s8 %v4474
        %v4476 = vlaneseq
        %v4477 = vshrl.u32 %v4476, 7
        %v4478 = vsub.s32 %v4475, %v4477
        %v4479 = vrot.slane %v4450, %v4478
        %v4481 = vunpack.c.l.s4 1966171168
        %v4482 = vunpack.c.0.s8 %v4481
        %v4483 = vlaneseq
        %v4484 = vshrl.u32 %v4483, 7
        %v4485 = vsub.s32 %v4482, %v4484
        %v4486 = vrot.slane %v3925, %v4485
        %v4488 = vunpack.c.l.s4 1966171168
        %v4489 = vunpack.c.0.s8 %v4488
        %v4490 = vlaneseq
        %v4491 = vshrl.u32 %v4490, 7
        %v4492 = vsub.s32 %v4489, %v4491
        %v4493 = vrot.slane %v4451, %v4492
        %v4494 = vcombine.low %v4458, %v4472
        %v4495 = vcombine.high %v4458, %v4472
        %v4496 = vcombine.low %v4465, %v4479
        %v4497 = vcombine.high %v4465, %v4479
        %v4498 = vcombine.high %v4486, %v4486
        %v4499 = vcombine.high %v4493, %v4493
        %v4501 = vunpack.c.l.s4 1966171168
        %v4502 = vunpack.c.0.s8 %v4501
        %v4503 = vlaneseq
        %v4504 = vshrl.u32 %v4503, 7
        %v4505 = vsub.s32 %v4502, %v4504
        %v4506 = vrot.slane %v4494, %v4505
        %v4508 = vunpack.c.l.s4 1966171168
        %v4509 = vunpack.c.0.s8 %v4508
        %v4510 = vlaneseq
        %v4511 = vshrl.u32 %v4510, 7
        %v4512 = vsub.s32 %v4509, %v4511
        %v4513 = vrot.slane %v4496, %v4512
        %v4515 = vunpack.c.l.s4 1966171168
        %v4516 = vunpack.c.0.s8 %v4515
        %v4517 = vlaneseq
        %v4518 = vshrl.u32 %v4517, 7
        %v4519 = vsub.s32 %v4516, %v4518
        %v4520 = vrot.slane %v4495, %v4519
        %v4522 = vunpack.c.l.s4 1966171168
        %v4523 = vunpack.c.0.s8 %v4522
        %v4524 = vlaneseq
        %v4525 = vshrl.u32 %v4524, 7
        %v4526 = vsub.s32 %v4523, %v4525
        %v4527 = vrot.slane %v4497, %v4526
        %v4529 = vunpack.c.l.s4 1966171168
        %v4530 = vunpack.c.0.s8 %v4529
        %v4531 = vlaneseq
        %v4532 = vshrl.u32 %v4531, 7
        %v4533 = vsub.s32 %v4530, %v4532
        %v4534 = vrot.slane %v4486, %v4533
        %v4536 = vunpack.c.l.s4 1966171168
        %v4537 = vunpack.c.0.s8 %v4536
        %v4538 = vlaneseq
        %v4539 = vshrl.u32 %v4538, 7
        %v4540 = vsub.s32 %v4537, %v4539
        %v4541 = vrot.slane %v4493, %v4540
        %v4543 = vunpack.c.l.s4 1966171168
        %v4544 = vunpack.c.0.s8 %v4543
        %v4545 = vlaneseq
        %v4546 = vshrl.u32 %v4545, 7
        %v4547 = vsub.s32 %v4544, %v4546
        %v4548 = vrot.slane %v4498, %v4547
        %v4550 = vunpack.c.l.s4 1966171168
        %v4551 = vunpack.c.0.s8 %v4550
        %v4552 = vlaneseq
        %v4553 = vshrl.u32 %v4552, 7
        %v4554 = vsub.s32 %v4551, %v4553
        %v4555 = vrot.slane %v4499, %v4554
        %v4556 = vcombine.low %v4506, %v4534
        %v4557 = vcombine.high %v4506, %v4534
        %v4558 = vcombine.low %v4513, %v4541
        %v4559 = vcombine.high %v4513, %v4541
        %v4560 = vcombine.low %v4520, %v4548
        %v4561 = vcombine.high %v4520, %v4548
        %v4562 = vcombine.low %v4527, %v4555
        %v4563 = vcombine.high %v4527, %v4555
        %v4564 = vcombine.low %v3787, %v3789
        %v4565 = vcombine.high %v3787, %v3789
        %v4566 = vcombine.low %v3860, %v3862
        %v4567 = vcombine.high %v3860, %v3862
        %v4568 = vcombine.high %v3928, %v3928
        %v4570 = vunpack.c.l.s4 1966171168
        %v4571 = vunpack.c.0.s8 %v4570
        %v4572 = vlaneseq
        %v4573 = vshrl.u32 %v4572, 7
        %v4574 = vsub.s32 %v4571, %v4573
        %v4575 = vrot.slane %v4564, %v4574
        %v4577 = vunpack.c.l.s4 1966171168
        %v4578 = vunpack.c.0.s8 %v4577
        %v4579 = vlaneseq
        %v4580 = vshrl.u32 %v4579, 7
        %v4581 = vsub.s32 %v4578, %v4580
        %v4582 = vrot.slane %v4565, %v4581
        %v4584 = vunpack.c.l.s4 1966171168
        %v4585 = vunpack.c.0.s8 %v4584
        %v4586 = vlaneseq
        %v4587 = vshrl.u32 %v4586, 7
        %v4588 = vsub.s32 %v4585, %v4587
        %v4589 = vrot.slane %v4566, %v4588
        %v4591 = vunpack.c.l.s4 1966171168
        %v4592 = vunpack.c.0.s8 %v4591
        %v4593 = vlaneseq
        %v4594 = vshrl.u32 %v4593, 7
        %v4595 = vsub.s32 %v4592, %v4594
        %v4596 = vrot.slane %v4567, %v4595
        %v4598 = vunpack.c.l.s4 1966171168
        %v4599 = vunpack.c.0.s8 %v4598
        %v4600 = vlaneseq
        %v4601 = vshrl.u32 %v4600, 7
        %v4602 = vsub.s32 %v4599, %v4601
        %v4603 = vrot.slane %v3928, %v4602
        %v4605 = vunpack.c.l.s4 1966171168
        %v4606 = vunpack.c.0.s8 %v4605
        %v4607 = vlaneseq
        %v4608 = vshrl.u32 %v4607, 7
        %v4609 = vsub.s32 %v4606, %v4608
        %v4610 = vrot.slane %v4568, %v4609
        %v4611 = vcombine.low %v4575, %v4589
        %v4612 = vcombine.high %v4575, %v4589
        %v4613 = vcombine.low %v4582, %v4596
        %v4614 = vcombine.high %v4582, %v4596
        %v4615 = vcombine.high %v4603, %v4603
        %v4616 = vcombine.high %v4610, %v4610
        %v4618 = vunpack.c.l.s4 1966171168
        %v4619 = vunpack.c.0.s8 %v4618
        %v4620 = vlaneseq
        %v4621 = vshrl.u32 %v4620, 7
        %v4622 = vsub.s32 %v4619, %v4621
        %v4623 = vrot.slane %v4611, %v4622
        %v4625 = vunpack.c.l.s4 1966171168
        %v4626 = vunpack.c.0.s8 %v4625
        %v4627 = vlaneseq
        %v4628 = vshrl.u32 %v4627, 7
        %v4629 = vsub.s32 %v4626, %v4628
        %v4630 = vrot.slane %v4613, %v4629
        %v4632 = vunpack.c.l.s4 1966171168
        %v4633 = vunpack.c.0.s8 %v4632
        %v4634 = vlaneseq
        %v4635 = vshrl.u32 %v4634, 7
        %v4636 = vsub.s32 %v4633, %v4635
        %v4637 = vrot.slane %v4612, %v4636
        %v4639 = vunpack.c.l.s4 1966171168
        %v4640 = vunpack.c.0.s8 %v4639
        %v4641 = vlaneseq
        %v4642 = vshrl.u32 %v4641, 7
        %v4643 = vsub.s32 %v4640, %v4642
        %v4644 = vrot.slane %v4614, %v4643
        %v4646 = vunpack.c.l.s4 1966171168
        %v4647 = vunpack.c.0.s8 %v4646
        %v4648 = vlaneseq
        %v4649 = vshrl.u32 %v4648, 7
        %v4650 = vsub.s32 %v4647, %v4649
        %v4651 = vrot.slane %v4603, %v4650
        %v4653 = vunpack.c.l.s4 1966171168
        %v4654 = vunpack.c.0.s8 %v4653
        %v4655 = vlaneseq
        %v4656 = vshrl.u32 %v4655, 7
        %v4657 = vsub.s32 %v4654, %v4656
        %v4658 = vrot.slane %v4610, %v4657
        %v4660 = vunpack.c.l.s4 1966171168
        %v4661 = vunpack.c.0.s8 %v4660
        %v4662 = vlaneseq
        %v4663 = vshrl.u32 %v4662, 7
        %v4664 = vsub.s32 %v4661, %v4663
        %v4665 = vrot.slane %v4615, %v4664
        %v4667 = vunpack.c.l.s4 1966171168
        %v4668 = vunpack.c.0.s8 %v4667
        %v4669 = vlaneseq
        %v4670 = vshrl.u32 %v4669, 7
        %v4671 = vsub.s32 %v4668, %v4670
        %v4672 = vrot.slane %v4616, %v4671
        %v4673 = vcombine.low %v4623, %v4651
        %v4674 = vcombine.high %v4623, %v4651
        %v4675 = vcombine.low %v4630, %v4658
        %v4676 = vcombine.high %v4630, %v4658
        %v4677 = vcombine.low %v4637, %v4665
        %v4678 = vcombine.high %v4637, %v4665
        %v4679 = vcombine.low %v4644, %v4672
        %v4680 = vcombine.high %v4644, %v4672
        %v4681 = vcombine.low %v3793, %v3795
        %v4682 = vcombine.high %v3793, %v3795
        %v4683 = vcombine.low %v3866, %v3868
        %v4684 = vcombine.high %v3866, %v3868
        %v4685 = vcombine.high %v3933, %v3933
        %v4687 = vunpack.c.l.s4 1966171168
        %v4688 = vunpack.c.0.s8 %v4687
        %v4689 = vlaneseq
        %v4690 = vshrl.u32 %v4689, 7
        %v4691 = vsub.s32 %v4688, %v4690
        %v4692 = vrot.slane %v4681, %v4691
        %v4694 = vunpack.c.l.s4 1966171168
        %v4695 = vunpack.c.0.s8 %v4694
        %v4696 = vlaneseq
        %v4697 = vshrl.u32 %v4696, 7
        %v4698 = vsub.s32 %v4695, %v4697
        %v4699 = vrot.slane %v4682, %v4698
        %v4701 = vunpack.c.l.s4 1966171168
        %v4702 = vunpack.c.0.s8 %v4701
        %v4703 = vlaneseq
        %v4704 = vshrl.u32 %v4703, 7
        %v4705 = vsub.s32 %v4702, %v4704
        %v4706 = vrot.slane %v4683, %v4705
        %v4708 = vunpack.c.l.s4 1966171168
        %v4709 = vunpack.c.0.s8 %v4708
        %v4710 = vlaneseq
        %v4711 = vshrl.u32 %v4710, 7
        %v4712 = vsub.s32 %v4709, %v4711
        %v4713 = vrot.slane %v4684, %v4712
        %v4715 = vunpack.c.l.s4 1966171168
        %v4716 = vunpack.c.0.s8 %v4715
        %v4717 = vlaneseq
        %v4718 = vshrl.u32 %v4717, 7
        %v4719 = vsub.s32 %v4716, %v4718
        %v4720 = vrot.slane %v3933, %v4719
        %v4722 = vunpack.c.l.s4 1966171168
        %v4723 = vunpack.c.0.s8 %v4722
        %v4724 = vlaneseq
        %v4725 = vshrl.u32 %v4724, 7
        %v4726 = vsub.s32 %v4723, %v4725
        %v4727 = vrot.slane %v4685, %v4726
        %v4728 = vcombine.low %v4692, %v4706
        %v4729 = vcombine.high %v4692, %v4706
        %v4730 = vcombine.low %v4699, %v4713
        %v4731 = vcombine.high %v4699, %v4713
        %v4732 = vcombine.high %v4720, %v4720
        %v4733 = vcombine.high %v4727, %v4727
        %v4735 = vunpack.c.l.s4 1966171168
        %v4736 = vunpack.c.0.s8 %v4735
        %v4737 = vlaneseq
        %v4738 = vshrl.u32 %v4737, 7
        %v4739 = vsub.s32 %v4736, %v4738
        %v4740 = vrot.slane %v4728, %v4739
        %v4742 = vunpack.c.l.s4 1966171168
        %v4743 = vunpack.c.0.s8 %v4742
        %v4744 = vlaneseq
        %v4745 = vshrl.u32 %v4744, 7
        %v4746 = vsub.s32 %v4743, %v4745
        %v4747 = vrot.slane %v4730, %v4746
        %v4749 = vunpack.c.l.s4 1966171168
        %v4750 = vunpack.c.0.s8 %v4749
        %v4751 = vlaneseq
        %v4752 = vshrl.u32 %v4751, 7
        %v4753 = vsub.s32 %v4750, %v4752
        %v4754 = vrot.slane %v4729, %v4753
        %v4756 = vunpack.c.l.s4 1966171168
        %v4757 = vunpack.c.0.s8 %v4756
        %v4758 = vlaneseq
        %v4759 = vshrl.u32 %v4758, 7
        %v4760 = vsub.s32 %v4757, %v4759
        %v4761 = vrot.slane %v4731, %v4760
        %v4763 = vunpack.c.l.s4 1966171168
        %v4764 = vunpack.c.0.s8 %v4763
        %v4765 = vlaneseq
        %v4766 = vshrl.u32 %v4765, 7
        %v4767 = vsub.s32 %v4764, %v4766
        %v4768 = vrot.slane %v4720, %v4767
        %v4770 = vunpack.c.l.s4 1966171168
        %v4771 = vunpack.c.0.s8 %v4770
        %v4772 = vlaneseq
        %v4773 = vshrl.u32 %v4772, 7
        %v4774 = vsub.s32 %v4771, %v4773
        %v4775 = vrot.slane %v4727, %v4774
        %v4777 = vunpack.c.l.s4 1966171168
        %v4778 = vunpack.c.0.s8 %v4777
        %v4779 = vlaneseq
        %v4780 = vshrl.u32 %v4779, 7
        %v4781 = vsub.s32 %v4778, %v4780
        %v4782 = vrot.slane %v4732, %v4781
        %v4784 = vunpack.c.l.s4 1966171168
        %v4785 = vunpack.c.0.s8 %v4784
        %v4786 = vlaneseq
        %v4787 = vshrl.u32 %v4786, 7
        %v4788 = vsub.s32 %v4785, %v4787
        %v4789 = vrot.slane %v4733, %v4788
        %v4790 = vcombine.low %v4740, %v4768
        %v4791 = vcombine.high %v4740, %v4768
        %v4792 = vcombine.low %v4747, %v4775
        %v4793 = vcombine.high %v4747, %v4775
        %v4794 = vcombine.low %v4754, %v4782
        %v4795 = vcombine.high %v4754, %v4782
        %v4796 = vcombine.low %v4761, %v4789
        %v4797 = vcombine.high %v4761, %v4789
        %v4798 = vcombine.low %v3797, %v3799
        %v4799 = vcombine.high %v3797, %v3799
        %v4800 = vcombine.low %v3870, %v3872
        %v4801 = vcombine.high %v3870, %v3872
        %v4802 = vcombine.high %v3936, %v3936
        %v4804 = vunpack.c.l.s4 1966171168
        %v4805 = vunpack.c.0.s8 %v4804
        %v4806 = vlaneseq
        %v4807 = vshrl.u32 %v4806, 7
        %v4808 = vsub.s32 %v4805, %v4807
        %v4809 = vrot.slane %v4798, %v4808
        %v4811 = vunpack.c.l.s4 1966171168
        %v4812 = vunpack.c.0.s8 %v4811
        %v4813 = vlaneseq
        %v4814 = vshrl.u32 %v4813, 7
        %v4815 = vsub.s32 %v4812, %v4814
        %v4816 = vrot.slane %v4799, %v4815
        %v4818 = vunpack.c.l.s4 1966171168
        %v4819 = vunpack.c.0.s8 %v4818
        %v4820 = vlaneseq
        %v4821 = vshrl.u32 %v4820, 7
        %v4822 = vsub.s32 %v4819, %v4821
        %v4823 = vrot.slane %v4800, %v4822
        %v4825 = vunpack.c.l.s4 1966171168
        %v4826 = vunpack.c.0.s8 %v4825
        %v4827 = vlaneseq
        %v4828 = vshrl.u32 %v4827, 7
        %v4829 = vsub.s32 %v4826, %v4828
        %v4830 = vrot.slane %v4801, %v4829
        %v4832 = vunpack.c.l.s4 1966171168
        %v4833 = vunpack.c.0.s8 %v4832
        %v4834 = vlaneseq
        %v4835 = vshrl.u32 %v4834, 7
        %v4836 = vsub.s32 %v4833, %v4835
        %v4837 = vrot.slane %v3936, %v4836
        %v4839 = vunpack.c.l.s4 1966171168
        %v4840 = vunpack.c.0.s8 %v4839
        %v4841 = vlaneseq
        %v4842 = vshrl.u32 %v4841, 7
        %v4843 = vsub.s32 %v4840, %v4842
        %v4844 = vrot.slane %v4802, %v4843
        %v4845 = vcombine.low %v4809, %v4823
        %v4846 = vcombine.high %v4809, %v4823
        %v4847 = vcombine.low %v4816, %v4830
        %v4848 = vcombine.high %v4816, %v4830
        %v4849 = vcombine.high %v4837, %v4837
        %v4850 = vcombine.high %v4844, %v4844
        %v4852 = vunpack.c.l.s4 1966171168
        %v4853 = vunpack.c.0.s8 %v4852
        %v4854 = vlaneseq
        %v4855 = vshrl.u32 %v4854, 7
        %v4856 = vsub.s32 %v4853, %v4855
        %v4857 = vrot.slane %v4845, %v4856
        %v4859 = vunpack.c.l.s4 1966171168
        %v4860 = vunpack.c.0.s8 %v4859
        %v4861 = vlaneseq
        %v4862 = vshrl.u32 %v4861, 7
        %v4863 = vsub.s32 %v4860, %v4862
        %v4864 = vrot.slane %v4847, %v4863
        %v4866 = vunpack.c.l.s4 1966171168
        %v4867 = vunpack.c.0.s8 %v4866
        %v4868 = vlaneseq
        %v4869 = vshrl.u32 %v4868, 7
        %v4870 = vsub.s32 %v4867, %v4869
        %v4871 = vrot.slane %v4846, %v4870
        %v4873 = vunpack.c.l.s4 1966171168
        %v4874 = vunpack.c.0.s8 %v4873
        %v4875 = vlaneseq
        %v4876 = vshrl.u32 %v4875, 7
        %v4877 = vsub.s32 %v4874, %v4876
        %v4878 = vrot.slane %v4848, %v4877
        %v4880 = vunpack.c.l.s4 1966171168
        %v4881 = vunpack.c.0.s8 %v4880
        %v4882 = vlaneseq
        %v4883 = vshrl.u32 %v4882, 7
        %v4884 = vsub.s32 %v4881, %v4883
        %v4885 = vrot.slane %v4837, %v4884
        %v4887 = vunpack.c.l.s4 1966171168
        %v4888 = vunpack.c.0.s8 %v4887
        %v4889 = vlaneseq
        %v4890 = vshrl.u32 %v4889, 7
        %v4891 = vsub.s32 %v4888, %v4890
        %v4892 = vrot.slane %v4844, %v4891
        %v4894 = vunpack.c.l.s4 1966171168
        %v4895 = vunpack.c.0.s8 %v4894
        %v4896 = vlaneseq
        %v4897 = vshrl.u32 %v4896, 7
        %v4898 = vsub.s32 %v4895, %v4897
        %v4899 = vrot.slane %v4849, %v4898
        %v4901 = vunpack.c.l.s4 1966171168
        %v4902 = vunpack.c.0.s8 %v4901
        %v4903 = vlaneseq
        %v4904 = vshrl.u32 %v4903, 7
        %v4905 = vsub.s32 %v4902, %v4904
        %v4906 = vrot.slane %v4850, %v4905
        %v4907 = vcombine.low %v4857, %v4885
        %v4908 = vcombine.high %v4857, %v4885
        %v4909 = vcombine.low %v4864, %v4892
        %v4910 = vcombine.low %v4871, %v4899
        %v4911 = vcombine.high %v4871, %v4899
        %v4912 = vcombine.low %v4878, %v4906
        %v4975 = vadd.f32 %v1839, %v4088
        %v4976 = vadd.f32 %v1843, %v4092
        %v4977 = vadd.f32 %v1840, %v4089
        %v4978 = vadd.f32 %v1844, %v4093
        %v4979 = vadd.f32 %v1841, %v4090
        %v4980 = vadd.f32 %v1845, %v4094
        %v4981 = vadd.f32 %v1842, %v4091
        %v4982 = vadd.f32 %v1846, %v4095
        %v4983 = vadd.f32 %v1956, %v4205
        %v4984 = vadd.f32 %v1960, %v4209
        %v4985 = vadd.f32 %v1957, %v4206
        %v4986 = vadd.f32 %v1961, %v4210
        %v4987 = vadd.f32 %v1958, %v4207
        %v4988 = vadd.f32 %v1962, %v4211
        %v4989 = vadd.f32 %v1959, %v4208
        %v4990 = vadd.f32 %v1963, %v4212
        %v4991 = vadd.f32 %v2073, %v4322
        %v4992 = vadd.f32 %v2077, %v4326
        %v4993 = vadd.f32 %v2074, %v4323
        %v4994 = vadd.f32 %v2078, %v4327
        %v4995 = vadd.f32 %v2075, %v4324
        %v4996 = vadd.f32 %v2079, %v4328
        %v4997 = vadd.f32 %v2076, %v4325
        %v4998 = vadd.f32 %v2080, %v4329
        %v4999 = vadd.f32 %v2190, %v4439
        %v5000 = vadd.f32 %v2194, %v4443
        %v5001 = vadd.f32 %v2191, %v4440
        %v5002 = vadd.f32 %v2195, %v4444
        %v5003 = vadd.f32 %v2192, %v4441
        %v5004 = vadd.f32 %v2196, %v4445
        %v5005 = vadd.f32 %v2193, %v4442
        %v5006 = vadd.f32 %v1839, %v4446
        %v5007 = vadd.f32 %v1843, %v4556
        %v5008 = vadd.f32 %v1840, %v4560
        %v5009 = vadd.f32 %v1844, %v4557
        %v5010 = vadd.f32 %v1841, %v4561
        %v5011 = vadd.f32 %v1845, %v4558
        %v5012 = vadd.f32 %v1842, %v4562
        %v5013 = vadd.f32 %v1846, %v4559
        %v5014 = vadd.f32 %v1956, %v4563
        %v5015 = vadd.f32 %v1960, %v4673
        %v5016 = vadd.f32 %v1957, %v4677
        %v5017 = vadd.f32 %v1961, %v4674
        %v5018 = vadd.f32 %v1958, %v4678
        %v5019 = vadd.f32 %v1962, %v4675
        %v5020 = vadd.f32 %v1959, %v4679
        %v5021 = vadd.f32 %v1963, %v4676
        %v5022 = vadd.f32 %v2073, %v4680
        %v5023 = vadd.f32 %v2077, %v4790
        %v5024 = vadd.f32 %v2074, %v4794
        %v5025 = vadd.f32 %v2078, %v4791
        %v5026 = vadd.f32 %v2075, %v4795
        %v5027 = vadd.f32 %v2079, %v4792
        %v5028 = vadd.f32 %v2076, %v4796
        %v5029 = vadd.f32 %v2080, %v4793
        %v5030 = vadd.f32 %v2190, %v4797
        %v5031 = vadd.f32 %v2194, %v4907
        %v5032 = vadd.f32 %v2191, %v4910
        %v5033 = vadd.f32 %v2195, %v4908
        %v5034 = vadd.f32 %v2192, %v4911
        %v5035 = vadd.f32 %v2196, %v4909
        %v5036 = vadd.f32 %v2193, %v4912
        %v5099 = vcombine.low %v4975, %v4976
        %v5100 = vcombine.high %v4975, %v4976
        %v5101 = vcombine.low %v4977, %v4978
        %v5102 = vcombine.high %v4977, %v4978
        %v5103 = vcombine.low %v4979, %v4980
        %v5104 = vcombine.high %v4979, %v4980
        %v5105 = vcombine.low %v4981, %v4982
        %v5106 = vcombine.high %v4981, %v4982
        %v5108 = vunpack.c.l.s4 1966171168
        %v5109 = vunpack.c.0.s8 %v5108
        %v5110 = vlaneseq
        %v5111 = vshrl.u32 %v5110, 7
        %v5112 = vsub.s32 %v5109, %v5111
        %v5113 = vrot.slane %v5099, %v5112
        %v5115 = vunpack.c.l.s4 1966171168
        %v5116 = vunpack.c.0.s8 %v5115
        %v5117 = vlaneseq
        %v5118 = vshrl.u32 %v5117, 7
        %v5119 = vsub.s32 %v5116, %v5118
        %v5120 = vrot.slane %v5100, %v5119
        %v5122 = vunpack.c.l.s4 1966171168
        %v5123 = vunpack.c.0.s8 %v5122
        %v5124 = vlaneseq
        %v5125 = vshrl.u32 %v5124, 7
        %v5126 = vsub.s32 %v5123, %v5125
        %v5127 = vrot.slane %v5101, %v5126
        %v5129 = vunpack.c.l.s4 1966171168
        %v5130 = vunpack.c.0.s8 %v5129
        %v5131 = vlaneseq
        %v5132 = vshrl.u32 %v5131, 7
        %v5133 = vsub.s32 %v5130, %v5132
        %v5134 = vrot.slane %v5102, %v5133
        %v5136 = vunpack.c.l.s4 1966171168
        %v5137 = vunpack.c.0.s8 %v5136
        %v5138 = vlaneseq
        %v5139 = vshrl.u32 %v5138, 7
        %v5140 = vsub.s32 %v5137, %v5139
        %v5141 = vrot.slane %v5103, %v5140
        %v5143 = vunpack.c.l.s4 1966171168
        %v5144 = vunpack.c.0.s8 %v5143
        %v5145 = vlaneseq
        %v5146 = vshrl.u32 %v5145, 7
        %v5147 = vsub.s32 %v5144, %v5146
        %v5148 = vrot.slane %v5104, %v5147
        %v5150 = vunpack.c.l.s4 1966171168
        %v5151 = vunpack.c.0.s8 %v5150
        %v5152 = vlaneseq
        %v5153 = vshrl.u32 %v5152, 7
        %v5154 = vsub.s32 %v5151, %v5153
        %v5155 = vrot.slane %v5105, %v5154
        %v5157 = vunpack.c.l.s4 1966171168
        %v5158 = vunpack.c.0.s8 %v5157
        %v5159 = vlaneseq
        %v5160 = vshrl.u32 %v5159, 7
        %v5161 = vsub.s32 %v5158, %v5160
        %v5162 = vrot.slane %v5106, %v5161
        %v5163 = vcombine.low %v5113, %v5127
        %v5164 = vcombine.high %v5113, %v5127
        %v5165 = vcombine.low %v5120, %v5134
        %v5166 = vcombine.low %v5141, %v5155
        %v5167 = vcombine.high %v5141, %v5155
        %v5168 = vcombine.low %v5148, %v5162
        %v5170 = vunpack.c.l.s4 1966171168
        %v5171 = vunpack.c.0.s8 %v5170
        %v5172 = vlaneseq
        %v5173 = vshrl.u32 %v5172, 7
        %v5174 = vsub.s32 %v5171, %v5173
        %v5175 = vrot.slane %v5163, %v5174
        %v5177 = vunpack.c.l.s4 1966171168
        %v5178 = vunpack.c.0.s8 %v5177
        %v5179 = vlaneseq
        %v5180 = vshrl.u32 %v5179, 7
        %v5181 = vsub.s32 %v5178, %v5180
        %v5182 = vrot.slane %v5165, %v5181
        %v5184 = vunpack.c.l.s4 1966171168
        %v5185 = vunpack.c.0.s8 %v5184
        %v5186 = vlaneseq
        %v5187 = vshrl.u32 %v5186, 7
        %v5188 = vsub.s32 %v5185, %v5187
        %v5189 = vrot.slane %v5164, %v5188
        %v5191 = vunpack.c.l.s4 1966171168
        %v5192 = vunpack.c.0.s8 %v5191
        %v5193 = vlaneseq
        %v5194 = vshrl.u32 %v5193, 7
        %v5195 = vsub.s32 %v5192, %v5194
        %v5196 = vrot.slane %v5166, %v5195
        %v5198 = vunpack.c.l.s4 1966171168
        %v5199 = vunpack.c.0.s8 %v5198
        %v5200 = vlaneseq
        %v5201 = vshrl.u32 %v5200, 7
        %v5202 = vsub.s32 %v5199, %v5201
        %v5203 = vrot.slane %v5168, %v5202
        %v5205 = vunpack.c.l.s4 1966171168
        %v5206 = vunpack.c.0.s8 %v5205
        %v5207 = vlaneseq
        %v5208 = vshrl.u32 %v5207, 7
        %v5209 = vsub.s32 %v5206, %v5208
        %v5210 = vrot.slane %v5167, %v5209
        %v5211 = vcombine.low %v5175, %v5196
        %v5212 = vcombine.high %v5175, %v5196
        %v5213 = vcombine.low %v5182, %v5203
        %v5214 = vcombine.low %v5189, %v5210
        %v5215 = vcombine.high %v5189, %v5210
        %v5216 = vcombine.low %v4983, %v4984
        %v5217 = vcombine.high %v4983, %v4984
        %v5218 = vcombine.low %v4985, %v4986
        %v5219 = vcombine.high %v4985, %v4986
        %v5220 = vcombine.low %v4987, %v4988
        %v5221 = vcombine.high %v4987, %v4988
        %v5222 = vcombine.low %v4989, %v4990
        %v5223 = vcombine.high %v4989, %v4990
        %v5225 = vunpack.c.l.s4 1966171168
        %v5226 = vunpack.c.0.s8 %v5225
        %v5227 = vlaneseq
        %v5228 = vshrl.u32 %v5227, 7
        %v5229 = vsub.s32 %v5226, %v5228
        %v5230 = vrot.slane %v5216, %v5229
        %v5232 = vunpack.c.l.s4 1966171168
        %v5233 = vunpack.c.0.s8 %v5232
        %v5234 = vlaneseq
        %v5235 = vshrl.u32 %v5234, 7
        %v5236 = vsub.s32 %v5233, %v5235
        %v5237 = vrot.slane %v5217, %v5236
        %v5239 = vunpack.c.l.s4 1966171168
        %v5240 = vunpack.c.0.s8 %v5239
        %v5241 = vlaneseq
        %v5242 = vshrl.u32 %v5241, 7
        %v5243 = vsub.s32 %v5240, %v5242
        %v5244 = vrot.slane %v5218, %v5243
        %v5246 = vunpack.c.l.s4 1966171168
        %v5247 = vunpack.c.0.s8 %v5246
        %v5248 = vlaneseq
        %v5249 = vshrl.u32 %v5248, 7
        %v5250 = vsub.s32 %v5247, %v5249
        %v5251 = vrot.slane %v5219, %v5250
        %v5253 = vunpack.c.l.s4 1966171168
        %v5254 = vunpack.c.0.s8 %v5253
        %v5255 = vlaneseq
        %v5256 = vshrl.u32 %v5255, 7
        %v5257 = vsub.s32 %v5254, %v5256
        %v5258 = vrot.slane %v5220, %v5257
        %v5260 = vunpack.c.l.s4 1966171168
        %v5261 = vunpack.c.0.s8 %v5260
        %v5262 = vlaneseq
        %v5263 = vshrl.u32 %v5262, 7
        %v5264 = vsub.s32 %v5261, %v5263
        %v5265 = vrot.slane %v5221, %v5264
        %v5267 = vunpack.c.l.s4 1966171168
        %v5268 = vunpack.c.0.s8 %v5267
        %v5269 = vlaneseq
        %v5270 = vshrl.u32 %v5269, 7
        %v5271 = vsub.s32 %v5268, %v5270
        %v5272 = vrot.slane %v5222, %v5271
        %v5274 = vunpack.c.l.s4 1966171168
        %v5275 = vunpack.c.0.s8 %v5274
        %v5276 = vlaneseq
        %v5277 = vshrl.u32 %v5276, 7
        %v5278 = vsub.s32 %v5275, %v5277
        %v5279 = vrot.slane %v5223, %v5278
        %v5280 = vcombine.low %v5230, %v5244
        %v5281 = vcombine.high %v5230, %v5244
        %v5282 = vcombine.low %v5237, %v5251
        %v5283 = vcombine.low %v5258, %v5272
        %v5284 = vcombine.high %v5258, %v5272
        %v5285 = vcombine.low %v5265, %v5279
        %v5287 = vunpack.c.l.s4 1966171168
        %v5288 = vunpack.c.0.s8 %v5287
        %v5289 = vlaneseq
        %v5290 = vshrl.u32 %v5289, 7
        %v5291 = vsub.s32 %v5288, %v5290
        %v5292 = vrot.slane %v5280, %v5291
        %v5294 = vunpack.c.l.s4 1966171168
        %v5295 = vunpack.c.0.s8 %v5294
        %v5296 = vlaneseq
        %v5297 = vshrl.u32 %v5296, 7
        %v5298 = vsub.s32 %v5295, %v5297
        %v5299 = vrot.slane %v5282, %v5298
        %v5301 = vunpack.c.l.s4 1966171168
        %v5302 = vunpack.c.0.s8 %v5301
        %v5303 = vlaneseq
        %v5304 = vshrl.u32 %v5303, 7
        %v5305 = vsub.s32 %v5302, %v5304
        %v5306 = vrot.slane %v5281, %v5305
        %v5308 = vunpack.c.l.s4 1966171168
        %v5309 = vunpack.c.0.s8 %v5308
        %v5310 = vlaneseq
        %v5311 = vshrl.u32 %v5310, 7
        %v5312 = vsub.s32 %v5309, %v5311
        %v5313 = vrot.slane %v5283, %v5312
        %v5315 = vunpack.c.l.s4 1966171168
        %v5316 = vunpack.c.0.s8 %v5315
        %v5317 = vlaneseq
        %v5318 = vshrl.u32 %v5317, 7
        %v5319 = vsub.s32 %v5316, %v5318
        %v5320 = vrot.slane %v5285, %v5319
        %v5322 = vunpack.c.l.s4 1966171168
        %v5323 = vunpack.c.0.s8 %v5322
        %v5324 = vlaneseq
        %v5325 = vshrl.u32 %v5324, 7
        %v5326 = vsub.s32 %v5323, %v5325
        %v5327 = vrot.slane %v5284, %v5326
        %v5328 = vcombine.low %v5292, %v5313
        %v5329 = vcombine.high %v5292, %v5313
        %v5330 = vcombine.low %v5299, %v5320
        %v5331 = vcombine.low %v5306, %v5327
        %v5332 = vcombine.high %v5306, %v5327
        %v5333 = vcombine.low %v4991, %v4992
        %v5334 = vcombine.high %v4991, %v4992
        %v5335 = vcombine.low %v4993, %v4994
        %v5336 = vcombine.high %v4993, %v4994
        %v5337 = vcombine.low %v4995, %v4996
        %v5338 = vcombine.high %v4995, %v4996
        %v5339 = vcombine.low %v4997, %v4998
        %v5340 = vcombine.high %v4997, %v4998
        %v5342 = vunpack.c.l.s4 1966171168
        %v5343 = vunpack.c.0.s8 %v5342
        %v5344 = vlaneseq
        %v5345 = vshrl.u32 %v5344, 7
        %v5346 = vsub.s32 %v5343, %v5345
        %v5347 = vrot.slane %v5333, %v5346
        %v5349 = vunpack.c.l.s4 1966171168
        %v5350 = vunpack.c.0.s8 %v5349
        %v5351 = vlaneseq
        %v5352 = vshrl.u32 %v5351, 7
        %v5353 = vsub.s32 %v5350, %v5352
        %v5354 = vrot.slane %v5334, %v5353
        %v5356 = vunpack.c.l.s4 1966171168
        %v5357 = vunpack.c.0.s8 %v5356
        %v5358 = vlaneseq
        %v5359 = vshrl.u32 %v5358, 7
        %v5360 = vsub.s32 %v5357, %v5359
        %v5361 = vrot.slane %v5335, %v5360
        %v5363 = vunpack.c.l.s4 1966171168
        %v5364 = vunpack.c.0.s8 %v5363
        %v5365 = vlaneseq
        %v5366 = vshrl.u32 %v5365, 7
        %v5367 = vsub.s32 %v5364, %v5366
        %v5368 = vrot.slane %v5336, %v5367
        %v5370 = vunpack.c.l.s4 1966171168
        %v5371 = vunpack.c.0.s8 %v5370
        %v5372 = vlaneseq
        %v5373 = vshrl.u32 %v5372, 7
        %v5374 = vsub.s32 %v5371, %v5373
        %v5375 = vrot.slane %v5337, %v5374
        %v5377 = vunpack.c.l.s4 1966171168
        %v5378 = vunpack.c.0.s8 %v5377
        %v5379 = vlaneseq
        %v5380 = vshrl.u32 %v5379, 7
        %v5381 = vsub.s32 %v5378, %v5380
        %v5382 = vrot.slane %v5338, %v5381
        %v5384 = vunpack.c.l.s4 1966171168
        %v5385 = vunpack.c.0.s8 %v5384
        %v5386 = vlaneseq
        %v5387 = vshrl.u32 %v5386, 7
        %v5388 = vsub.s32 %v5385, %v5387
        %v5389 = vrot.slane %v5339, %v5388
        %v5391 = vunpack.c.l.s4 1966171168
        %v5392 = vunpack.c.0.s8 %v5391
        %v5393 = vlaneseq
        %v5394 = vshrl.u32 %v5393, 7
        %v5395 = vsub.s32 %v5392, %v5394
        %v5396 = vrot.slane %v5340, %v5395
        %v5397 = vcombine.low %v5347, %v5361
        %v5398 = vcombine.high %v5347, %v5361
        %v5399 = vcombine.low %v5354, %v5368
        %v5400 = vcombine.low %v5375, %v5389
        %v5401 = vcombine.high %v5375, %v5389
        %v5402 = vcombine.low %v5382, %v5396
        %v5404 = vunpack.c.l.s4 1966171168
        %v5405 = vunpack.c.0.s8 %v5404
        %v5406 = vlaneseq
        %v5407 = vshrl.u32 %v5406, 7
        %v5408 = vsub.s32 %v5405, %v5407
        %v5409 = vrot.slane %v5397, %v5408
        %v5411 = vunpack.c.l.s4 1966171168
        %v5412 = vunpack.c.0.s8 %v5411
        %v5413 = vlaneseq
        %v5414 = vshrl.u32 %v5413, 7
        %v5415 = vsub.s32 %v5412, %v5414
        %v5416 = vrot.slane %v5399, %v5415
        %v5418 = vunpack.c.l.s4 1966171168
        %v5419 = vunpack.c.0.s8 %v5418
        %v5420 = vlaneseq
        %v5421 = vshrl.u32 %v5420, 7
        %v5422 = vsub.s32 %v5419, %v5421
        %v5423 = vrot.slane %v5398, %v5422
        %v5425 = vunpack.c.l.s4 1966171168
        %v5426 = vunpack.c.0.s8 %v5425
        %v5427 = vlaneseq
        %v5428 = vshrl.u32 %v5427, 7
        %v5429 = vsub.s32 %v5426, %v5428
        %v5430 = vrot.slane %v5400, %v5429
        %v5432 = vunpack.c.l.s4 1966171168
        %v5433 = vunpack.c.0.s8 %v5432
        %v5434 = vlaneseq
        %v5435 = vshrl.u32 %v5434, 7
        %v5436 = vsub.s32 %v5433, %v5435
        %v5437 = vrot.slane %v5402, %v5436
        %v5439 = vunpack.c.l.s4 1966171168
        %v5440 = vunpack.c.0.s8 %v5439
        %v5441 = vlaneseq
        %v5442 = vshrl.u32 %v5441, 7
        %v5443 = vsub.s32 %v5440, %v5442
        %v5444 = vrot.slane %v5401, %v5443
        %v5445 = vcombine.low %v5409, %v5430
        %v5446 = vcombine.high %v5409, %v5430
        %v5447 = vcombine.low %v5416, %v5437
        %v5448 = vcombine.low %v5423, %v5444
        %v5449 = vcombine.high %v5423, %v5444
        %v5450 = vcombine.low %v4999, %v5000
        %v5451 = vcombine.high %v4999, %v5000
        %v5452 = vcombine.low %v5001, %v5002
        %v5453 = vcombine.high %v5001, %v5002
        %v5454 = vcombine.low %v5003, %v5004
        %v5455 = vcombine.high %v5003, %v5004
        %v5456 = vcombine.high %v5005, %v5005
        %v5458 = vunpack.c.l.s4 1966171168
        %v5459 = vunpack.c.0.s8 %v5458
        %v5460 = vlaneseq
        %v5461 = vshrl.u32 %v5460, 7
        %v5462 = vsub.s32 %v5459, %v5461
        %v5463 = vrot.slane %v5450, %v5462
        %v5465 = vunpack.c.l.s4 1966171168
        %v5466 = vunpack.c.0.s8 %v5465
        %v5467 = vlaneseq
        %v5468 = vshrl.u32 %v5467, 7
        %v5469 = vsub.s32 %v5466, %v5468
        %v5470 = vrot.slane %v5451, %v5469
        %v5472 = vunpack.c.l.s4 1966171168
        %v5473 = vunpack.c.0.s8 %v5472
        %v5474 = vlaneseq
        %v5475 = vshrl.u32 %v5474, 7
        %v5476 = vsub.s32 %v5473, %v5475
        %v5477 = vrot.slane %v5452, %v5476
        %v5479 = vunpack.c.l.s4 1966171168
        %v5480 = vunpack.c.0.s8 %v5479
        %v5481 = vlaneseq
        %v5482 = vshrl.u32 %v5481, 7
        %v5483 = vsub.s32 %v5480, %v5482
        %v5484 = vrot.slane %v5453, %v5483
        %v5486 = vunpack.c.l.s4 1966171168
        %v5487 = vunpack.c.0.s8 %v5486
        %v5488 = vlaneseq
        %v5489 = vshrl.u32 %v5488, 7
        %v5490 = vsub.s32 %v5487, %v5489
        %v5491 = vrot.slane %v5454, %v5490
        %v5493 = vunpack.c.l.s4 1966171168
        %v5494 = vunpack.c.0.s8 %v5493
        %v5495 = vlaneseq
        %v5496 = vshrl.u32 %v5495, 7
        %v5497 = vsub.s32 %v5494, %v5496
        %v5498 = vrot.slane %v5455, %v5497
        %v5500 = vunpack.c.l.s4 1966171168
        %v5501 = vunpack.c.0.s8 %v5500
        %v5502 = vlaneseq
        %v5503 = vshrl.u32 %v5502, 7
        %v5504 = vsub.s32 %v5501, %v5503
        %v5505 = vrot.slane %v5005, %v5504
        %v5507 = vunpack.c.l.s4 1966171168
        %v5508 = vunpack.c.0.s8 %v5507
        %v5509 = vlaneseq
        %v5510 = vshrl.u32 %v5509, 7
        %v5511 = vsub.s32 %v5508, %v5510
        %v5512 = vrot.slane %v5456, %v5511
        %v5513 = vcombine.low %v5463, %v5477
        %v5514 = vcombine.high %v5463, %v5477
        %v5515 = vcombine.low %v5470, %v5484
        %v5516 = vcombine.low %v5491, %v5505
        %v5517 = vcombine.high %v5491, %v5505
        %v5518 = vcombine.low %v5498, %v5512
        %v5520 = vunpack.c.l.s4 1966171168
        %v5521 = vunpack.c.0.s8 %v5520
        %v5522 = vlaneseq
        %v5523 = vshrl.u32 %v5522, 7
        %v5524 = vsub.s32 %v5521, %v5523
        %v5525 = vrot.slane %v5513, %v5524
        %v5527 = vunpack.c.l.s4 1966171168
        %v5528 = vunpack.c.0.s8 %v5527
        %v5529 = vlaneseq
        %v5530 = vshrl.u32 %v5529, 7
        %v5531 = vsub.s32 %v5528, %v5530
        %v5532 = vrot.slane %v5515, %v5531
        %v5534 = vunpack.c.l.s4 1966171168
        %v5535 = vunpack.c.0.s8 %v5534
        %v5536 = vlaneseq
        %v5537 = vshrl.u32 %v5536, 7
        %v5538 = vsub.s32 %v5535, %v5537
        %v5539 = vrot.slane %v5514, %v5538
        %v5541 = vunpack.c.l.s4 1966171168
        %v5542 = vunpack.c.0.s8 %v5541
        %v5543 = vlaneseq
        %v5544 = vshrl.u32 %v5543, 7
        %v5545 = vsub.s32 %v5542, %v5544
        %v5546 = vrot.slane %v5516, %v5545
        %v5548 = vunpack.c.l.s4 1966171168
        %v5549 = vunpack.c.0.s8 %v5548
        %v5550 = vlaneseq
        %v5551 = vshrl.u32 %v5550, 7
        %v5552 = vsub.s32 %v5549, %v5551
        %v5553 = vrot.slane %v5518, %v5552
        %v5555 = vunpack.c.l.s4 1966171168
        %v5556 = vunpack.c.0.s8 %v5555
        %v5557 = vlaneseq
        %v5558 = vshrl.u32 %v5557, 7
        %v5559 = vsub.s32 %v5556, %v5558
        %v5560 = vrot.slane %v5517, %v5559
        %v5561 = vcombine.low %v5525, %v5546
        %v5562 = vcombine.high %v5525, %v5546
        %v5563 = vcombine.low %v5532, %v5553
        %v5564 = vcombine.low %v5539, %v5560
        %v5565 = vcombine.high %v5539, %v5560
        %v5566 = vcombine.low %v5006, %v5007
        %v5567 = vcombine.high %v5006, %v5007
        %v5568 = vcombine.low %v5008, %v5009
        %v5569 = vcombine.high %v5008, %v5009
        %v5570 = vcombine.low %v5010, %v5011
        %v5571 = vcombine.high %v5010, %v5011
        %v5572 = vcombine.low %v5012, %v5013
        %v5573 = vcombine.high %v5012, %v5013
        %v5575 = vunpack.c.l.s4 1966171168
        %v5576 = vunpack.c.0.s8 %v5575
        %v5577 = vlaneseq
        %v5578 = vshrl.u32 %v5577, 7
        %v5579 = vsub.s32 %v5576, %v5578
        %v5580 = vrot.slane %v5566, %v5579
        %v5582 = vunpack.c.l.s4 1966171168
        %v5583 = vunpack.c.0.s8 %v5582
        %v5584 = vlaneseq
        %v5585 = vshrl.u32 %v5584, 7
        %v5586 = vsub.s32 %v5583, %v5585
        %v5587 = vrot.slane %v5567, %v5586
        %v5589 = vunpack.c.l.s4 1966171168
        %v5590 = vunpack.c.0.s8 %v5589
        %v5591 = vlaneseq
        %v5592 = vshrl.u32 %v5591, 7
        %v5593 = vsub.s32 %v5590, %v5592
        %v5594 = vrot.slane %v5568, %v5593
        %v5596 = vunpack.c.l.s4 1966171168
        %v5597 = vunpack.c.0.s8 %v5596
        %v5598 = vlaneseq
        %v5599 = vshrl.u32 %v5598, 7
        %v5600 = vsub.s32 %v5597, %v5599
        %v5601 = vrot.slane %v5569, %v5600
        %v5603 = vunpack.c.l.s4 1966171168
        %v5604 = vunpack.c.0.s8 %v5603
        %v5605 = vlaneseq
        %v5606 = vshrl.u32 %v5605, 7
        %v5607 = vsub.s32 %v5604, %v5606
        %v5608 = vrot.slane %v5570, %v5607
        %v5610 = vunpack.c.l.s4 1966171168
        %v5611 = vunpack.c.0.s8 %v5610
        %v5612 = vlaneseq
        %v5613 = vshrl.u32 %v5612, 7
        %v5614 = vsub.s32 %v5611, %v5613
        %v5615 = vrot.slane %v5571, %v5614
        %v5617 = vunpack.c.l.s4 1966171168
        %v5618 = vunpack.c.0.s8 %v5617
        %v5619 = vlaneseq
        %v5620 = vshrl.u32 %v5619, 7
        %v5621 = vsub.s32 %v5618, %v5620
        %v5622 = vrot.slane %v5572, %v5621
        %v5624 = vunpack.c.l.s4 1966171168
        %v5625 = vunpack.c.0.s8 %v5624
        %v5626 = vlaneseq
        %v5627 = vshrl.u32 %v5626, 7
        %v5628 = vsub.s32 %v5625, %v5627
        %v5629 = vrot.slane %v5573, %v5628
        %v5630 = vcombine.low %v5580, %v5594
        %v5631 = vcombine.high %v5580, %v5594
        %v5632 = vcombine.low %v5587, %v5601
        %v5633 = vcombine.low %v5608, %v5622
        %v5634 = vcombine.high %v5608, %v5622
        %v5635 = vcombine.low %v5615, %v5629
        %v5637 = vunpack.c.l.s4 1966171168
        %v5638 = vunpack.c.0.s8 %v5637
        %v5639 = vlaneseq
        %v5640 = vshrl.u32 %v5639, 7
        %v5641 = vsub.s32 %v5638, %v5640
        %v5642 = vrot.slane %v5630, %v5641
        %v5644 = vunpack.c.l.s4 1966171168
        %v5645 = vunpack.c.0.s8 %v5644
        %v5646 = vlaneseq
        %v5647 = vshrl.u32 %v5646, 7
        %v5648 = vsub.s32 %v5645, %v5647
        %v5649 = vrot.slane %v5632, %v5648
        %v5651 = vunpack.c.l.s4 1966171168
        %v5652 = vunpack.c.0.s8 %v5651
        %v5653 = vlaneseq
        %v5654 = vshrl.u32 %v5653, 7
        %v5655 = vsub.s32 %v5652, %v5654
        %v5656 = vrot.slane %v5631, %v5655
        %v5658 = vunpack.c.l.s4 1966171168
        %v5659 = vunpack.c.0.s8 %v5658
        %v5660 = vlaneseq
        %v5661 = vshrl.u32 %v5660, 7
        %v5662 = vsub.s32 %v5659, %v5661
        %v5663 = vrot.slane %v5633, %v5662
        %v5665 = vunpack.c.l.s4 1966171168
        %v5666 = vunpack.c.0.s8 %v5665
        %v5667 = vlaneseq
        %v5668 = vshrl.u32 %v5667, 7
        %v5669 = vsub.s32 %v5666, %v5668
        %v5670 = vrot.slane %v5635, %v5669
        %v5672 = vunpack.c.l.s4 1966171168
        %v5673 = vunpack.c.0.s8 %v5672
        %v5674 = vlaneseq
        %v5675 = vshrl.u32 %v5674, 7
        %v5676 = vsub.s32 %v5673, %v5675
        %v5677 = vrot.slane %v5634, %v5676
        %v5678 = vcombine.low %v5642, %v5663
        %v5679 = vcombine.high %v5642, %v5663
        %v5680 = vcombine.low %v5649, %v5670
        %v5681 = vcombine.low %v5656, %v5677
        %v5682 = vcombine.high %v5656, %v5677
        %v5683 = vcombine.low %v5014, %v5015
        %v5684 = vcombine.high %v5014, %v5015
        %v5685 = vcombine.low %v5016, %v5017
        %v5686 = vcombine.high %v5016, %v5017
        %v5687 = vcombine.low %v5018, %v5019
        %v5688 = vcombine.high %v5018, %v5019
        %v5689 = vcombine.low %v5020, %v5021
        %v5690 = vcombine.high %v5020, %v5021
        %v5692 = vunpack.c.l.s4 1966171168
        %v5693 = vunpack.c.0.s8 %v5692
        %v5694 = vlaneseq
        %v5695 = vshrl.u32 %v5694, 7
        %v5696 = vsub.s32 %v5693, %v5695
        %v5697 = vrot.slane %v5683, %v5696
        %v5699 = vunpack.c.l.s4 1966171168
        %v5700 = vunpack.c.0.s8 %v5699
        %v5701 = vlaneseq
        %v5702 = vshrl.u32 %v5701, 7
        %v5703 = vsub.s32 %v5700, %v5702
        %v5704 = vrot.slane %v5684, %v5703
        %v5706 = vunpack.c.l.s4 1966171168
        %v5707 = vunpack.c.0.s8 %v5706
        %v5708 = vlaneseq
        %v5709 = vshrl.u32 %v5708, 7
        %v5710 = vsub.s32 %v5707, %v5709
        %v5711 = vrot.slane %v5685, %v5710
        %v5713 = vunpack.c.l.s4 1966171168
        %v5714 = vunpack.c.0.s8 %v5713
        %v5715 = vlaneseq
        %v5716 = vshrl.u32 %v5715, 7
        %v5717 = vsub.s32 %v5714, %v5716
        %v5718 = vrot.slane %v5686, %v5717
        %v5720 = vunpack.c.l.s4 1966171168
        %v5721 = vunpack.c.0.s8 %v5720
        %v5722 = vlaneseq
        %v5723 = vshrl.u32 %v5722, 7
        %v5724 = vsub.s32 %v5721, %v5723
        %v5725 = vrot.slane %v5687, %v5724
        %v5727 = vunpack.c.l.s4 1966171168
        %v5728 = vunpack.c.0.s8 %v5727
        %v5729 = vlaneseq
        %v5730 = vshrl.u32 %v5729, 7
        %v5731 = vsub.s32 %v5728, %v5730
        %v5732 = vrot.slane %v5688, %v5731
        %v5734 = vunpack.c.l.s4 1966171168
        %v5735 = vunpack.c.0.s8 %v5734
        %v5736 = vlaneseq
        %v5737 = vshrl.u32 %v5736, 7
        %v5738 = vsub.s32 %v5735, %v5737
        %v5739 = vrot.slane %v5689, %v5738
        %v5741 = vunpack.c.l.s4 1966171168
        %v5742 = vunpack.c.0.s8 %v5741
        %v5743 = vlaneseq
        %v5744 = vshrl.u32 %v5743, 7
        %v5745 = vsub.s32 %v5742, %v5744
        %v5746 = vrot.slane %v5690, %v5745
        %v5747 = vcombine.low %v5697, %v5711
        %v5748 = vcombine.high %v5697, %v5711
        %v5749 = vcombine.low %v5704, %v5718
        %v5750 = vcombine.low %v5725, %v5739
        %v5751 = vcombine.high %v5725, %v5739
        %v5752 = vcombine.low %v5732, %v5746
        %v5754 = vunpack.c.l.s4 1966171168
        %v5755 = vunpack.c.0.s8 %v5754
        %v5756 = vlaneseq
        %v5757 = vshrl.u32 %v5756, 7
        %v5758 = vsub.s32 %v5755, %v5757
        %v5759 = vrot.slane %v5747, %v5758
        %v5761 = vunpack.c.l.s4 1966171168
        %v5762 = vunpack.c.0.s8 %v5761
        %v5763 = vlaneseq
        %v5764 = vshrl.u32 %v5763, 7
        %v5765 = vsub.s32 %v5762, %v5764
        %v5766 = vrot.slane %v5749, %v5765
        %v5768 = vunpack.c.l.s4 1966171168
        %v5769 = vunpack.c.0.s8 %v5768
        %v5770 = vlaneseq
        %v5771 = vshrl.u32 %v5770, 7
        %v5772 = vsub.s32 %v5769, %v5771
        %v5773 = vrot.slane %v5748, %v5772
        %v5775 = vunpack.c.l.s4 1966171168
        %v5776 = vunpack.c.0.s8 %v5775
        %v5777 = vlaneseq
        %v5778 = vshrl.u32 %v5777, 7
        %v5779 = vsub.s32 %v5776, %v5778
        %v5780 = vrot.slane %v5750, %v5779
        %v5782 = vunpack.c.l.s4 1966171168
        %v5783 = vunpack.c.0.s8 %v5782
        %v5784 = vlaneseq
        %v5785 = vshrl.u32 %v5784, 7
        %v5786 = vsub.s32 %v5783, %v5785
        %v5787 = vrot.slane %v5752, %v5786
        %v5789 = vunpack.c.l.s4 1966171168
        %v5790 = vunpack.c.0.s8 %v5789
        %v5791 = vlaneseq
        %v5792 = vshrl.u32 %v5791, 7
        %v5793 = vsub.s32 %v5790, %v5792
        %v5794 = vrot.slane %v5751, %v5793
        %v5795 = vcombine.low %v5759, %v5780
        %v5796 = vcombine.high %v5759, %v5780
        %v5797 = vcombine.low %v5766, %v5787
        %v5798 = vcombine.low %v5773, %v5794
        %v5799 = vcombine.high %v5773, %v5794
        %v5800 = vcombine.low %v5022, %v5023
        %v5801 = vcombine.high %v5022, %v5023
        %v5802 = vcombine.low %v5024, %v5025
        %v5803 = vcombine.high %v5024, %v5025
        %v5804 = vcombine.low %v5026, %v5027
        %v5805 = vcombine.high %v5026, %v5027
        %v5806 = vcombine.low %v5028, %v5029
        %v5807 = vcombine.high %v5028, %v5029
        %v5809 = vunpack.c.l.s4 1966171168
        %v5810 = vunpack.c.0.s8 %v5809
        %v5811 = vlaneseq
        %v5812 = vshrl.u32 %v5811, 7
        %v5813 = vsub.s32 %v5810, %v5812
        %v5814 = vrot.slane %v5800, %v5813
        %v5816 = vunpack.c.l.s4 1966171168
        %v5817 = vunpack.c.0.s8 %v5816
        %v5818 = vlaneseq
        %v5819 = vshrl.u32 %v5818, 7
        %v5820 = vsub.s32 %v5817, %v5819
        %v5821 = vrot.slane %v5801, %v5820
        %v5823 = vunpack.c.l.s4 1966171168
        %v5824 = vunpack.c.0.s8 %v5823
        %v5825 = vlaneseq
        %v5826 = vshrl.u32 %v5825, 7
        %v5827 = vsub.s32 %v5824, %v5826
        %v5828 = vrot.slane %v5802, %v5827
        %v5830 = vunpack.c.l.s4 1966171168
        %v5831 = vunpack.c.0.s8 %v5830
        %v5832 = vlaneseq
        %v5833 = vshrl.u32 %v5832, 7
        %v5834 = vsub.s32 %v5831, %v5833
        %v5835 = vrot.slane %v5803, %v5834
        %v5837 = vunpack.c.l.s4 1966171168
        %v5838 = vunpack.c.0.s8 %v5837
        %v5839 = vlaneseq
        %v5840 = vshrl.u32 %v5839, 7
        %v5841 = vsub.s32 %v5838, %v5840
        %v5842 = vrot.slane %v5804, %v5841
        %v5844 = vunpack.c.l.s4 1966171168
        %v5845 = vunpack.c.0.s8 %v5844
        %v5846 = vlaneseq
        %v5847 = vshrl.u32 %v5846, 7
        %v5848 = vsub.s32 %v5845, %v5847
        %v5849 = vrot.slane %v5805, %v5848
        %v5851 = vunpack.c.l.s4 1966171168
        %v5852 = vunpack.c.0.s8 %v5851
        %v5853 = vlaneseq
        %v5854 = vshrl.u32 %v5853, 7
        %v5855 = vsub.s32 %v5852, %v5854
        %v5856 = vrot.slane %v5806, %v5855
        %v5858 = vunpack.c.l.s4 1966171168
        %v5859 = vunpack.c.0.s8 %v5858
        %v5860 = vlaneseq
        %v5861 = vshrl.u32 %v5860, 7
        %v5862 = vsub.s32 %v5859, %v5861
        %v5863 = vrot.slane %v5807, %v5862
        %v5864 = vcombine.low %v5814, %v5828
        %v5865 = vcombine.high %v5814, %v5828
        %v5866 = vcombine.low %v5821, %v5835
        %v5867 = vcombine.low %v5842, %v5856
        %v5868 = vcombine.high %v5842, %v5856
        %v5869 = vcombine.low %v5849, %v5863
        %v5871 = vunpack.c.l.s4 1966171168
        %v5872 = vunpack.c.0.s8 %v5871
        %v5873 = vlaneseq
        %v5874 = vshrl.u32 %v5873, 7
        %v5875 = vsub.s32 %v5872, %v5874
        %v5876 = vrot.slane %v5864, %v5875
        %v5878 = vunpack.c.l.s4 1966171168
        %v5879 = vunpack.c.0.s8 %v5878
        %v5880 = vlaneseq
        %v5881 = vshrl.u32 %v5880, 7
        %v5882 = vsub.s32 %v5879, %v5881
        %v5883 = vrot.slane %v5866, %v5882
        %v5885 = vunpack.c.l.s4 1966171168
        %v5886 = vunpack.c.0.s8 %v5885
        %v5887 = vlaneseq
        %v5888 = vshrl.u32 %v5887, 7
        %v5889 = vsub.s32 %v5886, %v5888
        %v5890 = vrot.slane %v5865, %v5889
        %v5892 = vunpack.c.l.s4 1966171168
        %v5893 = vunpack.c.0.s8 %v5892
        %v5894 = vlaneseq
        %v5895 = vshrl.u32 %v5894, 7
        %v5896 = vsub.s32 %v5893, %v5895
        %v5897 = vrot.slane %v5867, %v5896
        %v5899 = vunpack.c.l.s4 1966171168
        %v5900 = vunpack.c.0.s8 %v5899
        %v5901 = vlaneseq
        %v5902 = vshrl.u32 %v5901, 7
        %v5903 = vsub.s32 %v5900, %v5902
        %v5904 = vrot.slane %v5869, %v5903
        %v5906 = vunpack.c.l.s4 1966171168
        %v5907 = vunpack.c.0.s8 %v5906
        %v5908 = vlaneseq
        %v5909 = vshrl.u32 %v5908, 7
        %v5910 = vsub.s32 %v5907, %v5909
        %v5911 = vrot.slane %v5868, %v5910
        %v5912 = vcombine.low %v5876, %v5897
        %v5913 = vcombine.high %v5876, %v5897
        %v5914 = vcombine.low %v5883, %v5904
        %v5915 = vcombine.low %v5890, %v5911
        %v5916 = vcombine.high %v5890, %v5911
        %v5917 = vcombine.low %v5030, %v5031
        %v5918 = vcombine.high %v5030, %v5031
        %v5919 = vcombine.low %v5032, %v5033
        %v5920 = vcombine.high %v5032, %v5033
        %v5921 = vcombine.low %v5034, %v5035
        %v5922 = vcombine.high %v5034, %v5035
        %v5923 = vcombine.high %v5036, %v5036
        %v5925 = vunpack.c.l.s4 1966171168
        %v5926 = vunpack.c.0.s8 %v5925
        %v5927 = vlaneseq
        %v5928 = vshrl.u32 %v5927, 7
        %v5929 = vsub.s32 %v5926, %v5928
        %v5930 = vrot.slane %v5917, %v5929
        %v5932 = vunpack.c.l.s4 1966171168
        %v5933 = vunpack.c.0.s8 %v5932
        %v5934 = vlaneseq
        %v5935 = vshrl.u32 %v5934, 7
        %v5936 = vsub.s32 %v5933, %v5935
        %v5937 = vrot.slane %v5918, %v5936
        %v5939 = vunpack.c.l.s4 1966171168
        %v5940 = vunpack.c.0.s8 %v5939
        %v5941 = vlaneseq
        %v5942 = vshrl.u32 %v5941, 7
        %v5943 = vsub.s32 %v5940, %v5942
        %v5944 = vrot.slane %v5919, %v5943
        %v5946 = vunpack.c.l.s4 1966171168
        %v5947 = vunpack.c.0.s8 %v5946
        %v5948 = vlaneseq
        %v5949 = vshrl.u32 %v5948, 7
        %v5950 = vsub.s32 %v5947, %v5949
        %v5951 = vrot.slane %v5920, %v5950
        %v5953 = vunpack.c.l.s4 1966171168
        %v5954 = vunpack.c.0.s8 %v5953
        %v5955 = vlaneseq
        %v5956 = vshrl.u32 %v5955, 7
        %v5957 = vsub.s32 %v5954, %v5956
        %v5958 = vrot.slane %v5921, %v5957
        %v5960 = vunpack.c.l.s4 1966171168
        %v5961 = vunpack.c.0.s8 %v5960
        %v5962 = vlaneseq
        %v5963 = vshrl.u32 %v5962, 7
        %v5964 = vsub.s32 %v5961, %v5963
        %v5965 = vrot.slane %v5922, %v5964
        %v5967 = vunpack.c.l.s4 1966171168
        %v5968 = vunpack.c.0.s8 %v5967
        %v5969 = vlaneseq
        %v5970 = vshrl.u32 %v5969, 7
        %v5971 = vsub.s32 %v5968, %v5970
        %v5972 = vrot.slane %v5036, %v5971
        %v5974 = vunpack.c.l.s4 1966171168
        %v5975 = vunpack.c.0.s8 %v5974
        %v5976 = vlaneseq
        %v5977 = vshrl.u32 %v5976, 7
        %v5978 = vsub.s32 %v5975, %v5977
        %v5979 = vrot.slane %v5923, %v5978
        %v5980 = vcombine.low %v5930, %v5944
        %v5981 = vcombine.high %v5930, %v5944
        %v5982 = vcombine.low %v5937, %v5951
        %v5983 = vcombine.low %v5958, %v5972
        %v5984 = vcombine.high %v5958, %v5972
        %v5985 = vcombine.low %v5965, %v5979
        %v5987 = vunpack.c.l.s4 1966171168
        %v5988 = vunpack.c.0.s8 %v5987
        %v5989 = vlaneseq
        %v5990 = vshrl.u32 %v5989, 7
        %v5991 = vsub.s32 %v5988, %v5990
        %v5992 = vrot.slane %v5980, %v5991
        %v5994 = vunpack.c.l.s4 1966171168
        %v5995 = vunpack.c.0.s8 %v5994
        %v5996 = vlaneseq
        %v5997 = vshrl.u32 %v5996, 7
        %v5998 = vsub.s32 %v5995, %v5997
        %v5999 = vrot.slane %v5982, %v5998
        %v6001 = vunpack.c.l.s4 1966171168
        %v6002 = vunpack.c.0.s8 %v6001
        %v6003 = vlaneseq
        %v6004 = vshrl.u32 %v6003, 7
        %v6005 = vsub.s32 %v6002, %v6004
        %v6006 = vrot.slane %v5981, %v6005
        %v6008 = vunpack.c.l.s4 1966171168
        %v6009 = vunpack.c.0.s8 %v6008
        %v6010 = vlaneseq
        %v6011 = vshrl.u32 %v6010, 7
        %v6012 = vsub.s32 %v6009, %v6011
        %v6013 = vrot.slane %v5983, %v6012
        %v6015 = vunpack.c.l.s4 1966171168
        %v6016 = vunpack.c.0.s8 %v6015
        %v6017 = vlaneseq
        %v6018 = vshrl.u32 %v6017, 7
        %v6019 = vsub.s32 %v6016, %v6018
        %v6020 = vrot.slane %v5985, %v6019
        %v6022 = vunpack.c.l.s4 1966171168
        %v6023 = vunpack.c.0.s8 %v6022
        %v6024 = vlaneseq
        %v6025 = vshrl.u32 %v6024, 7
        %v6026 = vsub.s32 %v6023, %v6025
        %v6027 = vrot.slane %v5984, %v6026
        %v6028 = vcombine.low %v5992, %v6013
        %v6029 = vcombine.high %v5992, %v6013
        %v6030 = vcombine.low %v5999, %v6020
        %v6031 = vcombine.low %v6006, %v6027
        %v6032 = vcombine.high %v6006, %v6027
        %v6073 = vmax.f32 %v5211, %v5328
        %v6074 = vmax.f32 %v6073, %v5445
        %vm6075 = vcmask 1046528
        %v6076 = vsel %vm6075, %v5561, -inf
        %v6077 = vmax.f32 %v6074, %v6076
        %v6078 = vrot.slane %v6077, 4
        %v6079 = vmax.f32 %v6077, %v6078
        %v6080 = vrot.slane %v6079, 2
        %v6081 = vmax.f32 %v6079, %v6080
        %v6082 = vrot.slane %v6081, 1
        %v6083 = vmax.f32 %v6081, %v6082
        %v6084 = vmax.f32 %v5214, %v5331
        %v6085 = vmax.f32 %v6084, %v5448
        %v6086 = vsel %vm6075, %v5564, -inf
        %v6087 = vmax.f32 %v6085, %v6086
        %v6088 = vrot.slane %v6087, 4
        %v6089 = vmax.f32 %v6087, %v6088
        %v6090 = vrot.slane %v6089, 2
        %v6091 = vmax.f32 %v6089, %v6090
        %v6092 = vrot.slane %v6091, 1
        %v6093 = vmax.f32 %v6091, %v6092
        %v6094 = vmax.f32 %v5212, %v5329
        %v6095 = vmax.f32 %v6094, %v5446
        %v6096 = vsel %vm6075, %v5562, -inf
        %v6097 = vmax.f32 %v6095, %v6096
        %v6098 = vrot.slane %v6097, 4
        %v6099 = vmax.f32 %v6097, %v6098
        %v6100 = vrot.slane %v6099, 2
        %v6101 = vmax.f32 %v6099, %v6100
        %v6102 = vrot.slane %v6101, 1
        %v6103 = vmax.f32 %v6101, %v6102
        %v6104 = vmax.f32 %v5215, %v5332
        %v6105 = vmax.f32 %v6104, %v5449
        %v6106 = vsel %vm6075, %v5565, -inf
        %v6107 = vmax.f32 %v6105, %v6106
        %v6108 = vrot.slane %v6107, 4
        %v6109 = vmax.f32 %v6107, %v6108
        %v6110 = vrot.slane %v6109, 2
        %v6111 = vmax.f32 %v6109, %v6110
        %v6112 = vrot.slane %v6111, 1
        %v6113 = vmax.f32 %v6111, %v6112
        %vm6114 = vcmask 719872
        %v6115 = vsel %vm6114, %v5213, -inf
        %v6116 = vsel %vm6114, %v5330, -inf
        %v6117 = vmax.f32 %v6115, %v6116
        %v6118 = vsel %vm6114, %v5447, -inf
        %v6119 = vmax.f32 %v6117, %v6118
        %vm6120 = vcmask 718848
        %v6121 = vsel %vm6120, %v5563, -inf
        %v6122 = vmax.f32 %v6119, %v6121
        %v6123 = vrot.slane %v6122, 4
        %v6124 = vmax.f32 %v6122, %v6123
        %v6125 = vrot.slane %v6124, 2
        %v6126 = vmax.f32 %v6124, %v6125
        %v6127 = vrot.slane %v6126, 1
        %v6128 = vmax.f32 %v6126, %v6127
        %v6129 = vmax.f32 %v5678, %v5795
        %v6130 = vmax.f32 %v6129, %v5912
        %v6131 = vsel %vm6075, %v6028, -inf
        %v6132 = vmax.f32 %v6130, %v6131
        %v6133 = vrot.slane %v6132, 4
        %v6134 = vmax.f32 %v6132, %v6133
        %v6135 = vrot.slane %v6134, 2
        %v6136 = vmax.f32 %v6134, %v6135
        %v6137 = vrot.slane %v6136, 1
        %v6138 = vmax.f32 %v6136, %v6137
        %v6139 = vmax.f32 %v5681, %v5798
        %v6140 = vmax.f32 %v6139, %v5915
        %v6141 = vsel %vm6075, %v6031, -inf
        %v6142 = vmax.f32 %v6140, %v6141
        %v6143 = vrot.slane %v6142, 4
        %v6144 = vmax.f32 %v6142, %v6143
        %v6145 = vrot.slane %v6144, 2
        %v6146 = vmax.f32 %v6144, %v6145
        %v6147 = vrot.slane %v6146, 1
        %v6148 = vmax.f32 %v6146, %v6147
        %v6149 = vmax.f32 %v5679, %v5796
        %v6150 = vmax.f32 %v6149, %v5913
        %v6151 = vsel %vm6075, %v6029, -inf
        %v6152 = vmax.f32 %v6150, %v6151
        %v6153 = vrot.slane %v6152, 4
        %v6154 = vmax.f32 %v6152, %v6153
        %v6155 = vrot.slane %v6154, 2
        %v6156 = vmax.f32 %v6154, %v6155
        %v6157 = vrot.slane %v6156, 1
        %v6158 = vmax.f32 %v6156, %v6157
        %v6159 = vmax.f32 %v5682, %v5799
        %v6160 = vmax.f32 %v6159, %v5916
        %v6161 = vsel %vm6075, %v6032, -inf
        %v6162 = vmax.f32 %v6160, %v6161
        %v6163 = vrot.slane %v6162, 4
        %v6164 = vmax.f32 %v6162, %v6163
        %v6165 = vrot.slane %v6164, 2
        %v6166 = vmax.f32 %v6164, %v6165
        %v6167 = vrot.slane %v6166, 1
        %v6168 = vmax.f32 %v6166, %v6167
        %v6169 = vsel %vm6114, %v5680, -inf
        %v6170 = vsel %vm6114, %v5797, -inf
        %v6171 = vmax.f32 %v6169, %v6170
        %v6172 = vsel %vm6114, %v5914, -inf
        %v6173 = vmax.f32 %v6171, %v6172
        %v6174 = vsel %vm6120, %v6030, -inf
        %v6175 = vmax.f32 %v6173, %v6174
        %v6176 = vrot.slane %v6175, 4
        %v6177 = vmax.f32 %v6175, %v6176
        %v6178 = vrot.slane %v6177, 2
        %v6179 = vmax.f32 %v6177, %v6178
        %v6180 = vrot.slane %v6179, 1
        %v6181 = vmax.f32 %v6179, %v6180
        %v6183 = vlaneseq
        %v6184 = vshrl.u32 %v6183, 7
        %v6185 = vsub.s32 0, %v6184
        %v6186 = vrot.slane %v469, %v6185
        %v6187 = vlaneseq
        %v6188 = vshrl.u32 %v6187, 7
        %v6189 = vsub.s32 1, %v6188
        %v6190 = vrot.slane %v469, %v6189
        %v6191 = vlaneseq
        %v6192 = vshrl.u32 %v6191, 7
        %v6193 = vsub.s32 2, %v6192
        %v6194 = vrot.slane %v469, %v6193
        %v6195 = vlaneseq
        %v6196 = vshrl.u32 %v6195, 7
        %v6197 = vsub.s32 3, %v6196
        %v6198 = vrot.slane %v469, %v6197
        %v6199 = vlaneseq
        %v6200 = vshrl.u32 %v6199, 7
        %v6201 = vsub.s32 4, %v6200
        %v6202 = vrot.slane %v469, %v6201
        %v6208 = vadd.f32 %v6083, %v6186
        %v6209 = vadd.f32 %v6093, %v6190
        %v6210 = vadd.f32 %v6103, %v6194
        %v6211 = vadd.f32 %v6113, %v6198
        %v6212 = vadd.f32 %v6128, %v6202
        %v6213 = vadd.f32 %v6138, %v6186
        %v6214 = vadd.f32 %v6148, %v6190
        %v6215 = vadd.f32 %v6158, %v6194
        %v6216 = vadd.f32 %v6168, %v6198
        %v6217 = vadd.f32 %v6181, %v6202
        %v6218 = vmax.f32 %v6208, 0.0
        %v6219 = vmax.f32 %v6209, 0.0
        %v6220 = vmax.f32 %v6210, 0.0
        %v6221 = vmax.f32 %v6211, 0.0
        %v6222 = vmax.f32 %v6212, 0.0
        %v6223 = vmax.f32 %v6213, 0.0
        %v6224 = vmax.f32 %v6214, 0.0
        %v6225 = vmax.f32 %v6215, 0.0
        %v6226 = vmax.f32 %v6216, 0.0
        %v6227 = vmax.f32 %v6217, 0.0
        %v6234 = vcombine.low %v6218, %v6219
        %v6236 = vunpack.c.l.s4 1983009808
        %v6237 = vunpack.c.0.s8 %v6236
        %v6238 = vlaneseq
        %v6239 = vshrl.u32 %v6238, 7
        %v6240 = vsub.s32 %v6237, %v6239
        %v6241 = vrot.slane %v6234, %v6240
        %v6243 = vunpack.c.l.s4 1983009808
        %v6244 = vunpack.c.0.s8 %v6243
        %v6245 = vlaneseq
        %v6246 = vshrl.u32 %v6245, 7
        %v6247 = vsub.s32 %v6244, %v6246
        %v6248 = vrot.slane %v6220, %v6247
        %v6249 = vcombine.low %v6241, %v6248
        %v6250 = vcombine.low %v6223, %v6224
        %v6252 = vunpack.c.l.s4 1983009808
        %v6253 = vunpack.c.0.s8 %v6252
        %v6254 = vlaneseq
        %v6255 = vshrl.u32 %v6254, 7
        %v6256 = vsub.s32 %v6253, %v6255
        %v6257 = vrot.slane %v6250, %v6256
        %v6259 = vunpack.c.l.s4 1983009808
        %v6260 = vunpack.c.0.s8 %v6259
        %v6261 = vlaneseq
        %v6262 = vshrl.u32 %v6261, 7
        %v6263 = vsub.s32 %v6260, %v6262
        %v6264 = vrot.slane %v6225, %v6263
        %v6265 = vcombine.low %v6257, %v6264
        %vm6266 = vcmask 1044484
        %v6267 = vsel %vm6266, %v6249, %v6249
        %vm6268 = vcmask 1046534
        %v6269 = vsel %vm6268, %v6249, %v6267
        %v6270 = vrot.slane %v6265, 7
        %vm6271 = vcmask 1041409
        %v6272 = vsel %vm6271, %v6270, %v6269
        %vm6273 = vcmask 1043459
        %v6274 = vsel %vm6273, %v6270, %v6272
        %vm6275 = vcmask 1045509
        %v6276 = vsel %vm6275, %v6270, %v6274
        %vm6277 = vcmask 1047559
        %v6278 = vsel %vm6277, %v6270, %v6276
        %vm6280 = vcmask 1041408
        %vm6281 = vcmask 1043458
        %vm6282 = vmor %vm6281, %vm6280
        %vm6283 = vcmask 357380
        %vm6284 = vmor %vm6283, %vm6282
        %6285 = vst.msk [vmem:[%s322] sm:$0x3f] %vm6284, %v6278
        %v6290 = vcombine.low %v6220, %v6221
        %v6292 = vunpack.c.l.s4 1983009808
        %v6293 = vunpack.c.0.s8 %v6292
        %v6294 = vlaneseq
        %v6295 = vshrl.u32 %v6294, 7
        %v6296 = vsub.s32 %v6293, %v6295
        %v6297 = vrot.slane %v6290, %v6296
        %v6299 = vunpack.c.l.s4 1983009808
        %v6300 = vunpack.c.0.s8 %v6299
        %v6301 = vlaneseq
        %v6302 = vshrl.u32 %v6301, 7
        %v6303 = vsub.s32 %v6300, %v6302
        %v6304 = vrot.slane %v6222, %v6303
        %v6305 = vcombine.low %v6297, %v6304
        %v6306 = vcombine.low %v6225, %v6226
        %v6308 = vunpack.c.l.s4 1983009808
        %v6309 = vunpack.c.0.s8 %v6308
        %v6310 = vlaneseq
        %v6311 = vshrl.u32 %v6310, 7
        %v6312 = vsub.s32 %v6309, %v6311
        %v6313 = vrot.slane %v6306, %v6312
        %v6315 = vunpack.c.l.s4 1983009808
        %v6316 = vunpack.c.0.s8 %v6315
        %v6317 = vlaneseq
        %v6318 = vshrl.u32 %v6317, 7
        %v6319 = vsub.s32 %v6316, %v6318
        %v6320 = vrot.slane %v6227, %v6319
        %v6321 = vcombine.low %v6313, %v6320
        %v6322 = vsel %vm6266, %v6305, %v6305
        %v6323 = vsel %vm6268, %v6305, %v6322
        %v6324 = vrot.slane %v6321, 7
        %v6325 = vsel %vm6271, %v6324, %v6323
        %v6326 = vsel %vm6273, %v6324, %v6325
        %v6327 = vsel %vm6275, %v6324, %v6326
        %v6328 = vsel %vm6277, %v6324, %v6327
        %6329 = vrot.lane.b32.xlu0 %v6328, 84
        %v6330 = vpop.permute.xlu0 %6329
        %v6331 = vrot.slane %v6330, 2
        %vm6332 = vcmask 687104
        %v6333 = vsel %vm6332, %v6330, %v6331
        %6335 = vst.msk [vmem:[%s329] sm:$0x3f] %vm6284, %v6333
        %v6336 = vadd.f32 %v2197, %v4088
        %v6337 = vadd.f32 %v2307, %v4092
        %v6338 = vadd.f32 %v2311, %v4089
        %v6339 = vadd.f32 %v2308, %v4093
        %v6340 = vadd.f32 %v2312, %v4090
        %v6341 = vadd.f32 %v2309, %v4094
        %v6342 = vadd.f32 %v2313, %v4091
        %v6343 = vadd.f32 %v2310, %v4095
        %v6344 = vadd.f32 %v2314, %v4205
        %v6345 = vadd.f32 %v2424, %v4209
        %v6346 = vadd.f32 %v2428, %v4206
        %v6347 = vadd.f32 %v2425, %v4210
        %v6348 = vadd.f32 %v2429, %v4207
        %v6349 = vadd.f32 %v2426, %v4211
        %v6350 = vadd.f32 %v2430, %v4208
        %v6351 = vadd.f32 %v2427, %v4212
        %v6352 = vadd.f32 %v2431, %v4322
        %v6353 = vadd.f32 %v2541, %v4326
        %v6354 = vadd.f32 %v2545, %v4323
        %v6355 = vadd.f32 %v2542, %v4327
        %v6356 = vadd.f32 %v2546, %v4324
        %v6357 = vadd.f32 %v2543, %v4328
        %v6358 = vadd.f32 %v2547, %v4325
        %v6359 = vadd.f32 %v2544, %v4329
        %v6360 = vadd.f32 %v2548, %v4439
        %v6361 = vadd.f32 %v2658, %v4443
        %v6362 = vadd.f32 %v2661, %v4440
        %v6363 = vadd.f32 %v2659, %v4444
        %v6364 = vadd.f32 %v2662, %v4441
        %v6365 = vadd.f32 %v2660, %v4445
        %v6366 = vadd.f32 %v2663, %v4442
        %v6367 = vadd.f32 %v2197, %v4446
        %v6368 = vadd.f32 %v2307, %v4556
        %v6369 = vadd.f32 %v2311, %v4560
        %v6370 = vadd.f32 %v2308, %v4557
        %v6371 = vadd.f32 %v2312, %v4561
        %v6372 = vadd.f32 %v2309, %v4558
        %v6373 = vadd.f32 %v2313, %v4562
        %v6374 = vadd.f32 %v2310, %v4559
        %v6375 = vadd.f32 %v2314, %v4563
        %v6376 = vadd.f32 %v2424, %v4673
        %v6377 = vadd.f32 %v2428, %v4677
        %v6378 = vadd.f32 %v2425, %v4674
        %v6379 = vadd.f32 %v2429, %v4678
        %v6380 = vadd.f32 %v2426, %v4675
        %v6381 = vadd.f32 %v2430, %v4679
        %v6382 = vadd.f32 %v2427, %v4676
        %v6383 = vadd.f32 %v2431, %v4680
        %v6384 = vadd.f32 %v2541, %v4790
        %v6385 = vadd.f32 %v2545, %v4794
        %v6386 = vadd.f32 %v2542, %v4791
        %v6387 = vadd.f32 %v2546, %v4795
        %v6388 = vadd.f32 %v2543, %v4792
        %v6389 = vadd.f32 %v2547, %v4796
        %v6390 = vadd.f32 %v2544, %v4793
        %v6391 = vadd.f32 %v2548, %v4797
        %v6392 = vadd.f32 %v2658, %v4907
        %v6393 = vadd.f32 %v2661, %v4910
        %v6394 = vadd.f32 %v2659, %v4908
        %v6395 = vadd.f32 %v2662, %v4911
        %v6396 = vadd.f32 %v2660, %v4909
        %v6397 = vadd.f32 %v2663, %v4912
        %v6460 = vcombine.low %v6336, %v6337
        %v6461 = vcombine.high %v6336, %v6337
        %v6462 = vcombine.low %v6338, %v6339
        %v6463 = vcombine.high %v6338, %v6339
        %v6464 = vcombine.low %v6340, %v6341
        %v6465 = vcombine.high %v6340, %v6341
        %v6466 = vcombine.low %v6342, %v6343
        %v6467 = vcombine.high %v6342, %v6343
        %v6469 = vunpack.c.l.s4 1966171168
        %v6470 = vunpack.c.0.s8 %v6469
        %v6471 = vlaneseq
        %v6472 = vshrl.u32 %v6471, 7
        %v6473 = vsub.s32 %v6470, %v6472
        %v6474 = vrot.slane %v6460, %v6473
        %v6476 = vunpack.c.l.s4 1966171168
        %v6477 = vunpack.c.0.s8 %v6476
        %v6478 = vlaneseq
        %v6479 = vshrl.u32 %v6478, 7
        %v6480 = vsub.s32 %v6477, %v6479
        %v6481 = vrot.slane %v6461, %v6480
        %v6483 = vunpack.c.l.s4 1966171168
        %v6484 = vunpack.c.0.s8 %v6483
        %v6485 = vlaneseq
        %v6486 = vshrl.u32 %v6485, 7
        %v6487 = vsub.s32 %v6484, %v6486
        %v6488 = vrot.slane %v6462, %v6487
        %v6490 = vunpack.c.l.s4 1966171168
        %v6491 = vunpack.c.0.s8 %v6490
        %v6492 = vlaneseq
        %v6493 = vshrl.u32 %v6492, 7
        %v6494 = vsub.s32 %v6491, %v6493
        %v6495 = vrot.slane %v6463, %v6494
        %v6497 = vunpack.c.l.s4 1966171168
        %v6498 = vunpack.c.0.s8 %v6497
        %v6499 = vlaneseq
        %v6500 = vshrl.u32 %v6499, 7
        %v6501 = vsub.s32 %v6498, %v6500
        %v6502 = vrot.slane %v6464, %v6501
        %v6504 = vunpack.c.l.s4 1966171168
        %v6505 = vunpack.c.0.s8 %v6504
        %v6506 = vlaneseq
        %v6507 = vshrl.u32 %v6506, 7
        %v6508 = vsub.s32 %v6505, %v6507
        %v6509 = vrot.slane %v6465, %v6508
        %v6511 = vunpack.c.l.s4 1966171168
        %v6512 = vunpack.c.0.s8 %v6511
        %v6513 = vlaneseq
        %v6514 = vshrl.u32 %v6513, 7
        %v6515 = vsub.s32 %v6512, %v6514
        %v6516 = vrot.slane %v6466, %v6515
        %v6518 = vunpack.c.l.s4 1966171168
        %v6519 = vunpack.c.0.s8 %v6518
        %v6520 = vlaneseq
        %v6521 = vshrl.u32 %v6520, 7
        %v6522 = vsub.s32 %v6519, %v6521
        %v6523 = vrot.slane %v6467, %v6522
        %v6524 = vcombine.low %v6474, %v6488
        %v6525 = vcombine.high %v6474, %v6488
        %v6526 = vcombine.low %v6481, %v6495
        %v6527 = vcombine.low %v6502, %v6516
        %v6528 = vcombine.high %v6502, %v6516
        %v6529 = vcombine.low %v6509, %v6523
        %v6531 = vunpack.c.l.s4 1966171168
        %v6532 = vunpack.c.0.s8 %v6531
        %v6533 = vlaneseq
        %v6534 = vshrl.u32 %v6533, 7
        %v6535 = vsub.s32 %v6532, %v6534
        %v6536 = vrot.slane %v6524, %v6535
        %v6538 = vunpack.c.l.s4 1966171168
        %v6539 = vunpack.c.0.s8 %v6538
        %v6540 = vlaneseq
        %v6541 = vshrl.u32 %v6540, 7
        %v6542 = vsub.s32 %v6539, %v6541
        %v6543 = vrot.slane %v6526, %v6542
        %v6545 = vunpack.c.l.s4 1966171168
        %v6546 = vunpack.c.0.s8 %v6545
        %v6547 = vlaneseq
        %v6548 = vshrl.u32 %v6547, 7
        %v6549 = vsub.s32 %v6546, %v6548
        %v6550 = vrot.slane %v6525, %v6549
        %v6552 = vunpack.c.l.s4 1966171168
        %v6553 = vunpack.c.0.s8 %v6552
        %v6554 = vlaneseq
        %v6555 = vshrl.u32 %v6554, 7
        %v6556 = vsub.s32 %v6553, %v6555
        %v6557 = vrot.slane %v6527, %v6556
        %v6559 = vunpack.c.l.s4 1966171168
        %v6560 = vunpack.c.0.s8 %v6559
        %v6561 = vlaneseq
        %v6562 = vshrl.u32 %v6561, 7
        %v6563 = vsub.s32 %v6560, %v6562
        %v6564 = vrot.slane %v6529, %v6563
        %v6566 = vunpack.c.l.s4 1966171168
        %v6567 = vunpack.c.0.s8 %v6566
        %v6568 = vlaneseq
        %v6569 = vshrl.u32 %v6568, 7
        %v6570 = vsub.s32 %v6567, %v6569
        %v6571 = vrot.slane %v6528, %v6570
        %v6572 = vcombine.low %v6536, %v6557
        %v6573 = vcombine.high %v6536, %v6557
        %v6574 = vcombine.low %v6543, %v6564
        %v6575 = vcombine.low %v6550, %v6571
        %v6576 = vcombine.high %v6550, %v6571
        %v6577 = vcombine.low %v6344, %v6345
        %v6578 = vcombine.high %v6344, %v6345
        %v6579 = vcombine.low %v6346, %v6347
        %v6580 = vcombine.high %v6346, %v6347
        %v6581 = vcombine.low %v6348, %v6349
        %v6582 = vcombine.high %v6348, %v6349
        %v6583 = vcombine.low %v6350, %v6351
        %v6584 = vcombine.high %v6350, %v6351
        %v6586 = vunpack.c.l.s4 1966171168
        %v6587 = vunpack.c.0.s8 %v6586
        %v6588 = vlaneseq
        %v6589 = vshrl.u32 %v6588, 7
        %v6590 = vsub.s32 %v6587, %v6589
        %v6591 = vrot.slane %v6577, %v6590
        %v6593 = vunpack.c.l.s4 1966171168
        %v6594 = vunpack.c.0.s8 %v6593
        %v6595 = vlaneseq
        %v6596 = vshrl.u32 %v6595, 7
        %v6597 = vsub.s32 %v6594, %v6596
        %v6598 = vrot.slane %v6578, %v6597
        %v6600 = vunpack.c.l.s4 1966171168
        %v6601 = vunpack.c.0.s8 %v6600
        %v6602 = vlaneseq
        %v6603 = vshrl.u32 %v6602, 7
        %v6604 = vsub.s32 %v6601, %v6603
        %v6605 = vrot.slane %v6579, %v6604
        %v6607 = vunpack.c.l.s4 1966171168
        %v6608 = vunpack.c.0.s8 %v6607
        %v6609 = vlaneseq
        %v6610 = vshrl.u32 %v6609, 7
        %v6611 = vsub.s32 %v6608, %v6610
        %v6612 = vrot.slane %v6580, %v6611
        %v6614 = vunpack.c.l.s4 1966171168
        %v6615 = vunpack.c.0.s8 %v6614
        %v6616 = vlaneseq
        %v6617 = vshrl.u32 %v6616, 7
        %v6618 = vsub.s32 %v6615, %v6617
        %v6619 = vrot.slane %v6581, %v6618
        %v6621 = vunpack.c.l.s4 1966171168
        %v6622 = vunpack.c.0.s8 %v6621
        %v6623 = vlaneseq
        %v6624 = vshrl.u32 %v6623, 7
        %v6625 = vsub.s32 %v6622, %v6624
        %v6626 = vrot.slane %v6582, %v6625
        %v6628 = vunpack.c.l.s4 1966171168
        %v6629 = vunpack.c.0.s8 %v6628
        %v6630 = vlaneseq
        %v6631 = vshrl.u32 %v6630, 7
        %v6632 = vsub.s32 %v6629, %v6631
        %v6633 = vrot.slane %v6583, %v6632
        %v6635 = vunpack.c.l.s4 1966171168
        %v6636 = vunpack.c.0.s8 %v6635
        %v6637 = vlaneseq
        %v6638 = vshrl.u32 %v6637, 7
        %v6639 = vsub.s32 %v6636, %v6638
        %v6640 = vrot.slane %v6584, %v6639
        %v6641 = vcombine.low %v6591, %v6605
        %v6642 = vcombine.high %v6591, %v6605
        %v6643 = vcombine.low %v6598, %v6612
        %v6644 = vcombine.low %v6619, %v6633
        %v6645 = vcombine.high %v6619, %v6633
        %v6646 = vcombine.low %v6626, %v6640
        %v6648 = vunpack.c.l.s4 1966171168
        %v6649 = vunpack.c.0.s8 %v6648
        %v6650 = vlaneseq
        %v6651 = vshrl.u32 %v6650, 7
        %v6652 = vsub.s32 %v6649, %v6651
        %v6653 = vrot.slane %v6641, %v6652
        %v6655 = vunpack.c.l.s4 1966171168
        %v6656 = vunpack.c.0.s8 %v6655
        %v6657 = vlaneseq
        %v6658 = vshrl.u32 %v6657, 7
        %v6659 = vsub.s32 %v6656, %v6658
        %v6660 = vrot.slane %v6643, %v6659
        %v6662 = vunpack.c.l.s4 1966171168
        %v6663 = vunpack.c.0.s8 %v6662
        %v6664 = vlaneseq
        %v6665 = vshrl.u32 %v6664, 7
        %v6666 = vsub.s32 %v6663, %v6665
        %v6667 = vrot.slane %v6642, %v6666
        %v6669 = vunpack.c.l.s4 1966171168
        %v6670 = vunpack.c.0.s8 %v6669
        %v6671 = vlaneseq
        %v6672 = vshrl.u32 %v6671, 7
        %v6673 = vsub.s32 %v6670, %v6672
        %v6674 = vrot.slane %v6644, %v6673
        %v6676 = vunpack.c.l.s4 1966171168
        %v6677 = vunpack.c.0.s8 %v6676
        %v6678 = vlaneseq
        %v6679 = vshrl.u32 %v6678, 7
        %v6680 = vsub.s32 %v6677, %v6679
        %v6681 = vrot.slane %v6646, %v6680
        %v6683 = vunpack.c.l.s4 1966171168
        %v6684 = vunpack.c.0.s8 %v6683
        %v6685 = vlaneseq
        %v6686 = vshrl.u32 %v6685, 7
        %v6687 = vsub.s32 %v6684, %v6686
        %v6688 = vrot.slane %v6645, %v6687
        %v6689 = vcombine.low %v6653, %v6674
        %v6690 = vcombine.high %v6653, %v6674
        %v6691 = vcombine.low %v6660, %v6681
        %v6692 = vcombine.low %v6667, %v6688
        %v6693 = vcombine.high %v6667, %v6688
        %v6694 = vcombine.low %v6352, %v6353
        %v6695 = vcombine.high %v6352, %v6353
        %v6696 = vcombine.low %v6354, %v6355
        %v6697 = vcombine.high %v6354, %v6355
        %v6698 = vcombine.low %v6356, %v6357
        %v6699 = vcombine.high %v6356, %v6357
        %v6700 = vcombine.low %v6358, %v6359
        %v6701 = vcombine.high %v6358, %v6359
        %v6703 = vunpack.c.l.s4 1966171168
        %v6704 = vunpack.c.0.s8 %v6703
        %v6705 = vlaneseq
        %v6706 = vshrl.u32 %v6705, 7
        %v6707 = vsub.s32 %v6704, %v6706
        %v6708 = vrot.slane %v6694, %v6707
        %v6710 = vunpack.c.l.s4 1966171168
        %v6711 = vunpack.c.0.s8 %v6710
        %v6712 = vlaneseq
        %v6713 = vshrl.u32 %v6712, 7
        %v6714 = vsub.s32 %v6711, %v6713
        %v6715 = vrot.slane %v6695, %v6714
        %v6717 = vunpack.c.l.s4 1966171168
        %v6718 = vunpack.c.0.s8 %v6717
        %v6719 = vlaneseq
        %v6720 = vshrl.u32 %v6719, 7
        %v6721 = vsub.s32 %v6718, %v6720
        %v6722 = vrot.slane %v6696, %v6721
        %v6724 = vunpack.c.l.s4 1966171168
        %v6725 = vunpack.c.0.s8 %v6724
        %v6726 = vlaneseq
        %v6727 = vshrl.u32 %v6726, 7
        %v6728 = vsub.s32 %v6725, %v6727
        %v6729 = vrot.slane %v6697, %v6728
        %v6731 = vunpack.c.l.s4 1966171168
        %v6732 = vunpack.c.0.s8 %v6731
        %v6733 = vlaneseq
        %v6734 = vshrl.u32 %v6733, 7
        %v6735 = vsub.s32 %v6732, %v6734
        %v6736 = vrot.slane %v6698, %v6735
        %v6738 = vunpack.c.l.s4 1966171168
        %v6739 = vunpack.c.0.s8 %v6738
        %v6740 = vlaneseq
        %v6741 = vshrl.u32 %v6740, 7
        %v6742 = vsub.s32 %v6739, %v6741
        %v6743 = vrot.slane %v6699, %v6742
        %v6745 = vunpack.c.l.s4 1966171168
        %v6746 = vunpack.c.0.s8 %v6745
        %v6747 = vlaneseq
        %v6748 = vshrl.u32 %v6747, 7
        %v6749 = vsub.s32 %v6746, %v6748
        %v6750 = vrot.slane %v6700, %v6749
        %v6752 = vunpack.c.l.s4 1966171168
        %v6753 = vunpack.c.0.s8 %v6752
        %v6754 = vlaneseq
        %v6755 = vshrl.u32 %v6754, 7
        %v6756 = vsub.s32 %v6753, %v6755
        %v6757 = vrot.slane %v6701, %v6756
        %v6758 = vcombine.low %v6708, %v6722
        %v6759 = vcombine.high %v6708, %v6722
        %v6760 = vcombine.low %v6715, %v6729
        %v6761 = vcombine.low %v6736, %v6750
        %v6762 = vcombine.high %v6736, %v6750
        %v6763 = vcombine.low %v6743, %v6757
        %v6765 = vunpack.c.l.s4 1966171168
        %v6766 = vunpack.c.0.s8 %v6765
        %v6767 = vlaneseq
        %v6768 = vshrl.u32 %v6767, 7
        %v6769 = vsub.s32 %v6766, %v6768
        %v6770 = vrot.slane %v6758, %v6769
        %v6772 = vunpack.c.l.s4 1966171168
        %v6773 = vunpack.c.0.s8 %v6772
        %v6774 = vlaneseq
        %v6775 = vshrl.u32 %v6774, 7
        %v6776 = vsub.s32 %v6773, %v6775
        %v6777 = vrot.slane %v6760, %v6776
        %v6779 = vunpack.c.l.s4 1966171168
        %v6780 = vunpack.c.0.s8 %v6779
        %v6781 = vlaneseq
        %v6782 = vshrl.u32 %v6781, 7
        %v6783 = vsub.s32 %v6780, %v6782
        %v6784 = vrot.slane %v6759, %v6783
        %v6786 = vunpack.c.l.s4 1966171168
        %v6787 = vunpack.c.0.s8 %v6786
        %v6788 = vlaneseq
        %v6789 = vshrl.u32 %v6788, 7
        %v6790 = vsub.s32 %v6787, %v6789
        %v6791 = vrot.slane %v6761, %v6790
        %v6793 = vunpack.c.l.s4 1966171168
        %v6794 = vunpack.c.0.s8 %v6793
        %v6795 = vlaneseq
        %v6796 = vshrl.u32 %v6795, 7
        %v6797 = vsub.s32 %v6794, %v6796
        %v6798 = vrot.slane %v6763, %v6797
        %v6800 = vunpack.c.l.s4 1966171168
        %v6801 = vunpack.c.0.s8 %v6800
        %v6802 = vlaneseq
        %v6803 = vshrl.u32 %v6802, 7
        %v6804 = vsub.s32 %v6801, %v6803
        %v6805 = vrot.slane %v6762, %v6804
        %v6806 = vcombine.low %v6770, %v6791
        %v6807 = vcombine.high %v6770, %v6791
        %v6808 = vcombine.low %v6777, %v6798
        %v6809 = vcombine.low %v6784, %v6805
        %v6810 = vcombine.high %v6784, %v6805
        %v6811 = vcombine.low %v6360, %v6361
        %v6812 = vcombine.high %v6360, %v6361
        %v6813 = vcombine.low %v6362, %v6363
        %v6814 = vcombine.high %v6362, %v6363
        %v6815 = vcombine.low %v6364, %v6365
        %v6816 = vcombine.high %v6364, %v6365
        %v6817 = vcombine.high %v6366, %v6366
        %v6819 = vunpack.c.l.s4 1966171168
        %v6820 = vunpack.c.0.s8 %v6819
        %v6821 = vlaneseq
        %v6822 = vshrl.u32 %v6821, 7
        %v6823 = vsub.s32 %v6820, %v6822
        %v6824 = vrot.slane %v6811, %v6823
        %v6826 = vunpack.c.l.s4 1966171168
        %v6827 = vunpack.c.0.s8 %v6826
        %v6828 = vlaneseq
        %v6829 = vshrl.u32 %v6828, 7
        %v6830 = vsub.s32 %v6827, %v6829
        %v6831 = vrot.slane %v6812, %v6830
        %v6833 = vunpack.c.l.s4 1966171168
        %v6834 = vunpack.c.0.s8 %v6833
        %v6835 = vlaneseq
        %v6836 = vshrl.u32 %v6835, 7
        %v6837 = vsub.s32 %v6834, %v6836
        %v6838 = vrot.slane %v6813, %v6837
        %v6840 = vunpack.c.l.s4 1966171168
        %v6841 = vunpack.c.0.s8 %v6840
        %v6842 = vlaneseq
        %v6843 = vshrl.u32 %v6842, 7
        %v6844 = vsub.s32 %v6841, %v6843
        %v6845 = vrot.slane %v6814, %v6844
        %v6847 = vunpack.c.l.s4 1966171168
        %v6848 = vunpack.c.0.s8 %v6847
        %v6849 = vlaneseq
        %v6850 = vshrl.u32 %v6849, 7
        %v6851 = vsub.s32 %v6848, %v6850
        %v6852 = vrot.slane %v6815, %v6851
        %v6854 = vunpack.c.l.s4 1966171168
        %v6855 = vunpack.c.0.s8 %v6854
        %v6856 = vlaneseq
        %v6857 = vshrl.u32 %v6856, 7
        %v6858 = vsub.s32 %v6855, %v6857
        %v6859 = vrot.slane %v6816, %v6858
        %v6861 = vunpack.c.l.s4 1966171168
        %v6862 = vunpack.c.0.s8 %v6861
        %v6863 = vlaneseq
        %v6864 = vshrl.u32 %v6863, 7
        %v6865 = vsub.s32 %v6862, %v6864
        %v6866 = vrot.slane %v6366, %v6865
        %v6868 = vunpack.c.l.s4 1966171168
        %v6869 = vunpack.c.0.s8 %v6868
        %v6870 = vlaneseq
        %v6871 = vshrl.u32 %v6870, 7
        %v6872 = vsub.s32 %v6869, %v6871
        %v6873 = vrot.slane %v6817, %v6872
        %v6874 = vcombine.low %v6824, %v6838
        %v6875 = vcombine.high %v6824, %v6838
        %v6876 = vcombine.low %v6831, %v6845
        %v6877 = vcombine.low %v6852, %v6866
        %v6878 = vcombine.high %v6852, %v6866
        %v6879 = vcombine.low %v6859, %v6873
        %v6881 = vunpack.c.l.s4 1966171168
        %v6882 = vunpack.c.0.s8 %v6881
        %v6883 = vlaneseq
        %v6884 = vshrl.u32 %v6883, 7
        %v6885 = vsub.s32 %v6882, %v6884
        %v6886 = vrot.slane %v6874, %v6885
        %v6888 = vunpack.c.l.s4 1966171168
        %v6889 = vunpack.c.0.s8 %v6888
        %v6890 = vlaneseq
        %v6891 = vshrl.u32 %v6890, 7
        %v6892 = vsub.s32 %v6889, %v6891
        %v6893 = vrot.slane %v6876, %v6892
        %v6895 = vunpack.c.l.s4 1966171168
        %v6896 = vunpack.c.0.s8 %v6895
        %v6897 = vlaneseq
        %v6898 = vshrl.u32 %v6897, 7
        %v6899 = vsub.s32 %v6896, %v6898
        %v6900 = vrot.slane %v6875, %v6899
        %v6902 = vunpack.c.l.s4 1966171168
        %v6903 = vunpack.c.0.s8 %v6902
        %v6904 = vlaneseq
        %v6905 = vshrl.u32 %v6904, 7
        %v6906 = vsub.s32 %v6903, %v6905
        %v6907 = vrot.slane %v6877, %v6906
        %v6909 = vunpack.c.l.s4 1966171168
        %v6910 = vunpack.c.0.s8 %v6909
        %v6911 = vlaneseq
        %v6912 = vshrl.u32 %v6911, 7
        %v6913 = vsub.s32 %v6910, %v6912
        %v6914 = vrot.slane %v6879, %v6913
        %v6916 = vunpack.c.l.s4 1966171168
        %v6917 = vunpack.c.0.s8 %v6916
        %v6918 = vlaneseq
        %v6919 = vshrl.u32 %v6918, 7
        %v6920 = vsub.s32 %v6917, %v6919
        %v6921 = vrot.slane %v6878, %v6920
        %v6922 = vcombine.low %v6886, %v6907
        %v6923 = vcombine.high %v6886, %v6907
        %v6924 = vcombine.low %v6893, %v6914
        %v6925 = vcombine.low %v6900, %v6921
        %v6926 = vcombine.high %v6900, %v6921
        %v6927 = vcombine.low %v6367, %v6368
        %v6928 = vcombine.high %v6367, %v6368
        %v6929 = vcombine.low %v6369, %v6370
        %v6930 = vcombine.high %v6369, %v6370
        %v6931 = vcombine.low %v6371, %v6372
        %v6932 = vcombine.high %v6371, %v6372
        %v6933 = vcombine.low %v6373, %v6374
        %v6934 = vcombine.high %v6373, %v6374
        %v6936 = vunpack.c.l.s4 1966171168
        %v6937 = vunpack.c.0.s8 %v6936
        %v6938 = vlaneseq
        %v6939 = vshrl.u32 %v6938, 7
        %v6940 = vsub.s32 %v6937, %v6939
        %v6941 = vrot.slane %v6927, %v6940
        %v6943 = vunpack.c.l.s4 1966171168
        %v6944 = vunpack.c.0.s8 %v6943
        %v6945 = vlaneseq
        %v6946 = vshrl.u32 %v6945, 7
        %v6947 = vsub.s32 %v6944, %v6946
        %v6948 = vrot.slane %v6928, %v6947
        %v6950 = vunpack.c.l.s4 1966171168
        %v6951 = vunpack.c.0.s8 %v6950
        %v6952 = vlaneseq
        %v6953 = vshrl.u32 %v6952, 7
        %v6954 = vsub.s32 %v6951, %v6953
        %v6955 = vrot.slane %v6929, %v6954
        %v6957 = vunpack.c.l.s4 1966171168
        %v6958 = vunpack.c.0.s8 %v6957
        %v6959 = vlaneseq
        %v6960 = vshrl.u32 %v6959, 7
        %v6961 = vsub.s32 %v6958, %v6960
        %v6962 = vrot.slane %v6930, %v6961
        %v6964 = vunpack.c.l.s4 1966171168
        %v6965 = vunpack.c.0.s8 %v6964
        %v6966 = vlaneseq
        %v6967 = vshrl.u32 %v6966, 7
        %v6968 = vsub.s32 %v6965, %v6967
        %v6969 = vrot.slane %v6931, %v6968
        %v6971 = vunpack.c.l.s4 1966171168
        %v6972 = vunpack.c.0.s8 %v6971
        %v6973 = vlaneseq
        %v6974 = vshrl.u32 %v6973, 7
        %v6975 = vsub.s32 %v6972, %v6974
        %v6976 = vrot.slane %v6932, %v6975
        %v6978 = vunpack.c.l.s4 1966171168
        %v6979 = vunpack.c.0.s8 %v6978
        %v6980 = vlaneseq
        %v6981 = vshrl.u32 %v6980, 7
        %v6982 = vsub.s32 %v6979, %v6981
        %v6983 = vrot.slane %v6933, %v6982
        %v6985 = vunpack.c.l.s4 1966171168
        %v6986 = vunpack.c.0.s8 %v6985
        %v6987 = vlaneseq
        %v6988 = vshrl.u32 %v6987, 7
        %v6989 = vsub.s32 %v6986, %v6988
        %v6990 = vrot.slane %v6934, %v6989
        %v6991 = vcombine.low %v6941, %v6955
        %v6992 = vcombine.high %v6941, %v6955
        %v6993 = vcombine.low %v6948, %v6962
        %v6994 = vcombine.low %v6969, %v6983
        %v6995 = vcombine.high %v6969, %v6983
        %v6996 = vcombine.low %v6976, %v6990
        %v6998 = vunpack.c.l.s4 1966171168
        %v6999 = vunpack.c.0.s8 %v6998
        %v7000 = vlaneseq
        %v7001 = vshrl.u32 %v7000, 7
        %v7002 = vsub.s32 %v6999, %v7001
        %v7003 = vrot.slane %v6991, %v7002
        %v7005 = vunpack.c.l.s4 1966171168
        %v7006 = vunpack.c.0.s8 %v7005
        %v7007 = vlaneseq
        %v7008 = vshrl.u32 %v7007, 7
        %v7009 = vsub.s32 %v7006, %v7008
        %v7010 = vrot.slane %v6993, %v7009
        %v7012 = vunpack.c.l.s4 1966171168
        %v7013 = vunpack.c.0.s8 %v7012
        %v7014 = vlaneseq
        %v7015 = vshrl.u32 %v7014, 7
        %v7016 = vsub.s32 %v7013, %v7015
        %v7017 = vrot.slane %v6992, %v7016
        %v7019 = vunpack.c.l.s4 1966171168
        %v7020 = vunpack.c.0.s8 %v7019
        %v7021 = vlaneseq
        %v7022 = vshrl.u32 %v7021, 7
        %v7023 = vsub.s32 %v7020, %v7022
        %v7024 = vrot.slane %v6994, %v7023
        %v7026 = vunpack.c.l.s4 1966171168
        %v7027 = vunpack.c.0.s8 %v7026
        %v7028 = vlaneseq
        %v7029 = vshrl.u32 %v7028, 7
        %v7030 = vsub.s32 %v7027, %v7029
        %v7031 = vrot.slane %v6996, %v7030
        %v7033 = vunpack.c.l.s4 1966171168
        %v7034 = vunpack.c.0.s8 %v7033
        %v7035 = vlaneseq
        %v7036 = vshrl.u32 %v7035, 7
        %v7037 = vsub.s32 %v7034, %v7036
        %v7038 = vrot.slane %v6995, %v7037
        %v7039 = vcombine.low %v7003, %v7024
        %v7040 = vcombine.high %v7003, %v7024
        %v7041 = vcombine.low %v7010, %v7031
        %v7042 = vcombine.low %v7017, %v7038
        %v7043 = vcombine.high %v7017, %v7038
        %v7044 = vcombine.low %v6375, %v6376
        %v7045 = vcombine.high %v6375, %v6376
        %v7046 = vcombine.low %v6377, %v6378
        %v7047 = vcombine.high %v6377, %v6378
        %v7048 = vcombine.low %v6379, %v6380
        %v7049 = vcombine.high %v6379, %v6380
        %v7050 = vcombine.low %v6381, %v6382
        %v7051 = vcombine.high %v6381, %v6382
        %v7053 = vunpack.c.l.s4 1966171168
        %v7054 = vunpack.c.0.s8 %v7053
        %v7055 = vlaneseq
        %v7056 = vshrl.u32 %v7055, 7
        %v7057 = vsub.s32 %v7054, %v7056
        %v7058 = vrot.slane %v7044, %v7057
        %v7060 = vunpack.c.l.s4 1966171168
        %v7061 = vunpack.c.0.s8 %v7060
        %v7062 = vlaneseq
        %v7063 = vshrl.u32 %v7062, 7
        %v7064 = vsub.s32 %v7061, %v7063
        %v7065 = vrot.slane %v7045, %v7064
        %v7067 = vunpack.c.l.s4 1966171168
        %v7068 = vunpack.c.0.s8 %v7067
        %v7069 = vlaneseq
        %v7070 = vshrl.u32 %v7069, 7
        %v7071 = vsub.s32 %v7068, %v7070
        %v7072 = vrot.slane %v7046, %v7071
        %v7074 = vunpack.c.l.s4 1966171168
        %v7075 = vunpack.c.0.s8 %v7074
        %v7076 = vlaneseq
        %v7077 = vshrl.u32 %v7076, 7
        %v7078 = vsub.s32 %v7075, %v7077
        %v7079 = vrot.slane %v7047, %v7078
        %v7081 = vunpack.c.l.s4 1966171168
        %v7082 = vunpack.c.0.s8 %v7081
        %v7083 = vlaneseq
        %v7084 = vshrl.u32 %v7083, 7
        %v7085 = vsub.s32 %v7082, %v7084
        %v7086 = vrot.slane %v7048, %v7085
        %v7088 = vunpack.c.l.s4 1966171168
        %v7089 = vunpack.c.0.s8 %v7088
        %v7090 = vlaneseq
        %v7091 = vshrl.u32 %v7090, 7
        %v7092 = vsub.s32 %v7089, %v7091
        %v7093 = vrot.slane %v7049, %v7092
        %v7095 = vunpack.c.l.s4 1966171168
        %v7096 = vunpack.c.0.s8 %v7095
        %v7097 = vlaneseq
        %v7098 = vshrl.u32 %v7097, 7
        %v7099 = vsub.s32 %v7096, %v7098
        %v7100 = vrot.slane %v7050, %v7099
        %v7102 = vunpack.c.l.s4 1966171168
        %v7103 = vunpack.c.0.s8 %v7102
        %v7104 = vlaneseq
        %v7105 = vshrl.u32 %v7104, 7
        %v7106 = vsub.s32 %v7103, %v7105
        %v7107 = vrot.slane %v7051, %v7106
        %v7108 = vcombine.low %v7058, %v7072
        %v7109 = vcombine.high %v7058, %v7072
        %v7110 = vcombine.low %v7065, %v7079
        %v7111 = vcombine.low %v7086, %v7100
        %v7112 = vcombine.high %v7086, %v7100
        %v7113 = vcombine.low %v7093, %v7107
        %v7115 = vunpack.c.l.s4 1966171168
        %v7116 = vunpack.c.0.s8 %v7115
        %v7117 = vlaneseq
        %v7118 = vshrl.u32 %v7117, 7
        %v7119 = vsub.s32 %v7116, %v7118
        %v7120 = vrot.slane %v7108, %v7119
        %v7122 = vunpack.c.l.s4 1966171168
        %v7123 = vunpack.c.0.s8 %v7122
        %v7124 = vlaneseq
        %v7125 = vshrl.u32 %v7124, 7
        %v7126 = vsub.s32 %v7123, %v7125
        %v7127 = vrot.slane %v7110, %v7126
        %v7129 = vunpack.c.l.s4 1966171168
        %v7130 = vunpack.c.0.s8 %v7129
        %v7131 = vlaneseq
        %v7132 = vshrl.u32 %v7131, 7
        %v7133 = vsub.s32 %v7130, %v7132
        %v7134 = vrot.slane %v7109, %v7133
        %v7136 = vunpack.c.l.s4 1966171168
        %v7137 = vunpack.c.0.s8 %v7136
        %v7138 = vlaneseq
        %v7139 = vshrl.u32 %v7138, 7
        %v7140 = vsub.s32 %v7137, %v7139
        %v7141 = vrot.slane %v7111, %v7140
        %v7143 = vunpack.c.l.s4 1966171168
        %v7144 = vunpack.c.0.s8 %v7143
        %v7145 = vlaneseq
        %v7146 = vshrl.u32 %v7145, 7
        %v7147 = vsub.s32 %v7144, %v7146
        %v7148 = vrot.slane %v7113, %v7147
        %v7150 = vunpack.c.l.s4 1966171168
        %v7151 = vunpack.c.0.s8 %v7150
        %v7152 = vlaneseq
        %v7153 = vshrl.u32 %v7152, 7
        %v7154 = vsub.s32 %v7151, %v7153
        %v7155 = vrot.slane %v7112, %v7154
        %v7156 = vcombine.low %v7120, %v7141
        %v7157 = vcombine.high %v7120, %v7141
        %v7158 = vcombine.low %v7127, %v7148
        %v7159 = vcombine.low %v7134, %v7155
        %v7160 = vcombine.high %v7134, %v7155
        %v7161 = vcombine.low %v6383, %v6384
        %v7162 = vcombine.high %v6383, %v6384
        %v7163 = vcombine.low %v6385, %v6386
        %v7164 = vcombine.high %v6385, %v6386
        %v7165 = vcombine.low %v6387, %v6388
        %v7166 = vcombine.high %v6387, %v6388
        %v7167 = vcombine.low %v6389, %v6390
        %v7168 = vcombine.high %v6389, %v6390
        %v7170 = vunpack.c.l.s4 1966171168
        %v7171 = vunpack.c.0.s8 %v7170
        %v7172 = vlaneseq
        %v7173 = vshrl.u32 %v7172, 7
        %v7174 = vsub.s32 %v7171, %v7173
        %v7175 = vrot.slane %v7161, %v7174
        %v7177 = vunpack.c.l.s4 1966171168
        %v7178 = vunpack.c.0.s8 %v7177
        %v7179 = vlaneseq
        %v7180 = vshrl.u32 %v7179, 7
        %v7181 = vsub.s32 %v7178, %v7180
        %v7182 = vrot.slane %v7162, %v7181
        %v7184 = vunpack.c.l.s4 1966171168
        %v7185 = vunpack.c.0.s8 %v7184
        %v7186 = vlaneseq
        %v7187 = vshrl.u32 %v7186, 7
        %v7188 = vsub.s32 %v7185, %v7187
        %v7189 = vrot.slane %v7163, %v7188
        %v7191 = vunpack.c.l.s4 1966171168
        %v7192 = vunpack.c.0.s8 %v7191
        %v7193 = vlaneseq
        %v7194 = vshrl.u32 %v7193, 7
        %v7195 = vsub.s32 %v7192, %v7194
        %v7196 = vrot.slane %v7164, %v7195
        %v7198 = vunpack.c.l.s4 1966171168
        %v7199 = vunpack.c.0.s8 %v7198
        %v7200 = vlaneseq
        %v7201 = vshrl.u32 %v7200, 7
        %v7202 = vsub.s32 %v7199, %v7201
        %v7203 = vrot.slane %v7165, %v7202
        %v7205 = vunpack.c.l.s4 1966171168
        %v7206 = vunpack.c.0.s8 %v7205
        %v7207 = vlaneseq
        %v7208 = vshrl.u32 %v7207, 7
        %v7209 = vsub.s32 %v7206, %v7208
        %v7210 = vrot.slane %v7166, %v7209
        %v7212 = vunpack.c.l.s4 1966171168
        %v7213 = vunpack.c.0.s8 %v7212
        %v7214 = vlaneseq
        %v7215 = vshrl.u32 %v7214, 7
        %v7216 = vsub.s32 %v7213, %v7215
        %v7217 = vrot.slane %v7167, %v7216
        %v7219 = vunpack.c.l.s4 1966171168
        %v7220 = vunpack.c.0.s8 %v7219
        %v7221 = vlaneseq
        %v7222 = vshrl.u32 %v7221, 7
        %v7223 = vsub.s32 %v7220, %v7222
        %v7224 = vrot.slane %v7168, %v7223
        %v7225 = vcombine.low %v7175, %v7189
        %v7226 = vcombine.high %v7175, %v7189
        %v7227 = vcombine.low %v7182, %v7196
        %v7228 = vcombine.low %v7203, %v7217
        %v7229 = vcombine.high %v7203, %v7217
        %v7230 = vcombine.low %v7210, %v7224
        %v7232 = vunpack.c.l.s4 1966171168
        %v7233 = vunpack.c.0.s8 %v7232
        %v7234 = vlaneseq
        %v7235 = vshrl.u32 %v7234, 7
        %v7236 = vsub.s32 %v7233, %v7235
        %v7237 = vrot.slane %v7225, %v7236
        %v7239 = vunpack.c.l.s4 1966171168
        %v7240 = vunpack.c.0.s8 %v7239
        %v7241 = vlaneseq
        %v7242 = vshrl.u32 %v7241, 7
        %v7243 = vsub.s32 %v7240, %v7242
        %v7244 = vrot.slane %v7227, %v7243
        %v7246 = vunpack.c.l.s4 1966171168
        %v7247 = vunpack.c.0.s8 %v7246
        %v7248 = vlaneseq
        %v7249 = vshrl.u32 %v7248, 7
        %v7250 = vsub.s32 %v7247, %v7249
        %v7251 = vrot.slane %v7226, %v7250
        %v7253 = vunpack.c.l.s4 1966171168
        %v7254 = vunpack.c.0.s8 %v7253
        %v7255 = vlaneseq
        %v7256 = vshrl.u32 %v7255, 7
        %v7257 = vsub.s32 %v7254, %v7256
        %v7258 = vrot.slane %v7228, %v7257
        %v7260 = vunpack.c.l.s4 1966171168
        %v7261 = vunpack.c.0.s8 %v7260
        %v7262 = vlaneseq
        %v7263 = vshrl.u32 %v7262, 7
        %v7264 = vsub.s32 %v7261, %v7263
        %v7265 = vrot.slane %v7230, %v7264
        %v7267 = vunpack.c.l.s4 1966171168
        %v7268 = vunpack.c.0.s8 %v7267
        %v7269 = vlaneseq
        %v7270 = vshrl.u32 %v7269, 7
        %v7271 = vsub.s32 %v7268, %v7270
        %v7272 = vrot.slane %v7229, %v7271
        %v7273 = vcombine.low %v7237, %v7258
        %v7274 = vcombine.high %v7237, %v7258
        %v7275 = vcombine.low %v7244, %v7265
        %v7276 = vcombine.low %v7251, %v7272
        %v7277 = vcombine.high %v7251, %v7272
        %v7278 = vcombine.low %v6391, %v6392
        %v7279 = vcombine.high %v6391, %v6392
        %v7280 = vcombine.low %v6393, %v6394
        %v7281 = vcombine.high %v6393, %v6394
        %v7282 = vcombine.low %v6395, %v6396
        %v7283 = vcombine.high %v6395, %v6396
        %v7284 = vcombine.high %v6397, %v6397
        %v7286 = vunpack.c.l.s4 1966171168
        %v7287 = vunpack.c.0.s8 %v7286
        %v7288 = vlaneseq
        %v7289 = vshrl.u32 %v7288, 7
        %v7290 = vsub.s32 %v7287, %v7289
        %v7291 = vrot.slane %v7278, %v7290
        %v7293 = vunpack.c.l.s4 1966171168
        %v7294 = vunpack.c.0.s8 %v7293
        %v7295 = vlaneseq
        %v7296 = vshrl.u32 %v7295, 7
        %v7297 = vsub.s32 %v7294, %v7296
        %v7298 = vrot.slane %v7279, %v7297
        %v7300 = vunpack.c.l.s4 1966171168
        %v7301 = vunpack.c.0.s8 %v7300
        %v7302 = vlaneseq
        %v7303 = vshrl.u32 %v7302, 7
        %v7304 = vsub.s32 %v7301, %v7303
        %v7305 = vrot.slane %v7280, %v7304
        %v7307 = vunpack.c.l.s4 1966171168
        %v7308 = vunpack.c.0.s8 %v7307
        %v7309 = vlaneseq
        %v7310 = vshrl.u32 %v7309, 7
        %v7311 = vsub.s32 %v7308, %v7310
        %v7312 = vrot.slane %v7281, %v7311
        %v7314 = vunpack.c.l.s4 1966171168
        %v7315 = vunpack.c.0.s8 %v7314
        %v7316 = vlaneseq
        %v7317 = vshrl.u32 %v7316, 7
        %v7318 = vsub.s32 %v7315, %v7317
        %v7319 = vrot.slane %v7282, %v7318
        %v7321 = vunpack.c.l.s4 1966171168
        %v7322 = vunpack.c.0.s8 %v7321
        %v7323 = vlaneseq
        %v7324 = vshrl.u32 %v7323, 7
        %v7325 = vsub.s32 %v7322, %v7324
        %v7326 = vrot.slane %v7283, %v7325
        %v7328 = vunpack.c.l.s4 1966171168
        %v7329 = vunpack.c.0.s8 %v7328
        %v7330 = vlaneseq
        %v7331 = vshrl.u32 %v7330, 7
        %v7332 = vsub.s32 %v7329, %v7331
        %v7333 = vrot.slane %v6397, %v7332
        %v7335 = vunpack.c.l.s4 1966171168
        %v7336 = vunpack.c.0.s8 %v7335
        %v7337 = vlaneseq
        %v7338 = vshrl.u32 %v7337, 7
        %v7339 = vsub.s32 %v7336, %v7338
        %v7340 = vrot.slane %v7284, %v7339
        %v7341 = vcombine.low %v7291, %v7305
        %v7342 = vcombine.high %v7291, %v7305
        %v7343 = vcombine.low %v7298, %v7312
        %v7344 = vcombine.low %v7319, %v7333
        %v7345 = vcombine.high %v7319, %v7333
        %v7346 = vcombine.low %v7326, %v7340
        %v7348 = vunpack.c.l.s4 1966171168
        %v7349 = vunpack.c.0.s8 %v7348
        %v7350 = vlaneseq
        %v7351 = vshrl.u32 %v7350, 7
        %v7352 = vsub.s32 %v7349, %v7351
        %v7353 = vrot.slane %v7341, %v7352
        %v7355 = vunpack.c.l.s4 1966171168
        %v7356 = vunpack.c.0.s8 %v7355
        %v7357 = vlaneseq
        %v7358 = vshrl.u32 %v7357, 7
        %v7359 = vsub.s32 %v7356, %v7358
        %v7360 = vrot.slane %v7343, %v7359
        %v7362 = vunpack.c.l.s4 1966171168
        %v7363 = vunpack.c.0.s8 %v7362
        %v7364 = vlaneseq
        %v7365 = vshrl.u32 %v7364, 7
        %v7366 = vsub.s32 %v7363, %v7365
        %v7367 = vrot.slane %v7342, %v7366
        %v7369 = vunpack.c.l.s4 1966171168
        %v7370 = vunpack.c.0.s8 %v7369
        %v7371 = vlaneseq
        %v7372 = vshrl.u32 %v7371, 7
        %v7373 = vsub.s32 %v7370, %v7372
        %v7374 = vrot.slane %v7344, %v7373
        %v7376 = vunpack.c.l.s4 1966171168
        %v7377 = vunpack.c.0.s8 %v7376
        %v7378 = vlaneseq
        %v7379 = vshrl.u32 %v7378, 7
        %v7380 = vsub.s32 %v7377, %v7379
        %v7381 = vrot.slane %v7346, %v7380
        %v7383 = vunpack.c.l.s4 1966171168
        %v7384 = vunpack.c.0.s8 %v7383
        %v7385 = vlaneseq
        %v7386 = vshrl.u32 %v7385, 7
        %v7387 = vsub.s32 %v7384, %v7386
        %v7388 = vrot.slane %v7345, %v7387
        %v7389 = vcombine.low %v7353, %v7374
        %v7390 = vcombine.high %v7353, %v7374
        %v7391 = vcombine.low %v7360, %v7381
        %v7392 = vcombine.low %v7367, %v7388
        %v7393 = vcombine.high %v7367, %v7388
        %v7434 = vmax.f32 %v6572, %v6689
        %v7435 = vmax.f32 %v7434, %v6806
        %v7436 = vsel %vm6075, %v6922, -inf
        %v7437 = vmax.f32 %v7435, %v7436
        %v7438 = vrot.slane %v7437, 4
        %v7439 = vmax.f32 %v7437, %v7438
        %v7440 = vrot.slane %v7439, 2
        %v7441 = vmax.f32 %v7439, %v7440
        %v7442 = vrot.slane %v7441, 1
        %v7443 = vmax.f32 %v7441, %v7442
        %v7444 = vmax.f32 %v6575, %v6692
        %v7445 = vmax.f32 %v7444, %v6809
        %v7446 = vsel %vm6075, %v6925, -inf
        %v7447 = vmax.f32 %v7445, %v7446
        %v7448 = vrot.slane %v7447, 4
        %v7449 = vmax.f32 %v7447, %v7448
        %v7450 = vrot.slane %v7449, 2
        %v7451 = vmax.f32 %v7449, %v7450
        %v7452 = vrot.slane %v7451, 1
        %v7453 = vmax.f32 %v7451, %v7452
        %v7454 = vmax.f32 %v6573, %v6690
        %v7455 = vmax.f32 %v7454, %v6807
        %v7456 = vsel %vm6075, %v6923, -inf
        %v7457 = vmax.f32 %v7455, %v7456
        %v7458 = vrot.slane %v7457, 4
        %v7459 = vmax.f32 %v7457, %v7458
        %v7460 = vrot.slane %v7459, 2
        %v7461 = vmax.f32 %v7459, %v7460
        %v7462 = vrot.slane %v7461, 1
        %v7463 = vmax.f32 %v7461, %v7462
        %v7464 = vmax.f32 %v6576, %v6693
        %v7465 = vmax.f32 %v7464, %v6810
        %v7466 = vsel %vm6075, %v6926, -inf
        %v7467 = vmax.f32 %v7465, %v7466
        %v7468 = vrot.slane %v7467, 4
        %v7469 = vmax.f32 %v7467, %v7468
        %v7470 = vrot.slane %v7469, 2
        %v7471 = vmax.f32 %v7469, %v7470
        %v7472 = vrot.slane %v7471, 1
        %v7473 = vmax.f32 %v7471, %v7472
        %v7474 = vsel %vm6114, %v6574, -inf
        %v7475 = vsel %vm6114, %v6691, -inf
        %v7476 = vmax.f32 %v7474, %v7475
        %v7477 = vsel %vm6114, %v6808, -inf
        %v7478 = vmax.f32 %v7476, %v7477
        %v7479 = vsel %vm6120, %v6924, -inf
        %v7480 = vmax.f32 %v7478, %v7479
        %v7481 = vrot.slane %v7480, 4
        %v7482 = vmax.f32 %v7480, %v7481
        %v7483 = vrot.slane %v7482, 2
        %v7484 = vmax.f32 %v7482, %v7483
        %v7485 = vrot.slane %v7484, 1
        %v7486 = vmax.f32 %v7484, %v7485
        %v7487 = vmax.f32 %v7039, %v7156
        %v7488 = vmax.f32 %v7487, %v7273
        %v7489 = vsel %vm6075, %v7389, -inf
        %v7490 = vmax.f32 %v7488, %v7489
        %v7491 = vrot.slane %v7490, 4
        %v7492 = vmax.f32 %v7490, %v7491
        %v7493 = vrot.slane %v7492, 2
        %v7494 = vmax.f32 %v7492, %v7493
        %v7495 = vrot.slane %v7494, 1
        %v7496 = vmax.f32 %v7494, %v7495
        %v7497 = vmax.f32 %v7042, %v7159
        %v7498 = vmax.f32 %v7497, %v7276
        %v7499 = vsel %vm6075, %v7392, -inf
        %v7500 = vmax.f32 %v7498, %v7499
        %v7501 = vrot.slane %v7500, 4
        %v7502 = vmax.f32 %v7500, %v7501
        %v7503 = vrot.slane %v7502, 2
        %v7504 = vmax.f32 %v7502, %v7503
        %v7505 = vrot.slane %v7504, 1
        %v7506 = vmax.f32 %v7504, %v7505
        %v7507 = vmax.f32 %v7040, %v7157
        %v7508 = vmax.f32 %v7507, %v7274
        %v7509 = vsel %vm6075, %v7390, -inf
        %v7510 = vmax.f32 %v7508, %v7509
        %v7511 = vrot.slane %v7510, 4
        %v7512 = vmax.f32 %v7510, %v7511
        %v7513 = vrot.slane %v7512, 2
        %v7514 = vmax.f32 %v7512, %v7513
        %v7515 = vrot.slane %v7514, 1
        %v7516 = vmax.f32 %v7514, %v7515
        %v7517 = vmax.f32 %v7043, %v7160
        %v7518 = vmax.f32 %v7517, %v7277
        %v7519 = vsel %vm6075, %v7393, -inf
        %v7520 = vmax.f32 %v7518, %v7519
        %v7521 = vrot.slane %v7520, 4
        %v7522 = vmax.f32 %v7520, %v7521
        %v7523 = vrot.slane %v7522, 2
        %v7524 = vmax.f32 %v7522, %v7523
        %v7525 = vrot.slane %v7524, 1
        %v7526 = vmax.f32 %v7524, %v7525
        %v7527 = vsel %vm6114, %v7041, -inf
        %v7528 = vsel %vm6114, %v7158, -inf
        %v7529 = vmax.f32 %v7527, %v7528
        %v7530 = vsel %vm6114, %v7275, -inf
        %v7531 = vmax.f32 %v7529, %v7530
        %v7532 = vsel %vm6120, %v7391, -inf
        %v7533 = vmax.f32 %v7531, %v7532
        %v7534 = vrot.slane %v7533, 4
        %v7535 = vmax.f32 %v7533, %v7534
        %v7536 = vrot.slane %v7535, 2
        %v7537 = vmax.f32 %v7535, %v7536
        %v7538 = vrot.slane %v7537, 1
        %v7539 = vmax.f32 %v7537, %v7538
        %v7540 = vadd.f32 %v7443, %v6186
        %v7541 = vadd.f32 %v7453, %v6190
        %v7542 = vadd.f32 %v7463, %v6194
        %v7543 = vadd.f32 %v7473, %v6198
        %v7544 = vadd.f32 %v7486, %v6202
        %v7545 = vadd.f32 %v7496, %v6186
        %v7546 = vadd.f32 %v7506, %v6190
        %v7547 = vadd.f32 %v7516, %v6194
        %v7548 = vadd.f32 %v7526, %v6198
        %v7549 = vadd.f32 %v7539, %v6202
        %v7550 = vmax.f32 %v7540, 0.0
        %v7551 = vmax.f32 %v7541, 0.0
        %v7552 = vmax.f32 %v7542, 0.0
        %v7553 = vmax.f32 %v7543, 0.0
        %v7554 = vmax.f32 %v7544, 0.0
        %v7555 = vmax.f32 %v7545, 0.0
        %v7556 = vmax.f32 %v7546, 0.0
        %v7557 = vmax.f32 %v7547, 0.0
        %v7558 = vmax.f32 %v7548, 0.0
        %v7559 = vmax.f32 %v7549, 0.0
        %v7566 = vcombine.low %v7550, %v7551
        %v7568 = vunpack.c.l.s4 1983009808
        %v7569 = vunpack.c.0.s8 %v7568
        %v7570 = vlaneseq
        %v7571 = vshrl.u32 %v7570, 7
        %v7572 = vsub.s32 %v7569, %v7571
        %v7573 = vrot.slane %v7566, %v7572
        %v7575 = vunpack.c.l.s4 1983009808
        %v7576 = vunpack.c.0.s8 %v7575
        %v7577 = vlaneseq
        %v7578 = vshrl.u32 %v7577, 7
        %v7579 = vsub.s32 %v7576, %v7578
        %v7580 = vrot.slane %v7552, %v7579
        %v7581 = vcombine.low %v7573, %v7580
        %v7582 = vcombine.low %v7555, %v7556
        %v7584 = vunpack.c.l.s4 1983009808
        %v7585 = vunpack.c.0.s8 %v7584
        %v7586 = vlaneseq
        %v7587 = vshrl.u32 %v7586, 7
        %v7588 = vsub.s32 %v7585, %v7587
        %v7589 = vrot.slane %v7582, %v7588
        %v7591 = vunpack.c.l.s4 1983009808
        %v7592 = vunpack.c.0.s8 %v7591
        %v7593 = vlaneseq
        %v7594 = vshrl.u32 %v7593, 7
        %v7595 = vsub.s32 %v7592, %v7594
        %v7596 = vrot.slane %v7557, %v7595
        %v7597 = vcombine.low %v7589, %v7596
        %v7598 = vsel %vm6266, %v7581, %v7581
        %v7599 = vsel %vm6268, %v7581, %v7598
        %v7600 = vrot.slane %v7597, 7
        %v7601 = vsel %vm6271, %v7600, %v7599
        %v7602 = vsel %vm6273, %v7600, %v7601
        %v7603 = vsel %vm6275, %v7600, %v7602
        %v7604 = vsel %vm6277, %v7600, %v7603
        %s7606 = scalar_lea.vmem %s322, 6 [#allocation7]
        %7607 = vst.msk [vmem:[%s7606] sm:$0x3f] %vm6284, %v7604
        %v7612 = vcombine.low %v7552, %v7553
        %v7614 = vunpack.c.l.s4 1983009808
        %v7615 = vunpack.c.0.s8 %v7614
        %v7616 = vlaneseq
        %v7617 = vshrl.u32 %v7616, 7
        %v7618 = vsub.s32 %v7615, %v7617
        %v7619 = vrot.slane %v7612, %v7618
        %v7621 = vunpack.c.l.s4 1983009808
        %v7622 = vunpack.c.0.s8 %v7621
        %v7623 = vlaneseq
        %v7624 = vshrl.u32 %v7623, 7
        %v7625 = vsub.s32 %v7622, %v7624
        %v7626 = vrot.slane %v7554, %v7625
        %v7627 = vcombine.low %v7619, %v7626
        %v7628 = vcombine.low %v7557, %v7558
        %v7630 = vunpack.c.l.s4 1983009808
        %v7631 = vunpack.c.0.s8 %v7630
        %v7632 = vlaneseq
        %v7633 = vshrl.u32 %v7632, 7
        %v7634 = vsub.s32 %v7631, %v7633
        %v7635 = vrot.slane %v7628, %v7634
        %v7637 = vunpack.c.l.s4 1983009808
        %v7638 = vunpack.c.0.s8 %v7637
        %v7639 = vlaneseq
        %v7640 = vshrl.u32 %v7639, 7
        %v7641 = vsub.s32 %v7638, %v7640
        %v7642 = vrot.slane %v7559, %v7641
        %v7643 = vcombine.low %v7635, %v7642
        %v7644 = vsel %vm6266, %v7627, %v7627
        %v7645 = vsel %vm6268, %v7627, %v7644
        %v7646 = vrot.slane %v7643, 7
        %v7647 = vsel %vm6271, %v7646, %v7645
        %v7648 = vsel %vm6273, %v7646, %v7647
        %v7649 = vsel %vm6275, %v7646, %v7648
        %v7650 = vsel %vm6277, %v7646, %v7649
        %7651 = vrot.lane.b32.xlu0 %v7650, 84
        %v7652 = vpop.permute.xlu0 %7651
        %v7653 = vrot.slane %v7652, 2
        %v7654 = vsel %vm6332, %v7652, %v7653
        %s7656 = scalar_lea.vmem %s329, 6 [#allocation8]
        %7657 = vst.msk [vmem:[%s7656] sm:$0x3f] %vm6284, %v7654
        %s7658 = sand.u32 %s165, 1
        %s7659 = scalar_lea.sflag [#allocation4], %s7658
        %s7660 = sand.u32 %s165, 1
        %s7661 = smul.addr %s7660, 12
        %s7662 = scalar_lea.vmem [#allocation7], %s7661
        %s7663 = sand.u32 %s193, 1
        %s7664 = scalar_lea.sflag [#allocation9], %s7663
        %s7665 = sand.u32 %s193, 1
        %s7666 = smul.addr %s7665, 12
        %s7667 = scalar_lea.vmem [#allocation8], %s7666
        // Predicated region
        $region49: #{tpu_custom_call.1} parent=39 // pred_check
          %p7668 = pneg %p175
        $region50: #{tpu_custom_call.1} parent=39 // pred_check_branch
          %7670 = sbr.rel (%p7668) target = $region52
        $region51: #{tpu_custom_call.1} parent=39 // pred_region
          %s7671 = smul.u32 2, %s31
          %s7673 = ssub.s32 192, 192
          %7674 = vsyncadd %s7659, %s7673
          %s7675 = smul.addr %s7671, 3
          %s7676 = smul.addr %s30, 6
          %s7677 = sadd.s32 %s7675, %s7676
          %s7678 = smul.addr %s7677, 32
          %s7679 = scalar_lea.hbm %s5, %s7678
          %s7680 = sshll.u32 %s7662, 4
          %s7681 = int_to_ptr.vmem [resolvable:$true] %s7680
          %7686 = dma.vmem_to_hbm [thread:$0]  %s7681, 192, %s7679, %s7659, 96, 96, 6
        $region52: #{tpu_custom_call.1} parent=39 // pred_fallthru
          _
        // Predicated region
        $region53: #{tpu_custom_call.1} parent=39 // pred_check
          %p7687 = pneg %p203
        $region54: #{tpu_custom_call.1} parent=39 // pred_check_branch
          %7689 = sbr.rel (%p7687) target = $region56
        $region55: #{tpu_custom_call.1} parent=39 // pred_region
          %s7690 = smul.u32 2, %s31
          %s7692 = ssub.s32 192, 192
          %7693 = vsyncadd %s7664, %s7692
          %s7694 = smul.addr %s7690, 3
          %s7695 = smul.addr %s30, 6
          %s7696 = sadd.s32 %s7694, %s7695
          %s7697 = smul.addr %s7696, 32
          %s7698 = scalar_lea.hbm %s6, %s7697
          %s7699 = sshll.u32 %s7667, 4
          %s7700 = int_to_ptr.vmem [resolvable:$true] %s7699
          %7705 = dma.vmem_to_hbm [thread:$0]  %s7700, 192, %s7698, %s7664, 96, 96, 6
        $region56: #{tpu_custom_call.1} parent=39 // pred_fallthru
          _
      $region40: #{tpu_custom_call.1} parent=5 // pred_fallthru
        _
      %p7706 = scmp.le.s32.totalorder 2, %s21
      // Predicated region
      $region57: #{tpu_custom_call.1} parent=5 // pred_check
        %p7707 = pneg %p7706
      $region58: #{tpu_custom_call.1} parent=5 // pred_check_branch
        %7709 = sbr.rel (%p7707) target = $region60
      $region59: #{tpu_custom_call.1} parent=5 // pred_region
        %s7710 = ssub.s32 %s21, 2
        // Predicated region
        $region61: #{tpu_custom_call.1} parent=59 // pred_check
          %p7711 = pneg %p181
        $region62: #{tpu_custom_call.1} parent=59 // pred_check_branch
          %7713 = sbr.rel (%p7711) target = $region64
        $region63: #{tpu_custom_call.1} parent=59 // pred_region
          %s7714 = sand.u32 %s166, 1
          %s7715 = scalar_lea.sflag [#allocation4], %s7714
          %s7716 = sand.u32 %s166, 1
          %s7717 = smul.addr %s7716, 12
          %s7718 = scalar_lea.vmem [#allocation7], %s7717
          %7719 = dma.done %s7715, 192
        $region64: #{tpu_custom_call.1} parent=59 // pred_fallthru
          _
        // Predicated region
        $region65: #{tpu_custom_call.1} parent=59 // pred_check
          %p7720 = pneg %p209
        $region66: #{tpu_custom_call.1} parent=59 // pred_check_branch
          %7722 = sbr.rel (%p7720) target = $region68
        $region67: #{tpu_custom_call.1} parent=59 // pred_region
          %s7723 = sand.u32 %s194, 1
          %s7724 = scalar_lea.sflag [#allocation9], %s7723
          %s7725 = sand.u32 %s194, 1
          %s7726 = smul.addr %s7725, 12
          %s7727 = scalar_lea.vmem [#allocation8], %s7726
          %7728 = dma.done %s7724, 192
        $region68: #{tpu_custom_call.1} parent=59 // pred_fallthru
          _
      $region60: #{tpu_custom_call.1} parent=5 // pred_fallthru
        _
    $region6: #{tpu_custom_call.1} parent=1 // loop_footer
      %s25 = sadd.s32 1, %s21
    $region7: #{tpu_custom_call.1} parent=1 // loop_footer_branch
      %20 = sbr.rel target = $region3
    $region8: #{tpu_custom_call.1} parent=1 // loop_exit
      _
    %7729 = vsyncpa [#allocation3], 1
    %s7730 = scalar_lea.sflag [#allocation3], 1
    %7731 = vsyncpa %s7730, 1
    %7732 = vsyncpa [#allocation6], 1
    %7733 = vsyncpa [#allocation4], 1
    %s7734 = scalar_lea.sflag [#allocation4], 1
    %7735 = vsyncpa %s7734, 1
    %7736 = vsyncpa [#allocation9], 1
    %s7737 = scalar_lea.sflag [#allocation9], 1
    %7738 = vsyncpa %s7737, 1

</llo_original>
